<compile_context>
chip_gen: v7x
topology: tpu7x:2x2x1
jax: 0.10.0
libtpu: 0.0.40
codegen_flags: <defaults>
</compile_context>

<pallas_src>
import math
import numpy as np
import jax
import jax.numpy as jnp
from jax.experimental import pallas as pl
from jax.experimental.pallas import tpu as pltpu

# ---- hyperparameters from the PyTorch module -------------------------------
d_model = 128
dim_feedforward = 256
dim_hidden1 = 256
dim_hidden2 = 512
input_dim = 13
num_heads = 8
num_layers = 4
head_dim = d_model // num_heads
LN_EPS = 1e-5
BN_EPS = 1e-5


# ---------------------------- fused Pallas kernel ---------------------------
def _layernorm(x, g, b):
    mu = jnp.mean(x, axis=-1, keepdims=True)
    xc = x - mu
    var = jnp.mean(xc * xc, axis=-1, keepdims=True)
    return xc * jax.lax.rsqrt(var + LN_EPS) * g + b


def fused_forward_kernel(
        x_ref, inp_w_ref, inp_b_ref,
        wqkv_ref, bqkv_ref, wo_ref, bo_ref,
        ln1g_ref, ln1b_ref, w1_ref, b1_ref, w2_ref, b2_ref,
        ln2g_ref, ln2b_ref,
        l1_w_ref, l1_b_ref, l2_w_ref, l2_b_ref,
        fc_w_ref, fc_b_ref,
        o_ref):
    scale = 1.0 / math.sqrt(head_dim)

    def bdot(a_f32, w_bf16):
        # activations kept in f32; cast only at the matmul operand (bf16 MXU),
        # accumulate in f32.
        return jnp.dot(a_f32.astype(jnp.bfloat16), w_bf16,
                       preferred_element_type=jnp.float32)

    # input projection (x and inp_w zero-padded 13 -> 128 on the contraction dim)
    h = bdot(x_ref[...], inp_w_ref[...]) + inp_b_ref[...]          # (S, E) f32

    def layer_step(l, h):
        # --- multi-head self-attention -------------------------------------
        # one lane-dense fused QKV matmul: (S,128) @ (128,384)
        qkv = bdot(h, wqkv_ref[l]) + bqkv_ref[l]                    # (S, 3E) f32
        ctx_parts = []
        for hh in range(num_heads):                                 # static, tiny
            lo = hh * head_dim
            q = qkv[:, lo:lo + head_dim]
            k = qkv[:, d_model + lo:d_model + lo + head_dim]
            v = qkv[:, 2 * d_model + lo:2 * d_model + lo + head_dim]
            s = jax.lax.dot_general(q, k, (((1,), (1,)), ((), ())),
                                    preferred_element_type=jnp.float32) * scale
            s = s - jnp.max(s, axis=-1, keepdims=True)
            p = jnp.exp(s)
            p = p * pl.reciprocal(jnp.sum(p, axis=-1, keepdims=True), approx=True)
            ctx_parts.append(jnp.dot(p, v, preferred_element_type=jnp.float32))
        ctx = jnp.concatenate(ctx_parts, axis=-1)                   # (S, E)
        # single full-depth output projection: (S,128) @ (128,128)
        attn = bdot(ctx, wo_ref[l]) + bo_ref[l]

        # --- post-norm residual + FFN ---------------------------------------
        h = _layernorm(h + attn, ln1g_ref[l], ln1b_ref[l])
        ff = jnp.maximum(bdot(h, w1_ref[l]) + b1_ref[l], 0.0)
        ff = bdot(ff, w2_ref[l]) + b2_ref[l]
        h = _layernorm(h + ff, ln2g_ref[l], ln2b_ref[l])
        return h

    h = jax.lax.fori_loop(0, num_layers, layer_step, h)

    # --- regression head: Linear -> BN(eval, folded) -> ReLU, twice, then fc ---
    y = jnp.maximum(bdot(h, l1_w_ref[...]) + l1_b_ref[...], 0.0)
    y = jnp.maximum(bdot(y, l2_w_ref[...]) + l2_b_ref[...], 0.0)
    # fc weight is zero-padded (512,1) -> (512,128) for a lane-dense store.
    o_ref[...] = bdot(y, fc_w_ref[...]) + fc_b_ref[...]


# ------------------------- pallas_call wrapper -------------------------------
def _full_spec(a):
    nd = a.ndim
    return pl.BlockSpec(a.shape, lambda i, _nd=nd: (0,) * _nd)


def pallas_forward(kp, x):
    S = x.shape[0]
    x_p = jnp.zeros((S, d_model), jnp.float32).at[:, :input_dim].set(x)
    args = (x_p, kp['inp_w'], kp['inp_b'],
            kp['wqkv'], kp['bqkv'], kp['wo'], kp['bo'],
            kp['ln1g'], kp['ln1b'], kp['w1'], kp['b1'], kp['w2'], kp['b2'],
            kp['ln2g'], kp['ln2b'],
            kp['l1_w'], kp['l1_b'], kp['l2_w'], kp['l2_b'],
            kp['fc_w'], kp['fc_b'])
    out = pl.pallas_call(
        fused_forward_kernel,
        out_shape=jax.ShapeDtypeStruct((S, d_model), jnp.float32),
        grid=(1,),
        in_specs=[_full_spec(a) for a in args],
        out_specs=pl.BlockSpec((S, d_model), lambda i: (0, 0)),
        compiler_params=pltpu.CompilerParams(
            dimension_semantics=("arbitrary",),
            vmem_limit_bytes=32 * 1024 * 1024),
    )(*args)
    return out[:, :1]


# -------------------- deterministic parameter construction ------------------
def init_params(key):
    keys = iter(jax.random.split(key, 128))
    nxt = lambda: next(keys)

    def linear(out_f, in_f):
        bound = 1.0 / math.sqrt(in_f)
        W = jax.random.uniform(nxt(), (out_f, in_f), jnp.float32, -bound, bound)
        b = jax.random.uniform(nxt(), (out_f,), jnp.float32, -bound, bound)
        return W, b

    raw = {}
    raw['inp_W'], raw['inp_b'] = linear(d_model, input_dim)
    raw['layers'] = []
    for _ in range(num_layers):
        Wqkv, bqkv = linear(3 * d_model, d_model)
        Wo, bo = linear(d_model, d_model)
        W1, b1 = linear(dim_feedforward, d_model)
        W2, b2 = linear(d_model, dim_feedforward)
        ln1_g = 1.0 + 0.1 * jax.random.normal(nxt(), (d_model,), jnp.float32)
        ln1_b = 0.1 * jax.random.normal(nxt(), (d_model,), jnp.float32)
        ln2_g = 1.0 + 0.1 * jax.random.normal(nxt(), (d_model,), jnp.float32)
        ln2_b = 0.1 * jax.random.normal(nxt(), (d_model,), jnp.float32)
        raw['layers'].append(dict(Wqkv=Wqkv, bqkv=bqkv, Wo=Wo, bo=bo,
                                  W1=W1, b1=b1, W2=W2, b2=b2,
                                  ln1_g=ln1_g, ln1_b=ln1_b, ln2_g=ln2_g, ln2_b=ln2_b))
    raw['l1_W'], raw['l1_b'] = linear(dim_hidden1, d_model)
    raw['l2_W'], raw['l2_b'] = linear(dim_hidden2, dim_hidden1)
    raw['fc_W'], raw['fc_b'] = linear(1, dim_hidden2)

    def bn(c):
        g = 1.0 + 0.1 * jax.random.normal(nxt(), (c,), jnp.float32)
        b = 0.1 * jax.random.normal(nxt(), (c,), jnp.float32)
        m = 0.1 * jax.random.normal(nxt(), (c,), jnp.float32)
        v = jax.random.uniform(nxt(), (c,), jnp.float32, 0.5, 1.5)
        return g, b, m, v

    raw['bn1'] = bn(dim_hidden1)
    raw['bn2'] = bn(dim_hidden2)
    return raw


def derive_kernel_params(raw):
    f32, bf16 = jnp.float32, jnp.bfloat16
    vec = lambda v: v[None, :].astype(f32)
    layers = raw['layers']

    kp = {}
    # input projection: (in,out) layout, contraction dim zero-padded 13 -> 128
    inp_w = jnp.zeros((d_model, d_model), f32).at[:input_dim, :].set(raw['inp_W'].T)
    kp['inp_w'] = inp_w.astype(bf16)
    kp['inp_b'] = vec(raw['inp_b'])

    # per-layer weights stacked on a leading (num_layers, ...) axis
    kp['wqkv'] = jnp.stack([L['Wqkv'].T for L in layers]).astype(bf16)   # (L,128,384)
    kp['bqkv'] = jnp.stack([vec(L['bqkv']) for L in layers])             # (L,1,384)
    kp['wo'] = jnp.stack([L['Wo'].T for L in layers]).astype(bf16)       # (L,128,128)
    kp['bo'] = jnp.stack([vec(L['bo']) for L in layers])
    kp['ln1g'] = jnp.stack([vec(L['ln1_g']) for L in layers])
    kp['ln1b'] = jnp.stack([vec(L['ln1_b']) for L in layers])
    kp['w1'] = jnp.stack([L['W1'].T for L in layers]).astype(bf16)       # (L,128,256)
    kp['b1'] = jnp.stack([vec(L['b1']) for L in layers])
    kp['w2'] = jnp.stack([L['W2'].T for L in layers]).astype(bf16)       # (L,256,128)
    kp['b2'] = jnp.stack([vec(L['b2']) for L in layers])
    kp['ln2g'] = jnp.stack([vec(L['ln2_g']) for L in layers])
    kp['ln2b'] = jnp.stack([vec(L['ln2_b']) for L in layers])

    # fold BatchNorm1d (eval) into the preceding Linear
    def fold_bn(W, b_lin, g, beta, m, v):
        s = g / jnp.sqrt(v + BN_EPS)
        w_f = W.T * s[None, :]
        b_f = (b_lin - m) * s + beta
        return w_f.astype(bf16), vec(b_f)

    kp['l1_w'], kp['l1_b'] = fold_bn(raw['l1_W'], raw['l1_b'], *raw['bn1'])
    kp['l2_w'], kp['l2_b'] = fold_bn(raw['l2_W'], raw['l2_b'], *raw['bn2'])

    # fc padded to 128 output lanes (column 0 is the real output)
    fc_w = jnp.zeros((dim_hidden2, d_model), f32).at[:, :1].set(raw['fc_W'].T)
    kp['fc_w'] = fc_w.astype(bf16)
    kp['fc_b'] = jnp.zeros((1, d_model), f32).at[0, 0].set(raw['fc_b'][0])
    return kp


# --------------------------- pure-JAX reference ------------------------------
def _ln_ref(x, g, b):
    mu = jnp.mean(x, axis=-1, keepdims=True)
    var = jnp.mean((x - mu) ** 2, axis=-1, keepdims=True)
    return (x - mu) / jnp.sqrt(var + LN_EPS) * g + b


def _bn_eval(y, g, b, m, v):
    return (y - m) / jnp.sqrt(v + BN_EPS) * g + b


def ref_encoder_layer(x, L):
    S = x.shape[0]
    qkv = x @ L['Wqkv'].T + L['bqkv']
    q, k, v = jnp.split(qkv, 3, axis=-1)
    to_heads = lambda t: t.reshape(S, num_heads, head_dim).transpose(1, 0, 2)
    q, k, v = to_heads(q), to_heads(k), to_heads(v)
    s = jnp.einsum('hqd,hkd->hqk', q, k) / math.sqrt(head_dim)
    p = jax.nn.softmax(s, axis=-1)
    ctx = jnp.einsum('hqk,hkd->hqd', p, v).transpose(1, 0, 2).reshape(S, d_model)
    attn = ctx @ L['Wo'].T + L['bo']
    x = _ln_ref(x + attn, L['ln1_g'], L['ln1_b'])
    ff = jnp.maximum(x @ L['W1'].T + L['b1'], 0.0) @ L['W2'].T + L['b2']
    return _ln_ref(x + ff, L['ln2_g'], L['ln2_b'])


def ref_forward(raw, x):
    h = x @ raw['inp_W'].T + raw['inp_b']
    for L in raw['layers']:
        h = ref_encoder_layer(h, L)
    y = h @ raw['l1_W'].T + raw['l1_b']
    y = jnp.maximum(_bn_eval(y, *raw['bn1']), 0.0)
    y = y @ raw['l2_W'].T + raw['l2_b']
    y = jnp.maximum(_bn_eval(y, *raw['bn2']), 0.0)
    return y @ raw['fc_W'].T + raw['fc_b']


# ----------------------------------- main ------------------------------------
if __name__ == "__main__":
    # TODO(synk): dropout (p=0.1) and BatchNorm batch-statistics are training-mode
    # stochastic/batch-dependent; implemented here in inference (eval) mode.
    key = jax.random.PRNGKey(0)
    pkey, xkey = jax.random.split(key)
    raw = init_params(pkey)
    kp = derive_kernel_params(raw)

    batch = 8   # also the attention "sequence" length for 2-D input
    x = jax.random.normal(xkey, (batch, input_dim), jnp.float32)

    fwd = jax.jit(pallas_forward)
    out = jax.block_until_ready(fwd(kp, x))
    ref = jax.block_until_ready(ref_forward(raw, x))

    assert out.shape == (batch, 1)
    assert np.all(np.isfinite(np.asarray(out)))
    assert np.allclose(np.asarray(out), np.asarray(ref), rtol=5e-2, atol=5e-2)
    print("KERNEL_OK")
</pallas_src>

<mosaic_0001>
module attributes {stable_mosaic.version = 11 : i64} {
  func.func @fused_forward_kernel(%arg0: i32, %arg1: memref<8x128xf32, #tpu.memory_space<vmem>>, %arg2: memref<128x128xbf16, #tpu.memory_space<vmem>>, %arg3: memref<1x128xf32, #tpu.memory_space<vmem>>, %arg4: memref<4x128x384xbf16, #tpu.memory_space<vmem>>, %arg5: memref<4x1x384xf32, #tpu.memory_space<vmem>>, %arg6: memref<4x128x128xbf16, #tpu.memory_space<vmem>>, %arg7: memref<4x1x128xf32, #tpu.memory_space<vmem>>, %arg8: memref<4x1x128xf32, #tpu.memory_space<vmem>>, %arg9: memref<4x1x128xf32, #tpu.memory_space<vmem>>, %arg10: memref<4x128x256xbf16, #tpu.memory_space<vmem>>, %arg11: memref<4x1x256xf32, #tpu.memory_space<vmem>>, %arg12: memref<4x256x128xbf16, #tpu.memory_space<vmem>>, %arg13: memref<4x1x128xf32, #tpu.memory_space<vmem>>, %arg14: memref<4x1x128xf32, #tpu.memory_space<vmem>>, %arg15: memref<4x1x128xf32, #tpu.memory_space<vmem>>, %arg16: memref<128x256xbf16, #tpu.memory_space<vmem>>, %arg17: memref<1x256xf32, #tpu.memory_space<vmem>>, %arg18: memref<256x512xbf16, #tpu.memory_space<vmem>>, %arg19: memref<1x512xf32, #tpu.memory_space<vmem>>, %arg20: memref<512x128xbf16, #tpu.memory_space<vmem>>, %arg21: memref<1x128xf32, #tpu.memory_space<vmem>>, %arg22: memref<8x128xf32, #tpu.memory_space<vmem>>) attributes {dimension_semantics = [#tpu.dimension_semantics<arbitrary>], iteration_bounds = array<i64: 1>, scalar_prefetch = 0 : i64, scratch_operands = 0 : i64, tpu.core_type = #tpu.core_type<tc>, window_params = [{pipeline_mode = #tpu.pipeline_mode<synchronous>, transform_indices = @transform_0, window_bounds = array<i64: 8, 128>}, {pipeline_mode = #tpu.pipeline_mode<synchronous>, transform_indices = @transform_1, window_bounds = array<i64: 128, 128>}, {pipeline_mode = #tpu.pipeline_mode<synchronous>, transform_indices = @transform_2, window_bounds = array<i64: 1, 128>}, {pipeline_mode = #tpu.pipeline_mode<synchronous>, transform_indices = @transform_3, window_bounds = array<i64: 4, 128, 384>}, {pipeline_mode = #tpu.pipeline_mode<synchronous>, transform_indices = @transform_4, window_bounds = array<i64: 4, 1, 384>}, {pipeline_mode = #tpu.pipeline_mode<synchronous>, transform_indices = @transform_5, window_bounds = array<i64: 4, 128, 128>}, {pipeline_mode = #tpu.pipeline_mode<synchronous>, transform_indices = @transform_6, window_bounds = array<i64: 4, 1, 128>}, {pipeline_mode = #tpu.pipeline_mode<synchronous>, transform_indices = @transform_7, window_bounds = array<i64: 4, 1, 128>}, {pipeline_mode = #tpu.pipeline_mode<synchronous>, transform_indices = @transform_8, window_bounds = array<i64: 4, 1, 128>}, {pipeline_mode = #tpu.pipeline_mode<synchronous>, transform_indices = @transform_9, window_bounds = array<i64: 4, 128, 256>}, {pipeline_mode = #tpu.pipeline_mode<synchronous>, transform_indices = @transform_10, window_bounds = array<i64: 4, 1, 256>}, {pipeline_mode = #tpu.pipeline_mode<synchronous>, transform_indices = @transform_11, window_bounds = array<i64: 4, 256, 128>}, {pipeline_mode = #tpu.pipeline_mode<synchronous>, transform_indices = @transform_12, window_bounds = array<i64: 4, 1, 128>}, {pipeline_mode = #tpu.pipeline_mode<synchronous>, transform_indices = @transform_13, window_bounds = array<i64: 4, 1, 128>}, {pipeline_mode = #tpu.pipeline_mode<synchronous>, transform_indices = @transform_14, window_bounds = array<i64: 4, 1, 128>}, {pipeline_mode = #tpu.pipeline_mode<synchronous>, transform_indices = @transform_15, window_bounds = array<i64: 128, 256>}, {pipeline_mode = #tpu.pipeline_mode<synchronous>, transform_indices = @transform_16, window_bounds = array<i64: 1, 256>}, {pipeline_mode = #tpu.pipeline_mode<synchronous>, transform_indices = @transform_17, window_bounds = array<i64: 256, 512>}, {pipeline_mode = #tpu.pipeline_mode<synchronous>, transform_indices = @transform_18, window_bounds = array<i64: 1, 512>}, {pipeline_mode = #tpu.pipeline_mode<synchronous>, transform_indices = @transform_19, window_bounds = array<i64: 512, 128>}, {pipeline_mode = #tpu.pipeline_mode<synchronous>, transform_indices = @transform_20, window_bounds = array<i64: 1, 128>}, {pipeline_mode = #tpu.pipeline_mode<synchronous>, transform_indices = @transform_21, window_bounds = array<i64: 8, 128>}]} {
    %c0 = arith.constant 0 : index
    %c0_0 = arith.constant 0 : index
    %0 = vector.load %arg1[%c0, %c0_0] : memref<8x128xf32, #tpu.memory_space<vmem>>, vector<8x128xf32>
    %c0_1 = arith.constant 0 : index
    %c0_2 = arith.constant 0 : index
    %1 = vector.load %arg2[%c0_1, %c0_2] : memref<128x128xbf16, #tpu.memory_space<vmem>>, vector<128x128xbf16>
    %2 = arith.truncf %0 : vector<8x128xf32> to vector<8x128xbf16>
    %cst = arith.constant dense<0.000000e+00> : vector<8x128xf32>
    %3 = tpu.matmul %2, %1, %cst {dimension_numbers = #tpu.dot_dimension_numbers<[1], [0], [0], [1], [0, 0, 1, 1], [], []>} : vector<8x128xbf16>, vector<128x128xbf16>, vector<8x128xf32> -> vector<8x128xf32>
    %c0_3 = arith.constant 0 : index
    %c0_4 = arith.constant 0 : index
    %4 = vector.load %arg3[%c0_3, %c0_4] : memref<1x128xf32, #tpu.memory_space<vmem>>, vector<1x128xf32>
    %5 = vector.broadcast %4 : vector<1x128xf32> to vector<8x128xf32>
    %6 = arith.addf %3, %5 : vector<8x128xf32>
    %c0_i32 = arith.constant 0 : i32
    %c4_i32 = arith.constant 4 : i32
    %7 = arith.addi %c0_i32, %c4_i32 : i32
    %c1_i32 = arith.constant 1 : i32
    %8 = scf.for %arg23 = %c0_i32 to %7 step %c1_i32 iter_args(%arg24 = %6) -> (vector<8x128xf32>)  : i32 {
      %32 = arith.index_cast %arg23 : i32 to index
      %c0_25 = arith.constant 0 : index
      %c0_26 = arith.constant 0 : index
      %33 = vector.load %arg4[%32, %c0_25, %c0_26] : memref<4x128x384xbf16, #tpu.memory_space<vmem>>, vector<1x128x384xbf16>
      %34 = vector.shape_cast %33 : vector<1x128x384xbf16> to vector<128x384xbf16>
      %35 = arith.truncf %arg24 : vector<8x128xf32> to vector<8x128xbf16>
      %cst_27 = arith.constant dense<0.000000e+00> : vector<8x384xf32>
      %36 = tpu.matmul %35, %34, %cst_27 {dimension_numbers = #tpu.dot_dimension_numbers<[1], [0], [0], [1], [0, 0, 1, 1], [], []>} : vector<8x128xbf16>, vector<128x384xbf16>, vector<8x384xf32> -> vector<8x384xf32>
      %37 = arith.index_cast %arg23 : i32 to index
      %c0_28 = arith.constant 0 : index
      %c0_29 = arith.constant 0 : index
      %38 = vector.load %arg5[%37, %c0_28, %c0_29] : memref<4x1x384xf32, #tpu.memory_space<vmem>>, vector<1x1x384xf32>
      %39 = vector.shape_cast %38 : vector<1x1x384xf32> to vector<1x384xf32>
      %40 = vector.broadcast %39 : vector<1x384xf32> to vector<8x384xf32>
      %41 = arith.addf %36, %40 : vector<8x384xf32>
      %42 = vector.extract_strided_slice %41 {offsets = [0, 0], sizes = [8, 16], strides = [1, 1]} : vector<8x384xf32> to vector<8x16xf32>
      %43 = vector.extract_strided_slice %41 {offsets = [0, 128], sizes = [8, 16], strides = [1, 1]} : vector<8x384xf32> to vector<8x16xf32>
      %44 = vector.extract_strided_slice %41 {offsets = [0, 256], sizes = [8, 16], strides = [1, 1]} : vector<8x384xf32> to vector<8x16xf32>
      %cst_30 = arith.constant dense<0.000000e+00> : vector<8x8xf32>
      %45 = tpu.matmul %42, %43, %cst_30 {dimension_numbers = #tpu.dot_dimension_numbers<[1], [1], [0], [0], [0, 0, 1, 0], [], []>} : vector<8x16xf32>, vector<8x16xf32>, vector<8x8xf32> -> vector<8x8xf32>
      %cst_31 = arith.constant 2.500000e-01 : f32
      %46 = vector.broadcast %cst_31 : f32 to vector<8x8xf32>
      %47 = arith.mulf %45, %46 : vector<8x8xf32>
      %cst_32 = arith.constant dense<0xFF800000> : vector<8xf32>
      %48 = vector.multi_reduction <maximumf>, %47, %cst_32 [1] : vector<8x8xf32> to vector<8xf32>
      %49 = vector.shape_cast %48 : vector<8xf32> to vector<8x1xf32>
      %50 = vector.broadcast %49 : vector<8x1xf32> to vector<8x8xf32>
      %51 = arith.subf %47, %50 : vector<8x8xf32>
      %52 = math.exp %51 : vector<8x8xf32>
      %cst_33 = arith.constant dense<0.000000e+00> : vector<8xf32>
      %53 = vector.multi_reduction <add>, %52, %cst_33 [1] : vector<8x8xf32> to vector<8xf32>
      %54 = vector.shape_cast %53 : vector<8xf32> to vector<8x1xf32>
      %55 = tpu.reciprocal %54 {approx = true} : vector<8x1xf32> -> vector<8x1xf32>
      %56 = vector.broadcast %55 : vector<8x1xf32> to vector<8x8xf32>
      %57 = arith.mulf %52, %56 : vector<8x8xf32>
      %cst_34 = arith.constant dense<0.000000e+00> : vector<8x16xf32>
      %58 = tpu.matmul %57, %44, %cst_34 {dimension_numbers = #tpu.dot_dimension_numbers<[1], [0], [0], [1], [0, 0, 1, 1], [], []>} : vector<8x8xf32>, vector<8x16xf32>, vector<8x16xf32> -> vector<8x16xf32>
      %59 = vector.extract_strided_slice %41 {offsets = [0, 16], sizes = [8, 16], strides = [1, 1]} : vector<8x384xf32> to vector<8x16xf32>
      %60 = vector.extract_strided_slice %41 {offsets = [0, 144], sizes = [8, 16], strides = [1, 1]} : vector<8x384xf32> to vector<8x16xf32>
      %61 = vector.extract_strided_slice %41 {offsets = [0, 272], sizes = [8, 16], strides = [1, 1]} : vector<8x384xf32> to vector<8x16xf32>
      %cst_35 = arith.constant dense<0.000000e+00> : vector<8x8xf32>
      %62 = tpu.matmul %59, %60, %cst_35 {dimension_numbers = #tpu.dot_dimension_numbers<[1], [1], [0], [0], [0, 0, 1, 0], [], []>} : vector<8x16xf32>, vector<8x16xf32>, vector<8x8xf32> -> vector<8x8xf32>
      %cst_36 = arith.constant 2.500000e-01 : f32
      %63 = vector.broadcast %cst_36 : f32 to vector<8x8xf32>
      %64 = arith.mulf %62, %63 : vector<8x8xf32>
      %cst_37 = arith.constant dense<0xFF800000> : vector<8xf32>
      %65 = vector.multi_reduction <maximumf>, %64, %cst_37 [1] : vector<8x8xf32> to vector<8xf32>
      %66 = vector.shape_cast %65 : vector<8xf32> to vector<8x1xf32>
      %67 = vector.broadcast %66 : vector<8x1xf32> to vector<8x8xf32>
      %68 = arith.subf %64, %67 : vector<8x8xf32>
      %69 = math.exp %68 : vector<8x8xf32>
      %cst_38 = arith.constant dense<0.000000e+00> : vector<8xf32>
      %70 = vector.multi_reduction <add>, %69, %cst_38 [1] : vector<8x8xf32> to vector<8xf32>
      %71 = vector.shape_cast %70 : vector<8xf32> to vector<8x1xf32>
      %72 = tpu.reciprocal %71 {approx = true} : vector<8x1xf32> -> vector<8x1xf32>
      %73 = vector.broadcast %72 : vector<8x1xf32> to vector<8x8xf32>
      %74 = arith.mulf %69, %73 : vector<8x8xf32>
      %cst_39 = arith.constant dense<0.000000e+00> : vector<8x16xf32>
      %75 = tpu.matmul %74, %61, %cst_39 {dimension_numbers = #tpu.dot_dimension_numbers<[1], [0], [0], [1], [0, 0, 1, 1], [], []>} : vector<8x8xf32>, vector<8x16xf32>, vector<8x16xf32> -> vector<8x16xf32>
      %76 = vector.extract_strided_slice %41 {offsets = [0, 32], sizes = [8, 16], strides = [1, 1]} : vector<8x384xf32> to vector<8x16xf32>
      %77 = vector.extract_strided_slice %41 {offsets = [0, 160], sizes = [8, 16], strides = [1, 1]} : vector<8x384xf32> to vector<8x16xf32>
      %78 = vector.extract_strided_slice %41 {offsets = [0, 288], sizes = [8, 16], strides = [1, 1]} : vector<8x384xf32> to vector<8x16xf32>
      %cst_40 = arith.constant dense<0.000000e+00> : vector<8x8xf32>
      %79 = tpu.matmul %76, %77, %cst_40 {dimension_numbers = #tpu.dot_dimension_numbers<[1], [1], [0], [0], [0, 0, 1, 0], [], []>} : vector<8x16xf32>, vector<8x16xf32>, vector<8x8xf32> -> vector<8x8xf32>
      %cst_41 = arith.constant 2.500000e-01 : f32
      %80 = vector.broadcast %cst_41 : f32 to vector<8x8xf32>
      %81 = arith.mulf %79, %80 : vector<8x8xf32>
      %cst_42 = arith.constant dense<0xFF800000> : vector<8xf32>
      %82 = vector.multi_reduction <maximumf>, %81, %cst_42 [1] : vector<8x8xf32> to vector<8xf32>
      %83 = vector.shape_cast %82 : vector<8xf32> to vector<8x1xf32>
      %84 = vector.broadcast %83 : vector<8x1xf32> to vector<8x8xf32>
      %85 = arith.subf %81, %84 : vector<8x8xf32>
      %86 = math.exp %85 : vector<8x8xf32>
      %cst_43 = arith.constant dense<0.000000e+00> : vector<8xf32>
      %87 = vector.multi_reduction <add>, %86, %cst_43 [1] : vector<8x8xf32> to vector<8xf32>
      %88 = vector.shape_cast %87 : vector<8xf32> to vector<8x1xf32>
      %89 = tpu.reciprocal %88 {approx = true} : vector<8x1xf32> -> vector<8x1xf32>
      %90 = vector.broadcast %89 : vector<8x1xf32> to vector<8x8xf32>
      %91 = arith.mulf %86, %90 : vector<8x8xf32>
      %cst_44 = arith.constant dense<0.000000e+00> : vector<8x16xf32>
      %92 = tpu.matmul %91, %78, %cst_44 {dimension_numbers = #tpu.dot_dimension_numbers<[1], [0], [0], [1], [0, 0, 1, 1], [], []>} : vector<8x8xf32>, vector<8x16xf32>, vector<8x16xf32> -> vector<8x16xf32>
      %93 = vector.extract_strided_slice %41 {offsets = [0, 48], sizes = [8, 16], strides = [1, 1]} : vector<8x384xf32> to vector<8x16xf32>
      %94 = vector.extract_strided_slice %41 {offsets = [0, 176], sizes = [8, 16], strides = [1, 1]} : vector<8x384xf32> to vector<8x16xf32>
      %95 = vector.extract_strided_slice %41 {offsets = [0, 304], sizes = [8, 16], strides = [1, 1]} : vector<8x384xf32> to vector<8x16xf32>
      %cst_45 = arith.constant dense<0.000000e+00> : vector<8x8xf32>
      %96 = tpu.matmul %93, %94, %cst_45 {dimension_numbers = #tpu.dot_dimension_numbers<[1], [1], [0], [0], [0, 0, 1, 0], [], []>} : vector<8x16xf32>, vector<8x16xf32>, vector<8x8xf32> -> vector<8x8xf32>
      %cst_46 = arith.constant 2.500000e-01 : f32
      %97 = vector.broadcast %cst_46 : f32 to vector<8x8xf32>
      %98 = arith.mulf %96, %97 : vector<8x8xf32>
      %cst_47 = arith.constant dense<0xFF800000> : vector<8xf32>
      %99 = vector.multi_reduction <maximumf>, %98, %cst_47 [1] : vector<8x8xf32> to vector<8xf32>
      %100 = vector.shape_cast %99 : vector<8xf32> to vector<8x1xf32>
      %101 = vector.broadcast %100 : vector<8x1xf32> to vector<8x8xf32>
      %102 = arith.subf %98, %101 : vector<8x8xf32>
      %103 = math.exp %102 : vector<8x8xf32>
      %cst_48 = arith.constant dense<0.000000e+00> : vector<8xf32>
      %104 = vector.multi_reduction <add>, %103, %cst_48 [1] : vector<8x8xf32> to vector<8xf32>
      %105 = vector.shape_cast %104 : vector<8xf32> to vector<8x1xf32>
      %106 = tpu.reciprocal %105 {approx = true} : vector<8x1xf32> -> vector<8x1xf32>
      %107 = vector.broadcast %106 : vector<8x1xf32> to vector<8x8xf32>
      %108 = arith.mulf %103, %107 : vector<8x8xf32>
      %cst_49 = arith.constant dense<0.000000e+00> : vector<8x16xf32>
      %109 = tpu.matmul %108, %95, %cst_49 {dimension_numbers = #tpu.dot_dimension_numbers<[1], [0], [0], [1], [0, 0, 1, 1], [], []>} : vector<8x8xf32>, vector<8x16xf32>, vector<8x16xf32> -> vector<8x16xf32>
      %110 = vector.extract_strided_slice %41 {offsets = [0, 64], sizes = [8, 16], strides = [1, 1]} : vector<8x384xf32> to vector<8x16xf32>
      %111 = vector.extract_strided_slice %41 {offsets = [0, 192], sizes = [8, 16], strides = [1, 1]} : vector<8x384xf32> to vector<8x16xf32>
      %112 = vector.extract_strided_slice %41 {offsets = [0, 320], sizes = [8, 16], strides = [1, 1]} : vector<8x384xf32> to vector<8x16xf32>
      %cst_50 = arith.constant dense<0.000000e+00> : vector<8x8xf32>
      %113 = tpu.matmul %110, %111, %cst_50 {dimension_numbers = #tpu.dot_dimension_numbers<[1], [1], [0], [0], [0, 0, 1, 0], [], []>} : vector<8x16xf32>, vector<8x16xf32>, vector<8x8xf32> -> vector<8x8xf32>
      %cst_51 = arith.constant 2.500000e-01 : f32
      %114 = vector.broadcast %cst_51 : f32 to vector<8x8xf32>
      %115 = arith.mulf %113, %114 : vector<8x8xf32>
      %cst_52 = arith.constant dense<0xFF800000> : vector<8xf32>
      %116 = vector.multi_reduction <maximumf>, %115, %cst_52 [1] : vector<8x8xf32> to vector<8xf32>
      %117 = vector.shape_cast %116 : vector<8xf32> to vector<8x1xf32>
      %118 = vector.broadcast %117 : vector<8x1xf32> to vector<8x8xf32>
      %119 = arith.subf %115, %118 : vector<8x8xf32>
      %120 = math.exp %119 : vector<8x8xf32>
      %cst_53 = arith.constant dense<0.000000e+00> : vector<8xf32>
      %121 = vector.multi_reduction <add>, %120, %cst_53 [1] : vector<8x8xf32> to vector<8xf32>
      %122 = vector.shape_cast %121 : vector<8xf32> to vector<8x1xf32>
      %123 = tpu.reciprocal %122 {approx = true} : vector<8x1xf32> -> vector<8x1xf32>
      %124 = vector.broadcast %123 : vector<8x1xf32> to vector<8x8xf32>
      %125 = arith.mulf %120, %124 : vector<8x8xf32>
      %cst_54 = arith.constant dense<0.000000e+00> : vector<8x16xf32>
      %126 = tpu.matmul %125, %112, %cst_54 {dimension_numbers = #tpu.dot_dimension_numbers<[1], [0], [0], [1], [0, 0, 1, 1], [], []>} : vector<8x8xf32>, vector<8x16xf32>, vector<8x16xf32> -> vector<8x16xf32>
      %127 = vector.extract_strided_slice %41 {offsets = [0, 80], sizes = [8, 16], strides = [1, 1]} : vector<8x384xf32> to vector<8x16xf32>
      %128 = vector.extract_strided_slice %41 {offsets = [0, 208], sizes = [8, 16], strides = [1, 1]} : vector<8x384xf32> to vector<8x16xf32>
      %129 = vector.extract_strided_slice %41 {offsets = [0, 336], sizes = [8, 16], strides = [1, 1]} : vector<8x384xf32> to vector<8x16xf32>
      %cst_55 = arith.constant dense<0.000000e+00> : vector<8x8xf32>
      %130 = tpu.matmul %127, %128, %cst_55 {dimension_numbers = #tpu.dot_dimension_numbers<[1], [1], [0], [0], [0, 0, 1, 0], [], []>} : vector<8x16xf32>, vector<8x16xf32>, vector<8x8xf32> -> vector<8x8xf32>
      %cst_56 = arith.constant 2.500000e-01 : f32
      %131 = vector.broadcast %cst_56 : f32 to vector<8x8xf32>
      %132 = arith.mulf %130, %131 : vector<8x8xf32>
      %cst_57 = arith.constant dense<0xFF800000> : vector<8xf32>
      %133 = vector.multi_reduction <maximumf>, %132, %cst_57 [1] : vector<8x8xf32> to vector<8xf32>
      %134 = vector.shape_cast %133 : vector<8xf32> to vector<8x1xf32>
      %135 = vector.broadcast %134 : vector<8x1xf32> to vector<8x8xf32>
      %136 = arith.subf %132, %135 : vector<8x8xf32>
      %137 = math.exp %136 : vector<8x8xf32>
      %cst_58 = arith.constant dense<0.000000e+00> : vector<8xf32>
      %138 = vector.multi_reduction <add>, %137, %cst_58 [1] : vector<8x8xf32> to vector<8xf32>
      %139 = vector.shape_cast %138 : vector<8xf32> to vector<8x1xf32>
      %140 = tpu.reciprocal %139 {approx = true} : vector<8x1xf32> -> vector<8x1xf32>
      %141 = vector.broadcast %140 : vector<8x1xf32> to vector<8x8xf32>
      %142 = arith.mulf %137, %141 : vector<8x8xf32>
      %cst_59 = arith.constant dense<0.000000e+00> : vector<8x16xf32>
      %143 = tpu.matmul %142, %129, %cst_59 {dimension_numbers = #tpu.dot_dimension_numbers<[1], [0], [0], [1], [0, 0, 1, 1], [], []>} : vector<8x8xf32>, vector<8x16xf32>, vector<8x16xf32> -> vector<8x16xf32>
      %144 = vector.extract_strided_slice %41 {offsets = [0, 96], sizes = [8, 16], strides = [1, 1]} : vector<8x384xf32> to vector<8x16xf32>
      %145 = vector.extract_strided_slice %41 {offsets = [0, 224], sizes = [8, 16], strides = [1, 1]} : vector<8x384xf32> to vector<8x16xf32>
      %146 = vector.extract_strided_slice %41 {offsets = [0, 352], sizes = [8, 16], strides = [1, 1]} : vector<8x384xf32> to vector<8x16xf32>
      %cst_60 = arith.constant dense<0.000000e+00> : vector<8x8xf32>
      %147 = tpu.matmul %144, %145, %cst_60 {dimension_numbers = #tpu.dot_dimension_numbers<[1], [1], [0], [0], [0, 0, 1, 0], [], []>} : vector<8x16xf32>, vector<8x16xf32>, vector<8x8xf32> -> vector<8x8xf32>
      %cst_61 = arith.constant 2.500000e-01 : f32
      %148 = vector.broadcast %cst_61 : f32 to vector<8x8xf32>
      %149 = arith.mulf %147, %148 : vector<8x8xf32>
      %cst_62 = arith.constant dense<0xFF800000> : vector<8xf32>
      %150 = vector.multi_reduction <maximumf>, %149, %cst_62 [1] : vector<8x8xf32> to vector<8xf32>
      %151 = vector.shape_cast %150 : vector<8xf32> to vector<8x1xf32>
      %152 = vector.broadcast %151 : vector<8x1xf32> to vector<8x8xf32>
      %153 = arith.subf %149, %152 : vector<8x8xf32>
      %154 = math.exp %153 : vector<8x8xf32>
      %cst_63 = arith.constant dense<0.000000e+00> : vector<8xf32>
      %155 = vector.multi_reduction <add>, %154, %cst_63 [1] : vector<8x8xf32> to vector<8xf32>
      %156 = vector.shape_cast %155 : vector<8xf32> to vector<8x1xf32>
      %157 = tpu.reciprocal %156 {approx = true} : vector<8x1xf32> -> vector<8x1xf32>
      %158 = vector.broadcast %157 : vector<8x1xf32> to vector<8x8xf32>
      %159 = arith.mulf %154, %158 : vector<8x8xf32>
      %cst_64 = arith.constant dense<0.000000e+00> : vector<8x16xf32>
      %160 = tpu.matmul %159, %146, %cst_64 {dimension_numbers = #tpu.dot_dimension_numbers<[1], [0], [0], [1], [0, 0, 1, 1], [], []>} : vector<8x8xf32>, vector<8x16xf32>, vector<8x16xf32> -> vector<8x16xf32>
      %161 = vector.extract_strided_slice %41 {offsets = [0, 112], sizes = [8, 16], strides = [1, 1]} : vector<8x384xf32> to vector<8x16xf32>
      %162 = vector.extract_strided_slice %41 {offsets = [0, 240], sizes = [8, 16], strides = [1, 1]} : vector<8x384xf32> to vector<8x16xf32>
      %163 = vector.extract_strided_slice %41 {offsets = [0, 368], sizes = [8, 16], strides = [1, 1]} : vector<8x384xf32> to vector<8x16xf32>
      %cst_65 = arith.constant dense<0.000000e+00> : vector<8x8xf32>
      %164 = tpu.matmul %161, %162, %cst_65 {dimension_numbers = #tpu.dot_dimension_numbers<[1], [1], [0], [0], [0, 0, 1, 0], [], []>} : vector<8x16xf32>, vector<8x16xf32>, vector<8x8xf32> -> vector<8x8xf32>
      %cst_66 = arith.constant 2.500000e-01 : f32
      %165 = vector.broadcast %cst_66 : f32 to vector<8x8xf32>
      %166 = arith.mulf %164, %165 : vector<8x8xf32>
      %cst_67 = arith.constant dense<0xFF800000> : vector<8xf32>
      %167 = vector.multi_reduction <maximumf>, %166, %cst_67 [1] : vector<8x8xf32> to vector<8xf32>
      %168 = vector.shape_cast %167 : vector<8xf32> to vector<8x1xf32>
      %169 = vector.broadcast %168 : vector<8x1xf32> to vector<8x8xf32>
      %170 = arith.subf %166, %169 : vector<8x8xf32>
      %171 = math.exp %170 : vector<8x8xf32>
      %cst_68 = arith.constant dense<0.000000e+00> : vector<8xf32>
      %172 = vector.multi_reduction <add>, %171, %cst_68 [1] : vector<8x8xf32> to vector<8xf32>
      %173 = vector.shape_cast %172 : vector<8xf32> to vector<8x1xf32>
      %174 = tpu.reciprocal %173 {approx = true} : vector<8x1xf32> -> vector<8x1xf32>
      %175 = vector.broadcast %174 : vector<8x1xf32> to vector<8x8xf32>
      %176 = arith.mulf %171, %175 : vector<8x8xf32>
      %cst_69 = arith.constant dense<0.000000e+00> : vector<8x16xf32>
      %177 = tpu.matmul %176, %163, %cst_69 {dimension_numbers = #tpu.dot_dimension_numbers<[1], [0], [0], [1], [0, 0, 1, 1], [], []>} : vector<8x8xf32>, vector<8x16xf32>, vector<8x16xf32> -> vector<8x16xf32>
      %178 = tpu.concatenate %58, %75, %92, %109, %126, %143, %160, %177 in 1 : vector<8x16xf32>, vector<8x16xf32>, vector<8x16xf32>, vector<8x16xf32>, vector<8x16xf32>, vector<8x16xf32>, vector<8x16xf32>, vector<8x16xf32> -> vector<8x128xf32>
      %179 = arith.index_cast %arg23 : i32 to index
      %c0_70 = arith.constant 0 : index
      %c0_71 = arith.constant 0 : index
      %180 = vector.load %arg6[%179, %c0_70, %c0_71] : memref<4x128x128xbf16, #tpu.memory_space<vmem>>, vector<1x128x128xbf16>
      %181 = vector.shape_cast %180 : vector<1x128x128xbf16> to vector<128x128xbf16>
      %182 = arith.truncf %178 : vector<8x128xf32> to vector<8x128xbf16>
      %cst_72 = arith.constant dense<0.000000e+00> : vector<8x128xf32>
      %183 = tpu.matmul %182, %181, %cst_72 {dimension_numbers = #tpu.dot_dimension_numbers<[1], [0], [0], [1], [0, 0, 1, 1], [], []>} : vector<8x128xbf16>, vector<128x128xbf16>, vector<8x128xf32> -> vector<8x128xf32>
      %184 = arith.index_cast %arg23 : i32 to index
      %c0_73 = arith.constant 0 : index
      %c0_74 = arith.constant 0 : index
      %185 = vector.load %arg7[%184, %c0_73, %c0_74] : memref<4x1x128xf32, #tpu.memory_space<vmem>>, vector<1x1x128xf32>
      %186 = vector.shape_cast %185 : vector<1x1x128xf32> to vector<1x128xf32>
      %187 = vector.broadcast %186 : vector<1x128xf32> to vector<8x128xf32>
      %188 = arith.addf %183, %187 : vector<8x128xf32>
      %189 = arith.addf %arg24, %188 : vector<8x128xf32>
      %190 = arith.index_cast %arg23 : i32 to index
      %c0_75 = arith.constant 0 : index
      %c0_76 = arith.constant 0 : index
      %191 = vector.load %arg8[%190, %c0_75, %c0_76] : memref<4x1x128xf32, #tpu.memory_space<vmem>>, vector<1x1x128xf32>
      %192 = vector.shape_cast %191 : vector<1x1x128xf32> to vector<1x128xf32>
      %193 = arith.index_cast %arg23 : i32 to index
      %c0_77 = arith.constant 0 : index
      %c0_78 = arith.constant 0 : index
      %194 = vector.load %arg9[%193, %c0_77, %c0_78] : memref<4x1x128xf32, #tpu.memory_space<vmem>>, vector<1x1x128xf32>
      %195 = vector.shape_cast %194 : vector<1x1x128xf32> to vector<1x128xf32>
      %cst_79 = arith.constant dense<0.000000e+00> : vector<8xf32>
      %196 = vector.multi_reduction <add>, %189, %cst_79 [1] : vector<8x128xf32> to vector<8xf32>
      %197 = vector.shape_cast %196 : vector<8xf32> to vector<8x1xf32>
      %cst_80 = arith.constant 1.280000e+02 : f32
      %198 = vector.broadcast %cst_80 : f32 to vector<8x1xf32>
      %199 = arith.divf %197, %198 : vector<8x1xf32>
      %200 = vector.broadcast %199 : vector<8x1xf32> to vector<8x128xf32>
      %201 = arith.subf %189, %200 : vector<8x128xf32>
      %202 = arith.mulf %201, %201 : vector<8x128xf32>
      %cst_81 = arith.constant dense<0.000000e+00> : vector<8xf32>
      %203 = vector.multi_reduction <add>, %202, %cst_81 [1] : vector<8x128xf32> to vector<8xf32>
      %204 = vector.shape_cast %203 : vector<8xf32> to vector<8x1xf32>
      %cst_82 = arith.constant 1.280000e+02 : f32
      %205 = vector.broadcast %cst_82 : f32 to vector<8x1xf32>
      %206 = arith.divf %204, %205 : vector<8x1xf32>
      %cst_83 = arith.constant 9.99999974E-6 : f32
      %207 = vector.broadcast %cst_83 : f32 to vector<8x1xf32>
      %208 = arith.addf %206, %207 : vector<8x1xf32>
      %209 = math.rsqrt %208 : vector<8x1xf32>
      %210 = vector.broadcast %209 : vector<8x1xf32> to vector<8x128xf32>
      %211 = arith.mulf %201, %210 : vector<8x128xf32>
      %212 = vector.broadcast %192 : vector<1x128xf32> to vector<8x128xf32>
      %213 = arith.mulf %211, %212 : vector<8x128xf32>
      %214 = vector.broadcast %195 : vector<1x128xf32> to vector<8x128xf32>
      %215 = arith.addf %213, %214 : vector<8x128xf32>
      %216 = arith.index_cast %arg23 : i32 to index
      %c0_84 = arith.constant 0 : index
      %c0_85 = arith.constant 0 : index
      %217 = vector.load %arg10[%216, %c0_84, %c0_85] : memref<4x128x256xbf16, #tpu.memory_space<vmem>>, vector<1x128x256xbf16>
      %218 = vector.shape_cast %217 : vector<1x128x256xbf16> to vector<128x256xbf16>
      %219 = arith.truncf %215 : vector<8x128xf32> to vector<8x128xbf16>
      %cst_86 = arith.constant dense<0.000000e+00> : vector<8x256xf32>
      %220 = tpu.matmul %219, %218, %cst_86 {dimension_numbers = #tpu.dot_dimension_numbers<[1], [0], [0], [1], [0, 0, 1, 1], [], []>} : vector<8x128xbf16>, vector<128x256xbf16>, vector<8x256xf32> -> vector<8x256xf32>
      %221 = arith.index_cast %arg23 : i32 to index
      %c0_87 = arith.constant 0 : index
      %c0_88 = arith.constant 0 : index
      %222 = vector.load %arg11[%221, %c0_87, %c0_88] : memref<4x1x256xf32, #tpu.memory_space<vmem>>, vector<1x1x256xf32>
      %223 = vector.shape_cast %222 : vector<1x1x256xf32> to vector<1x256xf32>
      %224 = vector.broadcast %223 : vector<1x256xf32> to vector<8x256xf32>
      %225 = arith.addf %220, %224 : vector<8x256xf32>
      %cst_89 = arith.constant 0.000000e+00 : f32
      %226 = vector.broadcast %cst_89 : f32 to vector<8x256xf32>
      %227 = arith.maximumf %225, %226 : vector<8x256xf32>
      %228 = arith.index_cast %arg23 : i32 to index
      %c0_90 = arith.constant 0 : index
      %c0_91 = arith.constant 0 : index
      %229 = vector.load %arg12[%228, %c0_90, %c0_91] : memref<4x256x128xbf16, #tpu.memory_space<vmem>>, vector<1x256x128xbf16>
      %230 = vector.shape_cast %229 : vector<1x256x128xbf16> to vector<256x128xbf16>
      %231 = arith.truncf %227 : vector<8x256xf32> to vector<8x256xbf16>
      %cst_92 = arith.constant dense<0.000000e+00> : vector<8x128xf32>
      %232 = tpu.matmul %231, %230, %cst_92 {dimension_numbers = #tpu.dot_dimension_numbers<[1], [0], [0], [1], [0, 0, 1, 1], [], []>} : vector<8x256xbf16>, vector<256x128xbf16>, vector<8x128xf32> -> vector<8x128xf32>
      %233 = arith.index_cast %arg23 : i32 to index
      %c0_93 = arith.constant 0 : index
      %c0_94 = arith.constant 0 : index
      %234 = vector.load %arg13[%233, %c0_93, %c0_94] : memref<4x1x128xf32, #tpu.memory_space<vmem>>, vector<1x1x128xf32>
      %235 = vector.shape_cast %234 : vector<1x1x128xf32> to vector<1x128xf32>
      %236 = vector.broadcast %235 : vector<1x128xf32> to vector<8x128xf32>
      %237 = arith.addf %232, %236 : vector<8x128xf32>
      %238 = arith.addf %215, %237 : vector<8x128xf32>
      %239 = arith.index_cast %arg23 : i32 to index
      %c0_95 = arith.constant 0 : index
      %c0_96 = arith.constant 0 : index
      %240 = vector.load %arg14[%239, %c0_95, %c0_96] : memref<4x1x128xf32, #tpu.memory_space<vmem>>, vector<1x1x128xf32>
      %241 = vector.shape_cast %240 : vector<1x1x128xf32> to vector<1x128xf32>
      %242 = arith.index_cast %arg23 : i32 to index
      %c0_97 = arith.constant 0 : index
      %c0_98 = arith.constant 0 : index
      %243 = vector.load %arg15[%242, %c0_97, %c0_98] : memref<4x1x128xf32, #tpu.memory_space<vmem>>, vector<1x1x128xf32>
      %244 = vector.shape_cast %243 : vector<1x1x128xf32> to vector<1x128xf32>
      %cst_99 = arith.constant dense<0.000000e+00> : vector<8xf32>
      %245 = vector.multi_reduction <add>, %238, %cst_99 [1] : vector<8x128xf32> to vector<8xf32>
      %246 = vector.shape_cast %245 : vector<8xf32> to vector<8x1xf32>
      %cst_100 = arith.constant 1.280000e+02 : f32
      %247 = vector.broadcast %cst_100 : f32 to vector<8x1xf32>
      %248 = arith.divf %246, %247 : vector<8x1xf32>
      %249 = vector.broadcast %248 : vector<8x1xf32> to vector<8x128xf32>
      %250 = arith.subf %238, %249 : vector<8x128xf32>
      %251 = arith.mulf %250, %250 : vector<8x128xf32>
      %cst_101 = arith.constant dense<0.000000e+00> : vector<8xf32>
      %252 = vector.multi_reduction <add>, %251, %cst_101 [1] : vector<8x128xf32> to vector<8xf32>
      %253 = vector.shape_cast %252 : vector<8xf32> to vector<8x1xf32>
      %cst_102 = arith.constant 1.280000e+02 : f32
      %254 = vector.broadcast %cst_102 : f32 to vector<8x1xf32>
      %255 = arith.divf %253, %254 : vector<8x1xf32>
      %cst_103 = arith.constant 9.99999974E-6 : f32
      %256 = vector.broadcast %cst_103 : f32 to vector<8x1xf32>
      %257 = arith.addf %255, %256 : vector<8x1xf32>
      %258 = math.rsqrt %257 : vector<8x1xf32>
      %259 = vector.broadcast %258 : vector<8x1xf32> to vector<8x128xf32>
      %260 = arith.mulf %250, %259 : vector<8x128xf32>
      %261 = vector.broadcast %241 : vector<1x128xf32> to vector<8x128xf32>
      %262 = arith.mulf %260, %261 : vector<8x128xf32>
      %263 = vector.broadcast %244 : vector<1x128xf32> to vector<8x128xf32>
      %264 = arith.addf %262, %263 : vector<8x128xf32>
      scf.yield %264 : vector<8x128xf32>
    }
    %c4_i32_5 = arith.constant 4 : i32
    %c0_6 = arith.constant 0 : index
    %c0_7 = arith.constant 0 : index
    %9 = vector.load %arg16[%c0_6, %c0_7] : memref<128x256xbf16, #tpu.memory_space<vmem>>, vector<128x256xbf16>
    %10 = arith.truncf %8 : vector<8x128xf32> to vector<8x128xbf16>
    %cst_8 = arith.constant dense<0.000000e+00> : vector<8x256xf32>
    %11 = tpu.matmul %10, %9, %cst_8 {dimension_numbers = #tpu.dot_dimension_numbers<[1], [0], [0], [1], [0, 0, 1, 1], [], []>} : vector<8x128xbf16>, vector<128x256xbf16>, vector<8x256xf32> -> vector<8x256xf32>
    %c0_9 = arith.constant 0 : index
    %c0_10 = arith.constant 0 : index
    %12 = vector.load %arg17[%c0_9, %c0_10] : memref<1x256xf32, #tpu.memory_space<vmem>>, vector<1x256xf32>
    %13 = vector.broadcast %12 : vector<1x256xf32> to vector<8x256xf32>
    %14 = arith.addf %11, %13 : vector<8x256xf32>
    %cst_11 = arith.constant 0.000000e+00 : f32
    %15 = vector.broadcast %cst_11 : f32 to vector<8x256xf32>
    %16 = arith.maximumf %14, %15 : vector<8x256xf32>
    %c0_12 = arith.constant 0 : index
    %c0_13 = arith.constant 0 : index
    %17 = vector.load %arg18[%c0_12, %c0_13] : memref<256x512xbf16, #tpu.memory_space<vmem>>, vector<256x512xbf16>
    %18 = arith.truncf %16 : vector<8x256xf32> to vector<8x256xbf16>
    %cst_14 = arith.constant dense<0.000000e+00> : vector<8x512xf32>
    %19 = tpu.matmul %18, %17, %cst_14 {dimension_numbers = #tpu.dot_dimension_numbers<[1], [0], [0], [1], [0, 0, 1, 1], [], []>} : vector<8x256xbf16>, vector<256x512xbf16>, vector<8x512xf32> -> vector<8x512xf32>
    %c0_15 = arith.constant 0 : index
    %c0_16 = arith.constant 0 : index
    %20 = vector.load %arg19[%c0_15, %c0_16] : memref<1x512xf32, #tpu.memory_space<vmem>>, vector<1x512xf32>
    %21 = vector.broadcast %20 : vector<1x512xf32> to vector<8x512xf32>
    %22 = arith.addf %19, %21 : vector<8x512xf32>
    %cst_17 = arith.constant 0.000000e+00 : f32
    %23 = vector.broadcast %cst_17 : f32 to vector<8x512xf32>
    %24 = arith.maximumf %22, %23 : vector<8x512xf32>
    %c0_18 = arith.constant 0 : index
    %c0_19 = arith.constant 0 : index
    %25 = vector.load %arg20[%c0_18, %c0_19] : memref<512x128xbf16, #tpu.memory_space<vmem>>, vector<512x128xbf16>
    %26 = arith.truncf %24 : vector<8x512xf32> to vector<8x512xbf16>
    %cst_20 = arith.constant dense<0.000000e+00> : vector<8x128xf32>
    %27 = tpu.matmul %26, %25, %cst_20 {dimension_numbers = #tpu.dot_dimension_numbers<[1], [0], [0], [1], [0, 0, 1, 1], [], []>} : vector<8x512xbf16>, vector<512x128xbf16>, vector<8x128xf32> -> vector<8x128xf32>
    %c0_21 = arith.constant 0 : index
    %c0_22 = arith.constant 0 : index
    %28 = vector.load %arg21[%c0_21, %c0_22] : memref<1x128xf32, #tpu.memory_space<vmem>>, vector<1x128xf32>
    %29 = vector.broadcast %28 : vector<1x128xf32> to vector<8x128xf32>
    %30 = arith.addf %27, %29 : vector<8x128xf32>
    %c0_23 = arith.constant 0 : index
    %c0_24 = arith.constant 0 : index
    %31 = vector.load %arg22[%c0_23, %c0_24] : memref<8x128xf32, #tpu.memory_space<vmem>>, vector<8x128xf32>
    tpu.vector_store %arg22[%c0_23, %c0_24], %30 {strides = array<i32>} : memref<8x128xf32, #tpu.memory_space<vmem>>, vector<8x128xf32>,
    return
  }
  func.func @transform_0(%arg0: i32) -> (i32, i32) {
    %c0_i32 = arith.constant 0 : i32
    %c0_i32_0 = arith.constant 0 : i32
    %c0_i32_1 = arith.constant 0 : i32
    return %c0_i32, %c0_i32_0 : i32, i32
  }
  func.func @transform_1(%arg0: i32) -> (i32, i32) {
    %c0_i32 = arith.constant 0 : i32
    %c0_i32_0 = arith.constant 0 : i32
    %c0_i32_1 = arith.constant 0 : i32
    return %c0_i32, %c0_i32_0 : i32, i32
  }
  func.func @transform_2(%arg0: i32) -> (i32, i32) {
    %c0_i32 = arith.constant 0 : i32
    %c0_i32_0 = arith.constant 0 : i32
    %c0_i32_1 = arith.constant 0 : i32
    return %c0_i32, %c0_i32_0 : i32, i32
  }
  func.func @transform_3(%arg0: i32) -> (i32, i32, i32) {
    %c0_i32 = arith.constant 0 : i32
    %c0_i32_0 = arith.constant 0 : i32
    %c0_i32_1 = arith.constant 0 : i32
    %c0_i32_2 = arith.constant 0 : i32
    return %c0_i32, %c0_i32_0, %c0_i32_1 : i32, i32, i32
  }
  func.func @transform_4(%arg0: i32) -> (i32, i32, i32) {
    %c0_i32 = arith.constant 0 : i32
    %c0_i32_0 = arith.constant 0 : i32
    %c0_i32_1 = arith.constant 0 : i32
    %c0_i32_2 = arith.constant 0 : i32
    return %c0_i32, %c0_i32_0, %c0_i32_1 : i32, i32, i32
  }
  func.func @transform_5(%arg0: i32) -> (i32, i32, i32) {
    %c0_i32 = arith.constant 0 : i32
    %c0_i32_0 = arith.constant 0 : i32
    %c0_i32_1 = arith.constant 0 : i32
    %c0_i32_2 = arith.constant 0 : i32
    return %c0_i32, %c0_i32_0, %c0_i32_1 : i32, i32, i32
  }
  func.func @transform_6(%arg0: i32) -> (i32, i32, i32) {
    %c0_i32 = arith.constant 0 : i32
    %c0_i32_0 = arith.constant 0 : i32
    %c0_i32_1 = arith.constant 0 : i32
    %c0_i32_2 = arith.constant 0 : i32
    return %c0_i32, %c0_i32_0, %c0_i32_1 : i32, i32, i32
  }
  func.func @transform_7(%arg0: i32) -> (i32, i32, i32) {
    %c0_i32 = arith.constant 0 : i32
    %c0_i32_0 = arith.constant 0 : i32
    %c0_i32_1 = arith.constant 0 : i32
    %c0_i32_2 = arith.constant 0 : i32
    return %c0_i32, %c0_i32_0, %c0_i32_1 : i32, i32, i32
  }
  func.func @transform_8(%arg0: i32) -> (i32, i32, i32) {
    %c0_i32 = arith.constant 0 : i32
    %c0_i32_0 = arith.constant 0 : i32
    %c0_i32_1 = arith.constant 0 : i32
    %c0_i32_2 = arith.constant 0 : i32
    return %c0_i32, %c0_i32_0, %c0_i32_1 : i32, i32, i32
  }
  func.func @transform_9(%arg0: i32) -> (i32, i32, i32) {
    %c0_i32 = arith.constant 0 : i32
    %c0_i32_0 = arith.constant 0 : i32
    %c0_i32_1 = arith.constant 0 : i32
    %c0_i32_2 = arith.constant 0 : i32
    return %c0_i32, %c0_i32_0, %c0_i32_1 : i32, i32, i32
  }
  func.func @transform_10(%arg0: i32) -> (i32, i32, i32) {
    %c0_i32 = arith.constant 0 : i32
    %c0_i32_0 = arith.constant 0 : i32
    %c0_i32_1 = arith.constant 0 : i32
    %c0_i32_2 = arith.constant 0 : i32
    return %c0_i32, %c0_i32_0, %c0_i32_1 : i32, i32, i32
  }
  func.func @transform_11(%arg0: i32) -> (i32, i32, i32) {
    %c0_i32 = arith.constant 0 : i32
    %c0_i32_0 = arith.constant 0 : i32
    %c0_i32_1 = arith.constant 0 : i32
    %c0_i32_2 = arith.constant 0 : i32
    return %c0_i32, %c0_i32_0, %c0_i32_1 : i32, i32, i32
  }
  func.func @transform_12(%arg0: i32) -> (i32, i32, i32) {
    %c0_i32 = arith.constant 0 : i32
    %c0_i32_0 = arith.constant 0 : i32
    %c0_i32_1 = arith.constant 0 : i32
    %c0_i32_2 = arith.constant 0 : i32
    return %c0_i32, %c0_i32_0, %c0_i32_1 : i32, i32, i32
  }
  func.func @transform_13(%arg0: i32) -> (i32, i32, i32) {
    %c0_i32 = arith.constant 0 : i32
    %c0_i32_0 = arith.constant 0 : i32
    %c0_i32_1 = arith.constant 0 : i32
    %c0_i32_2 = arith.constant 0 : i32
    return %c0_i32, %c0_i32_0, %c0_i32_1 : i32, i32, i32
  }
  func.func @transform_14(%arg0: i32) -> (i32, i32, i32) {
    %c0_i32 = arith.constant 0 : i32
    %c0_i32_0 = arith.constant 0 : i32
    %c0_i32_1 = arith.constant 0 : i32
    %c0_i32_2 = arith.constant 0 : i32
    return %c0_i32, %c0_i32_0, %c0_i32_1 : i32, i32, i32
  }
  func.func @transform_15(%arg0: i32) -> (i32, i32) {
    %c0_i32 = arith.constant 0 : i32
    %c0_i32_0 = arith.constant 0 : i32
    %c0_i32_1 = arith.constant 0 : i32
    return %c0_i32, %c0_i32_0 : i32, i32
  }
  func.func @transform_16(%arg0: i32) -> (i32, i32) {
    %c0_i32 = arith.constant 0 : i32
    %c0_i32_0 = arith.constant 0 : i32
    %c0_i32_1 = arith.constant 0 : i32
    return %c0_i32, %c0_i32_0 : i32, i32
  }
  func.func @transform_17(%arg0: i32) -> (i32, i32) {
    %c0_i32 = arith.constant 0 : i32
    %c0_i32_0 = arith.constant 0 : i32
    %c0_i32_1 = arith.constant 0 : i32
    return %c0_i32, %c0_i32_0 : i32, i32
  }
  func.func @transform_18(%arg0: i32) -> (i32, i32) {
    %c0_i32 = arith.constant 0 : i32
    %c0_i32_0 = arith.constant 0 : i32
    %c0_i32_1 = arith.constant 0 : i32
    return %c0_i32, %c0_i32_0 : i32, i32
  }
  func.func @transform_19(%arg0: i32) -> (i32, i32) {
    %c0_i32 = arith.constant 0 : i32
    %c0_i32_0 = arith.constant 0 : i32
    %c0_i32_1 = arith.constant 0 : i32
    return %c0_i32, %c0_i32_0 : i32, i32
  }
  func.func @transform_20(%arg0: i32) -> (i32, i32) {
    %c0_i32 = arith.constant 0 : i32
    %c0_i32_0 = arith.constant 0 : i32
    %c0_i32_1 = arith.constant 0 : i32
    return %c0_i32, %c0_i32_0 : i32, i32
  }
  func.func @transform_21(%arg0: i32) -> (i32, i32) {
    %c0_i32 = arith.constant 0 : i32
    %c0_i32_0 = arith.constant 0 : i32
    %c0_i32_1 = arith.constant 0 : i32
    return %c0_i32, %c0_i32_0 : i32, i32
  }
}

</mosaic_0001>

<llo_original>
// kernel: pallas_forward.1
$region0: #{pallas_forward.1}
  #allocation0 [shape = 'u32[]', space=smem, size = 0x4, offset = 0x4, fixed_abs, tag = 'smem constant byte address 0x4 - core index']
  #allocation1 [shape = 'u32[144,128]{1,0:T(1,128)}', space=vmem, size = 0x12000, scoped, tag = 'internal scratch']
  %s0 = inlined_call_operand.vmem [shape: f32[8,128], index: 0, kind: input, shape index: {}]
  %s1 = inlined_call_operand.vmem [shape: bf16[128,128], index: 1, kind: input, shape index: {}]
  %s2 = inlined_call_operand.hbm [shape: f32[1,128], index: 2, kind: input, shape index: {}]
  %s3 = inlined_call_operand.hbm [shape: bf16[4,128,384], index: 3, kind: input, shape index: {}]
  %s4 = inlined_call_operand.hbm [shape: f32[4,1,384], index: 4, kind: input, shape index: {}]
  %s5 = inlined_call_operand.hbm [shape: bf16[4,128,128], index: 5, kind: input, shape index: {}]
  %s6 = inlined_call_operand.hbm [shape: f32[4,1,128], index: 6, kind: input, shape index: {}]
  %s7 = inlined_call_operand.vmem [shape: f32[4,1,128], index: 7, kind: input, shape index: {}]
  %s8 = inlined_call_operand.vmem [shape: f32[4,1,128], index: 8, kind: input, shape index: {}]
  %s9 = inlined_call_operand.hbm [shape: bf16[4,128,256], index: 9, kind: input, shape index: {}]
  %s10 = inlined_call_operand.hbm [shape: f32[4,1,256], index: 10, kind: input, shape index: {}]
  %s11 = inlined_call_operand.hbm [shape: bf16[4,256,128], index: 11, kind: input, shape index: {}]
  %s12 = inlined_call_operand.hbm [shape: f32[4,1,128], index: 12, kind: input, shape index: {}]
  %s13 = inlined_call_operand.vmem [shape: f32[4,1,128], index: 13, kind: input, shape index: {}]
  %s14 = inlined_call_operand.vmem [shape: f32[4,1,128], index: 14, kind: input, shape index: {}]
  %s15 = inlined_call_operand.hbm [shape: bf16[128,256], index: 15, kind: input, shape index: {}]
  %s16 = inlined_call_operand.vmem [shape: f32[1,256], index: 16, kind: input, shape index: {}]
  %s17 = inlined_call_operand.hbm [shape: bf16[256,512], index: 17, kind: input, shape index: {}]
  %s18 = inlined_call_operand.hbm [shape: f32[1,512], index: 18, kind: input, shape index: {}]
  %s19 = inlined_call_operand.hbm [shape: bf16[512,128], index: 19, kind: input, shape index: {}]
  %s20 = inlined_call_operand.hbm [shape: f32[1,128], index: 20, kind: input, shape index: {}]
  %s21 = inlined_call_operand.vmem [shape: f32[8,128], index: 21, kind: output, shape index: {}]
  %s22 = sld [smem:[#allocation0]]
  $region157: #{pallas_forward.1} parent=0
    _
  %s24 = ssub.s32 1, %s22
  %s25 = scalar_select 0, %s24, %s22
  $region1: #{pallas_forward.1} parent=0
    #allocation2 [shape = 'u8[512]{0}', space=vmem, size = 0x400, scoped, tag = 'input window, operand 2, single buffered']
    #allocation3 [shape = 's32[1]{0}', space=sflag, size = 0x4, scoped, tag = 'scoped memory for pallas_forward.1']
    #allocation4 [shape = 'u8[393216]{0}', space=vmem, size = 0x60000, scoped, tag = 'input window, operand 3, single buffered']
    #allocation5 [shape = 's32[1]{0}', space=sflag, size = 0x4, scoped, tag = 'scoped memory for pallas_forward.1']
    #allocation6 [shape = 'u8[6144]{0}', space=vmem, size = 0x1800, scoped, tag = 'input window, operand 4, single buffered']
    #allocation7 [shape = 'u8[131072]{0}', space=vmem, size = 0x20000, scoped, tag = 'input window, operand 5, single buffered']
    #allocation8 [shape = 's32[1]{0}', space=sflag, size = 0x4, scoped, tag = 'scoped memory for pallas_forward.1']
    #allocation9 [shape = 'u8[2048]{0}', space=vmem, size = 0x800, scoped, tag = 'input window, operand 6, single buffered']
    #allocation10 [shape = 'u8[262144]{0}', space=vmem, size = 0x40000, scoped, tag = 'input window, operand 9, single buffered']
    #allocation11 [shape = 's32[1]{0}', space=sflag, size = 0x4, scoped, tag = 'scoped memory for pallas_forward.1']
    #allocation12 [shape = 'u8[4096]{0}', space=vmem, size = 0x1000, scoped, tag = 'input window, operand 10, single buffered']
    #allocation13 [shape = 'u8[262144]{0}', space=vmem, size = 0x40000, scoped, tag = 'input window, operand 11, single buffered']
    #allocation14 [shape = 's32[1]{0}', space=sflag, size = 0x4, scoped, tag = 'scoped memory for pallas_forward.1']
    #allocation15 [shape = 'u8[2048]{0}', space=vmem, size = 0x800, scoped, tag = 'input window, operand 12, single buffered']
    #allocation16 [shape = 'u8[65536]{0}', space=vmem, size = 0x10000, scoped, tag = 'input window, operand 15, single buffered']
    #allocation17 [shape = 's32[1]{0}', space=sflag, size = 0x4, scoped, tag = 'scoped memory for pallas_forward.1']
    #allocation18 [shape = 'u8[262144]{0}', space=vmem, size = 0x40000, scoped, tag = 'input window, operand 17, single buffered']
    #allocation19 [shape = 'u8[2048]{0}', space=vmem, size = 0x800, scoped, tag = 'input window, operand 18, single buffered']
    #allocation20 [shape = 's32[1]{0}', space=sflag, size = 0x4, scoped, tag = 'scoped memory for pallas_forward.1']
    #allocation21 [shape = 'u8[131072]{0}', space=vmem, size = 0x20000, scoped, tag = 'input window, operand 19, single buffered']
    #allocation22 [shape = 'u8[512]{0}', space=vmem, size = 0x400, scoped, tag = 'input window, operand 20, single buffered']
    #allocation23 [shape = 's32[1]{0}', space=sflag, size = 0x4, scoped, tag = 'scoped memory for pallas_forward.1']
    %26 = vsyncpa [#allocation3], 0
    %27 = vsyncpa [#allocation5], 0
    %28 = vsyncpa [#allocation8], 0
    %29 = vsyncpa [#allocation11], 0
    %30 = vsyncpa [#allocation14], 0
    %31 = vsyncpa [#allocation17], 0
    %32 = vsyncpa [#allocation20], 0
    %33 = vsyncpa [#allocation23], 0
    // Predicated region
    $region2: #{pallas_forward.1} parent=1 // pred_check
      _
    $region3: #{pallas_forward.1} parent=1 // pred_check_branch
      %35 = sbr.rel (0) target = $region5
    $region4: #{pallas_forward.1} parent=1 // pred_region
      _
    $region5: #{pallas_forward.1} parent=1 // pred_fallthru
      _
    // Predicated region
    $region6: #{pallas_forward.1} parent=1 // pred_check
      _
    $region7: #{pallas_forward.1} parent=1 // pred_check_branch
      %37 = sbr.rel (0) target = $region9
    $region8: #{pallas_forward.1} parent=1 // pred_region
      _
    $region9: #{pallas_forward.1} parent=1 // pred_fallthru
      _
    // Predicated region
    $region10: #{pallas_forward.1} parent=1 // pred_check
      _
    $region11: #{pallas_forward.1} parent=1 // pred_check_branch
      %39 = sbr.rel (0) target = $region13
    $region12: #{pallas_forward.1} parent=1 // pred_region
      %s41 = ssub.s32 16, 16
      %42 = vsyncadd [#allocation3], %s41
      %s44 = sshll.u32 [#allocation2], 4
      %s45 = int_to_ptr.vmem [resolvable:$true] %s44
      %47 = dma.hbm_to_vmem [thread:$0]  %s2, 16, %s45, [#allocation3]
    $region13: #{pallas_forward.1} parent=1 // pred_fallthru
      _
    // Predicated region
    $region14: #{pallas_forward.1} parent=1 // pred_check
      _
    $region15: #{pallas_forward.1} parent=1 // pred_check_branch
      %49 = sbr.rel (0) target = $region17
    $region16: #{pallas_forward.1} parent=1 // pred_region
      %s51 = ssub.s32 12288, 12288
      %52 = vsyncadd [#allocation5], %s51
      %s53 = sshll.u32 [#allocation4], 4
      %s54 = int_to_ptr.vmem [resolvable:$true] %s53
      %59 = dma.hbm_to_vmem [thread:$0]  %s3, 12288, %s54, [#allocation5], 192, 192, 12
    $region17: #{pallas_forward.1} parent=1 // pred_fallthru
      _
    // Predicated region
    $region18: #{pallas_forward.1} parent=1 // pred_check
      _
    $region19: #{pallas_forward.1} parent=1 // pred_check_branch
      %61 = sbr.rel (0) target = $region21
    $region20: #{pallas_forward.1} parent=1 // pred_region
      %s63 = ssub.s32 192, 192
      %64 = vsyncadd [#allocation5], %s63
      %s65 = sshll.u32 [#allocation6], 4
      %s66 = int_to_ptr.vmem [resolvable:$true] %s65
      %71 = dma.hbm_to_vmem [thread:$0]  %s4, 192, %s66, [#allocation5], 48, 48, 3
    $region21: #{pallas_forward.1} parent=1 // pred_fallthru
      _
    // Predicated region
    $region22: #{pallas_forward.1} parent=1 // pred_check
      _
    $region23: #{pallas_forward.1} parent=1 // pred_check_branch
      %73 = sbr.rel (0) target = $region25
    $region24: #{pallas_forward.1} parent=1 // pred_region
      %s75 = ssub.s32 4096, 4096
      %76 = vsyncadd [#allocation8], %s75
      %s77 = sshll.u32 [#allocation7], 4
      %s78 = int_to_ptr.vmem [resolvable:$true] %s77
      %83 = dma.hbm_to_vmem [thread:$0]  %s5, 4096, %s78, [#allocation8], 64, 64, 4
    $region25: #{pallas_forward.1} parent=1 // pred_fallthru
      _
    // Predicated region
    $region26: #{pallas_forward.1} parent=1 // pred_check
      _
    $region27: #{pallas_forward.1} parent=1 // pred_check_branch
      %85 = sbr.rel (0) target = $region29
    $region28: #{pallas_forward.1} parent=1 // pred_region
      %s87 = ssub.s32 64, 64
      %88 = vsyncadd [#allocation8], %s87
      %s89 = sshll.u32 [#allocation9], 4
      %s90 = int_to_ptr.vmem [resolvable:$true] %s89
      %95 = dma.hbm_to_vmem [thread:$0]  %s6, 64, %s90, [#allocation8], 16, 16, 1
    $region29: #{pallas_forward.1} parent=1 // pred_fallthru
      _
    // Predicated region
    $region30: #{pallas_forward.1} parent=1 // pred_check
      _
    $region31: #{pallas_forward.1} parent=1 // pred_check_branch
      %97 = sbr.rel (0) target = $region33
    $region32: #{pallas_forward.1} parent=1 // pred_region
      _
    $region33: #{pallas_forward.1} parent=1 // pred_fallthru
      _
    // Predicated region
    $region34: #{pallas_forward.1} parent=1 // pred_check
      _
    $region35: #{pallas_forward.1} parent=1 // pred_check_branch
      %99 = sbr.rel (0) target = $region37
    $region36: #{pallas_forward.1} parent=1 // pred_region
      _
    $region37: #{pallas_forward.1} parent=1 // pred_fallthru
      _
    // Predicated region
    $region38: #{pallas_forward.1} parent=1 // pred_check
      _
    $region39: #{pallas_forward.1} parent=1 // pred_check_branch
      %101 = sbr.rel (0) target = $region41
    $region40: #{pallas_forward.1} parent=1 // pred_region
      %s103 = ssub.s32 8192, 8192
      %104 = vsyncadd [#allocation11], %s103
      %s105 = sshll.u32 [#allocation10], 4
      %s106 = int_to_ptr.vmem [resolvable:$true] %s105
      %111 = dma.hbm_to_vmem [thread:$0]  %s9, 8192, %s106, [#allocation11], 128, 128, 8
    $region41: #{pallas_forward.1} parent=1 // pred_fallthru
      _
    // Predicated region
    $region42: #{pallas_forward.1} parent=1 // pred_check
      _
    $region43: #{pallas_forward.1} parent=1 // pred_check_branch
      %113 = sbr.rel (0) target = $region45
    $region44: #{pallas_forward.1} parent=1 // pred_region
      %s115 = ssub.s32 128, 128
      %116 = vsyncadd [#allocation11], %s115
      %s117 = sshll.u32 [#allocation12], 4
      %s118 = int_to_ptr.vmem [resolvable:$true] %s117
      %123 = dma.hbm_to_vmem [thread:$0]  %s10, 128, %s118, [#allocation11], 32, 32, 2
    $region45: #{pallas_forward.1} parent=1 // pred_fallthru
      _
    // Predicated region
    $region46: #{pallas_forward.1} parent=1 // pred_check
      _
    $region47: #{pallas_forward.1} parent=1 // pred_check_branch
      %125 = sbr.rel (0) target = $region49
    $region48: #{pallas_forward.1} parent=1 // pred_region
      %s127 = ssub.s32 8192, 8192
      %128 = vsyncadd [#allocation14], %s127
      %s129 = sshll.u32 [#allocation13], 4
      %s130 = int_to_ptr.vmem [resolvable:$true] %s129
      %135 = dma.hbm_to_vmem [thread:$0]  %s11, 8192, %s130, [#allocation14], 64, 64, 4
    $region49: #{pallas_forward.1} parent=1 // pred_fallthru
      _
    // Predicated region
    $region50: #{pallas_forward.1} parent=1 // pred_check
      _
    $region51: #{pallas_forward.1} parent=1 // pred_check_branch
      %137 = sbr.rel (0) target = $region53
    $region52: #{pallas_forward.1} parent=1 // pred_region
      %s139 = ssub.s32 64, 64
      %140 = vsyncadd [#allocation14], %s139
      %s141 = sshll.u32 [#allocation15], 4
      %s142 = int_to_ptr.vmem [resolvable:$true] %s141
      %147 = dma.hbm_to_vmem [thread:$0]  %s12, 64, %s142, [#allocation14], 16, 16, 1
    $region53: #{pallas_forward.1} parent=1 // pred_fallthru
      _
    // Predicated region
    $region54: #{pallas_forward.1} parent=1 // pred_check
      _
    $region55: #{pallas_forward.1} parent=1 // pred_check_branch
      %149 = sbr.rel (0) target = $region57
    $region56: #{pallas_forward.1} parent=1 // pred_region
      _
    $region57: #{pallas_forward.1} parent=1 // pred_fallthru
      _
    // Predicated region
    $region58: #{pallas_forward.1} parent=1 // pred_check
      _
    $region59: #{pallas_forward.1} parent=1 // pred_check_branch
      %151 = sbr.rel (0) target = $region61
    $region60: #{pallas_forward.1} parent=1 // pred_region
      _
    $region61: #{pallas_forward.1} parent=1 // pred_fallthru
      _
    // Predicated region
    $region62: #{pallas_forward.1} parent=1 // pred_check
      _
    $region63: #{pallas_forward.1} parent=1 // pred_check_branch
      %153 = sbr.rel (0) target = $region65
    $region64: #{pallas_forward.1} parent=1 // pred_region
      %s155 = ssub.s32 2048, 2048
      %156 = vsyncadd [#allocation17], %s155
      %s157 = sshll.u32 [#allocation16], 4
      %s158 = int_to_ptr.vmem [resolvable:$true] %s157
      %163 = dma.hbm_to_vmem [thread:$0]  %s15, 2048, %s158, [#allocation17], 128, 128, 8
    $region65: #{pallas_forward.1} parent=1 // pred_fallthru
      _
    // Predicated region
    $region66: #{pallas_forward.1} parent=1 // pred_check
      _
    $region67: #{pallas_forward.1} parent=1 // pred_check_branch
      %165 = sbr.rel (0) target = $region69
    $region68: #{pallas_forward.1} parent=1 // pred_region
      _
    $region69: #{pallas_forward.1} parent=1 // pred_fallthru
      _
    // Predicated region
    $region70: #{pallas_forward.1} parent=1 // pred_check
      _
    $region71: #{pallas_forward.1} parent=1 // pred_check_branch
      %167 = sbr.rel (0) target = $region73
    $region72: #{pallas_forward.1} parent=1 // pred_region
      %s169 = ssub.s32 8192, 8192
      %170 = vsyncadd [#allocation17], %s169
      %s171 = sshll.u32 [#allocation18], 4
      %s172 = int_to_ptr.vmem [resolvable:$true] %s171
      %177 = dma.hbm_to_vmem [thread:$0]  %s17, 8192, %s172, [#allocation17], 256, 256, 16
    $region73: #{pallas_forward.1} parent=1 // pred_fallthru
      _
    // Predicated region
    $region74: #{pallas_forward.1} parent=1 // pred_check
      _
    $region75: #{pallas_forward.1} parent=1 // pred_check_branch
      %179 = sbr.rel (0) target = $region77
    $region76: #{pallas_forward.1} parent=1 // pred_region
      %s181 = ssub.s32 64, 64
      %182 = vsyncadd [#allocation20], %s181
      %s184 = sshll.u32 [#allocation19], 4
      %s185 = int_to_ptr.vmem [resolvable:$true] %s184
      %187 = dma.hbm_to_vmem [thread:$0]  %s18, 64, %s185, [#allocation20]
    $region77: #{pallas_forward.1} parent=1 // pred_fallthru
      _
    // Predicated region
    $region78: #{pallas_forward.1} parent=1 // pred_check
      _
    $region79: #{pallas_forward.1} parent=1 // pred_check_branch
      %189 = sbr.rel (0) target = $region81
    $region80: #{pallas_forward.1} parent=1 // pred_region
      %s191 = ssub.s32 4096, 4096
      %192 = vsyncadd [#allocation20], %s191
      %s193 = sshll.u32 [#allocation21], 4
      %s194 = int_to_ptr.vmem [resolvable:$true] %s193
      %199 = dma.hbm_to_vmem [thread:$0]  %s19, 4096, %s194, [#allocation20], 64, 64, 4
    $region81: #{pallas_forward.1} parent=1 // pred_fallthru
      _
    // Predicated region
    $region82: #{pallas_forward.1} parent=1 // pred_check
      _
    $region83: #{pallas_forward.1} parent=1 // pred_check_branch
      %201 = sbr.rel (0) target = $region85
    $region84: #{pallas_forward.1} parent=1 // pred_region
      %s203 = ssub.s32 16, 16
      %204 = vsyncadd [#allocation23], %s203
      %s206 = sshll.u32 [#allocation22], 4
      %s207 = int_to_ptr.vmem [resolvable:$true] %s206
      %209 = dma.hbm_to_vmem [thread:$0]  %s20, 16, %s207, [#allocation23]
    $region85: #{pallas_forward.1} parent=1 // pred_fallthru
      _
    // Predicated region
    $region86: #{pallas_forward.1} parent=1 // pred_check
      _
    $region87: #{pallas_forward.1} parent=1 // pred_check_branch
      %211 = sbr.rel (0) target = $region89
    $region88: #{pallas_forward.1} parent=1 // pred_region
      %212 = dma.done [#allocation3], 16
    $region89: #{pallas_forward.1} parent=1 // pred_fallthru
      _
    // Predicated region
    $region90: #{pallas_forward.1} parent=1 // pred_check
      _
    $region91: #{pallas_forward.1} parent=1 // pred_check_branch
      %214 = sbr.rel (0) target = $region93
    $region92: #{pallas_forward.1} parent=1 // pred_region
      %215 = dma.done [#allocation5], 12288
    $region93: #{pallas_forward.1} parent=1 // pred_fallthru
      _
    // Predicated region
    $region94: #{pallas_forward.1} parent=1 // pred_check
      _
    $region95: #{pallas_forward.1} parent=1 // pred_check_branch
      %217 = sbr.rel (0) target = $region97
    $region96: #{pallas_forward.1} parent=1 // pred_region
      %218 = dma.done [#allocation5], 192
    $region97: #{pallas_forward.1} parent=1 // pred_fallthru
      _
    // Predicated region
    $region98: #{pallas_forward.1} parent=1 // pred_check
      _
    $region99: #{pallas_forward.1} parent=1 // pred_check_branch
      %220 = sbr.rel (0) target = $region101
    $region100: #{pallas_forward.1} parent=1 // pred_region
      %221 = dma.done [#allocation8], 4096
    $region101: #{pallas_forward.1} parent=1 // pred_fallthru
      _
    // Predicated region
    $region102: #{pallas_forward.1} parent=1 // pred_check
      _
    $region103: #{pallas_forward.1} parent=1 // pred_check_branch
      %223 = sbr.rel (0) target = $region105
    $region104: #{pallas_forward.1} parent=1 // pred_region
      %224 = dma.done [#allocation8], 64
    $region105: #{pallas_forward.1} parent=1 // pred_fallthru
      _
    // Predicated region
    $region106: #{pallas_forward.1} parent=1 // pred_check
      _
    $region107: #{pallas_forward.1} parent=1 // pred_check_branch
      %226 = sbr.rel (0) target = $region109
    $region108: #{pallas_forward.1} parent=1 // pred_region
      %227 = dma.done [#allocation11], 8192
    $region109: #{pallas_forward.1} parent=1 // pred_fallthru
      _
    // Predicated region
    $region110: #{pallas_forward.1} parent=1 // pred_check
      _
    $region111: #{pallas_forward.1} parent=1 // pred_check_branch
      %229 = sbr.rel (0) target = $region113
    $region112: #{pallas_forward.1} parent=1 // pred_region
      %230 = dma.done [#allocation11], 128
    $region113: #{pallas_forward.1} parent=1 // pred_fallthru
      _
    // Predicated region
    $region114: #{pallas_forward.1} parent=1 // pred_check
      _
    $region115: #{pallas_forward.1} parent=1 // pred_check_branch
      %232 = sbr.rel (0) target = $region117
    $region116: #{pallas_forward.1} parent=1 // pred_region
      %233 = dma.done [#allocation14], 8192
    $region117: #{pallas_forward.1} parent=1 // pred_fallthru
      _
    // Predicated region
    $region118: #{pallas_forward.1} parent=1 // pred_check
      _
    $region119: #{pallas_forward.1} parent=1 // pred_check_branch
      %235 = sbr.rel (0) target = $region121
    $region120: #{pallas_forward.1} parent=1 // pred_region
      %236 = dma.done [#allocation14], 64
    $region121: #{pallas_forward.1} parent=1 // pred_fallthru
      _
    // Predicated region
    $region122: #{pallas_forward.1} parent=1 // pred_check
      _
    $region123: #{pallas_forward.1} parent=1 // pred_check_branch
      %238 = sbr.rel (0) target = $region125
    $region124: #{pallas_forward.1} parent=1 // pred_region
      %239 = dma.done [#allocation17], 2048
    $region125: #{pallas_forward.1} parent=1 // pred_fallthru
      _
    // Predicated region
    $region126: #{pallas_forward.1} parent=1 // pred_check
      _
    $region127: #{pallas_forward.1} parent=1 // pred_check_branch
      %241 = sbr.rel (0) target = $region129
    $region128: #{pallas_forward.1} parent=1 // pred_region
      %242 = dma.done [#allocation17], 8192
    $region129: #{pallas_forward.1} parent=1 // pred_fallthru
      _
    // Predicated region
    $region130: #{pallas_forward.1} parent=1 // pred_check
      _
    $region131: #{pallas_forward.1} parent=1 // pred_check_branch
      %244 = sbr.rel (0) target = $region133
    $region132: #{pallas_forward.1} parent=1 // pred_region
      %245 = dma.done [#allocation20], 64
    $region133: #{pallas_forward.1} parent=1 // pred_fallthru
      _
    // Predicated region
    $region134: #{pallas_forward.1} parent=1 // pred_check
      _
    $region135: #{pallas_forward.1} parent=1 // pred_check_branch
      %247 = sbr.rel (0) target = $region137
    $region136: #{pallas_forward.1} parent=1 // pred_region
      %248 = dma.done [#allocation20], 4096
    $region137: #{pallas_forward.1} parent=1 // pred_fallthru
      _
    // Predicated region
    $region138: #{pallas_forward.1} parent=1 // pred_check
      _
    $region139: #{pallas_forward.1} parent=1 // pred_check_branch
      %250 = sbr.rel (0) target = $region141
    $region140: #{pallas_forward.1} parent=1 // pred_region
      %251 = dma.done [#allocation23], 16
    $region141: #{pallas_forward.1} parent=1 // pred_fallthru
      _
    %v253 = vld [vmem:[%s0] sm:$0xff]
    %v254 = vld [vmem:[%s1] sm:$0xf]
    %v255 = vld [vmem:[%s1 + $0x4] sm:$0xf]
    %v256 = vld [vmem:[%s1 + $0x8] sm:$0xf]
    %v257 = vld [vmem:[%s1 + $0xc] sm:$0xf]
    %v258 = vld [vmem:[%s1 + $0x10] sm:$0xf]
    %v259 = vld [vmem:[%s1 + $0x14] sm:$0xf]
    %v260 = vld [vmem:[%s1 + $0x18] sm:$0xf]
    %v261 = vld [vmem:[%s1 + $0x1c] sm:$0xf]
    %v262 = vld [vmem:[%s1 + $0x20] sm:$0xf]
    %v263 = vld [vmem:[%s1 + $0x24] sm:$0xf]
    %v264 = vld [vmem:[%s1 + $0x28] sm:$0xf]
    %v265 = vld [vmem:[%s1 + $0x2c] sm:$0xf]
    %v266 = vld [vmem:[%s1 + $0x30] sm:$0xf]
    %v267 = vld [vmem:[%s1 + $0x34] sm:$0xf]
    %v268 = vld [vmem:[%s1 + $0x38] sm:$0xf]
    %v269 = vld [vmem:[%s1 + $0x3c] sm:$0xf]
    %v270 = vpack.c.bf16 %v253, %v253
    %v271 = vld [vmem:[#allocation2] sm:$0x1]
    %v273 = vlaneseq
    %v274 = vshrl.u32 %v273, 7
    %v275 = vsub.s32 0, %v274
    %v276 = vrot.slane %v271, %v275
    %v294 = vunpack.c.l.b16 %v254
    %v295 = vunpack.c.l.b16 %v255
    %v296 = vunpack.c.l.b16 %v256
    %v297 = vunpack.c.l.b16 %v257
    %v298 = vunpack.c.l.b16 %v258
    %v299 = vunpack.c.l.b16 %v259
    %v300 = vunpack.c.l.b16 %v260
    %v301 = vunpack.c.l.b16 %v261
    %v302 = vunpack.c.l.b16 %v262
    %v303 = vunpack.c.l.b16 %v263
    %v304 = vunpack.c.l.b16 %v264
    %v305 = vunpack.c.l.b16 %v265
    %v306 = vunpack.c.l.b16 %v266
    %v307 = vunpack.c.l.b16 %v267
    %v308 = vunpack.c.l.b16 %v268
    %v309 = vunpack.c.l.b16 %v269
    %v310 = vpack.c.b16 %v295, %v294
    %v311 = vpack.c.b16 %v297, %v296
    %v312 = vpack.c.b16 %v299, %v298
    %v313 = vpack.c.b16 %v301, %v300
    %v314 = vpack.c.b16 %v303, %v302
    %v315 = vpack.c.b16 %v305, %v304
    %v316 = vpack.c.b16 %v307, %v306
    %v317 = vpack.c.b16 %v309, %v308
    %326 = vmatprep.subr.bf16.mxu0 0
    %327 = vmatpush1.bf16.msra.mxu0 %v310
    %328 = vmatprep.subr.bf16.mxu0 0
    %329 = vmatpush1.bf16.msra.mxu0 %v311
    %330 = vmatprep.subr.bf16.mxu0 0
    %331 = vmatpush1.bf16.msra.mxu0 %v312
    %332 = vmatprep.subr.bf16.mxu0 0
    %333 = vmatpush1.bf16.msra.mxu0 %v313
    %334 = vmatprep.subr.bf16.mxu0 0
    %335 = vmatpush1.bf16.msra.mxu0 %v314
    %336 = vmatprep.subr.bf16.mxu0 0
    %337 = vmatpush1.bf16.msra.mxu0 %v315
    %338 = vmatprep.subr.bf16.mxu0 0
    %339 = vmatpush1.bf16.msra.mxu0 %v316
    %340 = vmatprep.subr.bf16.mxu0 0
    %341 = vmatpush1.bf16.msra.mxu0 %v317
    %342 = vmatprep.subr.bf16.mxu0 0
    %343 = vmatpush1.bf16.msra.mxu0 0
    %344 = vmatprep.subr.bf16.mxu0 0
    %345 = vmatpush1.bf16.msra.mxu0 0
    %346 = vmatprep.subr.bf16.mxu0 0
    %347 = vmatpush1.bf16.msra.mxu0 0
    %348 = vmatprep.subr.bf16.mxu0 0
    %349 = vmatpush1.bf16.msra.mxu0 0
    %350 = vmatprep.subr.bf16.mxu0 0
    %351 = vmatpush1.bf16.msra.mxu0 0
    %352 = vmatprep.subr.bf16.mxu0 0
    %353 = vmatpush1.bf16.msra.mxu0 0
    %354 = vmatprep.subr.bf16.mxu0 0
    %355 = vmatpush1.bf16.msra.mxu0 0
    %356 = vmatprep.subr.bf16.mxu0 0
    %357 = vmatpush1.bf16.msra.mxu0 0
    %358 = vmatprep.mubr.bf16.mxu0 0
    %359 = vmatmul.mubr.bf16.gmra.mrb[0].mxu0 %v270
    %v360 = vpop.f32.mrb[0].mxu0
    %v361 = vadd.f32 %v276, %v360
    %v362 = vpop.f32.mrb[0].mxu0
    %v363 = vpop.f32.mrb[0].mxu0
    %v364 = vpop.f32.mrb[0].mxu0
    %365 = vdwg.mxu0
    loop: start=0, step=1, limit=4
    $region142: #{pallas_forward.1} parent=1 // loop_pre_header
      _
    $region143: #{pallas_forward.1} parent=1 // loop_header
      %s367 = sphi 0, %s371
      %p368 = scmp.ge.s32.totalorder %s367, 4
      %v372 = vphi %v361, %v2517
    $region144: #{pallas_forward.1} parent=1 // loop_header_branch
      %370 = sbr.rel (%p368) target = $region148
    $region145: #{pallas_forward.1} parent=1 // loop_body
      %s373 = smul.u32 %s367, 48
      %s374 = smul.addr %s373, 4
      %s375 = scalar_lea.vmem [#allocation4], %s374
      %v376 = vld [vmem:[%s375] sm:$0xff]
      %v377 = vld [vmem:[%s375 + $0x8] sm:$0xf]
      %v378 = vld [vmem:[%s375 + $0xc] sm:$0xff]
      %v379 = vld [vmem:[%s375 + $0x14] sm:$0xf]
      %v380 = vld [vmem:[%s375 + $0x18] sm:$0xff]
      %v381 = vld [vmem:[%s375 + $0x20] sm:$0xf]
      %v382 = vld [vmem:[%s375 + $0x24] sm:$0xff]
      %v383 = vld [vmem:[%s375 + $0x2c] sm:$0xf]
      %v384 = vld [vmem:[%s375 + $0x30] sm:$0xff]
      %v385 = vld [vmem:[%s375 + $0x38] sm:$0xf]
      %v386 = vld [vmem:[%s375 + $0x3c] sm:$0xff]
      %v387 = vld [vmem:[%s375 + $0x44] sm:$0xf]
      %v388 = vld [vmem:[%s375 + $0x48] sm:$0xff]
      %v389 = vld [vmem:[%s375 + $0x50] sm:$0xf]
      %v390 = vld [vmem:[%s375 + $0x54] sm:$0xff]
      %v391 = vld [vmem:[%s375 + $0x5c] sm:$0xf]
      %v392 = vld [vmem:[%s375 + $0x60] sm:$0xff]
      %v393 = vld [vmem:[%s375 + $0x68] sm:$0xf]
      %v394 = vld [vmem:[%s375 + $0x6c] sm:$0xff]
      %v395 = vld [vmem:[%s375 + $0x74] sm:$0xf]
      %v396 = vld [vmem:[%s375 + $0x78] sm:$0xff]
      %v397 = vld [vmem:[%s375 + $0x80] sm:$0xf]
      %v398 = vld [vmem:[%s375 + $0x84] sm:$0xff]
      %v399 = vld [vmem:[%s375 + $0x8c] sm:$0xf]
      %v400 = vld [vmem:[%s375 + $0x90] sm:$0xff]
      %v401 = vld [vmem:[%s375 + $0x98] sm:$0xf]
      %v402 = vld [vmem:[%s375 + $0x9c] sm:$0xff]
      %v403 = vld [vmem:[%s375 + $0xa4] sm:$0xf]
      %v404 = vld [vmem:[%s375 + $0xa8] sm:$0xff]
      %v405 = vld [vmem:[%s375 + $0xb0] sm:$0xf]
      %v406 = vld [vmem:[%s375 + $0xb4] sm:$0xff]
      %v407 = vld [vmem:[%s375 + $0xbc] sm:$0xf]
      %v408 = vpack.c.bf16 %v372, %v372
      %s409 = smul.u32 %s367, 3
      %s410 = scalar_lea.vmem [#allocation6], %s409
      %v411 = vld [vmem:[%s410] sm:$0x7]
      %v413 = vlaneseq
      %v414 = vshrl.u32 %v413, 7
      %v415 = vsub.s32 0, %v414
      %v416 = vrot.slane %v411, %v415
      %v417 = vlaneseq
      %v418 = vshrl.u32 %v417, 7
      %v419 = vsub.s32 1, %v418
      %v420 = vrot.slane %v411, %v419
      %v421 = vlaneseq
      %v422 = vshrl.u32 %v421, 7
      %v423 = vsub.s32 2, %v422
      %v424 = vrot.slane %v411, %v423
      %v460 = vunpack.c.l.b16 %v376
      %v461 = vunpack.c.h.b16 %v376
      %v462 = vunpack.c.l.b16 %v377
      %v463 = vunpack.c.l.b16 %v378
      %v464 = vunpack.c.h.b16 %v378
      %v465 = vunpack.c.l.b16 %v379
      %v466 = vunpack.c.l.b16 %v380
      %v467 = vunpack.c.h.b16 %v380
      %v468 = vunpack.c.l.b16 %v381
      %v469 = vunpack.c.l.b16 %v382
      %v470 = vunpack.c.h.b16 %v382
      %v471 = vunpack.c.l.b16 %v383
      %v472 = vunpack.c.l.b16 %v384
      %v473 = vunpack.c.h.b16 %v384
      %v474 = vunpack.c.l.b16 %v385
      %v475 = vunpack.c.l.b16 %v386
      %v476 = vunpack.c.h.b16 %v386
      %v477 = vunpack.c.l.b16 %v387
      %v478 = vunpack.c.l.b16 %v388
      %v479 = vunpack.c.h.b16 %v388
      %v480 = vunpack.c.l.b16 %v389
      %v481 = vunpack.c.l.b16 %v390
      %v482 = vunpack.c.h.b16 %v390
      %v483 = vunpack.c.l.b16 %v391
      %v484 = vunpack.c.l.b16 %v392
      %v485 = vunpack.c.h.b16 %v392
      %v486 = vunpack.c.l.b16 %v393
      %v487 = vunpack.c.l.b16 %v394
      %v488 = vunpack.c.h.b16 %v394
      %v489 = vunpack.c.l.b16 %v395
      %v490 = vunpack.c.l.b16 %v396
      %v491 = vunpack.c.h.b16 %v396
      %v492 = vunpack.c.l.b16 %v397
      %v493 = vunpack.c.l.b16 %v398
      %v494 = vunpack.c.h.b16 %v398
      %v495 = vunpack.c.l.b16 %v399
      %v496 = vunpack.c.l.b16 %v400
      %v497 = vunpack.c.h.b16 %v400
      %v498 = vunpack.c.l.b16 %v401
      %v499 = vunpack.c.l.b16 %v402
      %v500 = vunpack.c.h.b16 %v402
      %v501 = vunpack.c.l.b16 %v403
      %v502 = vunpack.c.l.b16 %v404
      %v503 = vunpack.c.h.b16 %v404
      %v504 = vunpack.c.l.b16 %v405
      %v505 = vunpack.c.l.b16 %v406
      %v506 = vunpack.c.h.b16 %v406
      %v507 = vunpack.c.l.b16 %v407
      %v508 = vpack.c.b16 %v463, %v460
      %v509 = vpack.c.b16 %v464, %v461
      %v510 = vpack.c.b16 %v465, %v462
      %v511 = vpack.c.b16 %v469, %v466
      %v512 = vpack.c.b16 %v470, %v467
      %v513 = vpack.c.b16 %v471, %v468
      %v514 = vpack.c.b16 %v475, %v472
      %v515 = vpack.c.b16 %v476, %v473
      %v516 = vpack.c.b16 %v477, %v474
      %v517 = vpack.c.b16 %v481, %v478
      %v518 = vpack.c.b16 %v482, %v479
      %v519 = vpack.c.b16 %v483, %v480
      %v520 = vpack.c.b16 %v487, %v484
      %v521 = vpack.c.b16 %v488, %v485
      %v522 = vpack.c.b16 %v489, %v486
      %v523 = vpack.c.b16 %v493, %v490
      %v524 = vpack.c.b16 %v494, %v491
      %v525 = vpack.c.b16 %v495, %v492
      %v526 = vpack.c.b16 %v499, %v496
      %v527 = vpack.c.b16 %v500, %v497
      %v528 = vpack.c.b16 %v501, %v498
      %v529 = vpack.c.b16 %v505, %v502
      %v530 = vpack.c.b16 %v506, %v503
      %v531 = vpack.c.b16 %v507, %v504
      %556 = vmatprep.subr.bf16.mxu0 %v509
      %557 = vmatpush1.bf16.msra.mxu0 %v508
      %558 = vmatprep.subr.bf16.mxu0 %v512
      %559 = vmatpush1.bf16.msra.mxu0 %v511
      %560 = vmatprep.subr.bf16.mxu0 %v515
      %561 = vmatpush1.bf16.msra.mxu0 %v514
      %562 = vmatprep.subr.bf16.mxu0 %v518
      %563 = vmatpush1.bf16.msra.mxu0 %v517
      %564 = vmatprep.subr.bf16.mxu0 %v521
      %565 = vmatpush1.bf16.msra.mxu0 %v520
      %566 = vmatprep.subr.bf16.mxu0 %v524
      %567 = vmatpush1.bf16.msra.mxu0 %v523
      %568 = vmatprep.subr.bf16.mxu0 %v527
      %569 = vmatpush1.bf16.msra.mxu0 %v526
      %570 = vmatprep.subr.bf16.mxu0 %v530
      %571 = vmatpush1.bf16.msra.mxu0 %v529
      %572 = vmatprep.subr.bf16.mxu0 0
      %573 = vmatpush1.bf16.msra.mxu0 0
      %574 = vmatprep.subr.bf16.mxu0 0
      %575 = vmatpush1.bf16.msra.mxu0 0
      %576 = vmatprep.subr.bf16.mxu0 0
      %577 = vmatpush1.bf16.msra.mxu0 0
      %578 = vmatprep.subr.bf16.mxu0 0
      %579 = vmatpush1.bf16.msra.mxu0 0
      %580 = vmatprep.subr.bf16.mxu0 0
      %581 = vmatpush1.bf16.msra.mxu0 0
      %582 = vmatprep.subr.bf16.mxu0 0
      %583 = vmatpush1.bf16.msra.mxu0 0
      %584 = vmatprep.subr.bf16.mxu0 0
      %585 = vmatpush1.bf16.msra.mxu0 0
      %586 = vmatprep.subr.bf16.mxu0 0
      %587 = vmatpush1.bf16.msra.mxu0 0
      %588 = vmatprep.mubr.bf16.mxu0 0
      %589 = vmatmul.mubr.bf16.gmra.mrb[0].mxu0 %v408
      %v590 = vpop.f32.mrb[0].mxu0
      %v591 = vadd.f32 %v416, %v590
      %v592 = vpop.f32.mrb[0].mxu0
      %v593 = vadd.f32 %v420, %v592
      %v594 = vpop.f32.mrb[0].mxu0
      %v595 = vpop.f32.mrb[0].mxu0
      %596 = vdwg.mxu0
      %597 = vmatprep.subr.bf16.mxu0 0
      %598 = vmatpush1.bf16.msra.mxu0 %v510
      %599 = vmatprep.subr.bf16.mxu0 0
      %600 = vmatpush1.bf16.msra.mxu0 %v513
      %601 = vmatprep.subr.bf16.mxu0 0
      %602 = vmatpush1.bf16.msra.mxu0 %v516
      %603 = vmatprep.subr.bf16.mxu0 0
      %604 = vmatpush1.bf16.msra.mxu0 %v519
      %605 = vmatprep.subr.bf16.mxu0 0
      %606 = vmatpush1.bf16.msra.mxu0 %v522
      %607 = vmatprep.subr.bf16.mxu0 0
      %608 = vmatpush1.bf16.msra.mxu0 %v525
      %609 = vmatprep.subr.bf16.mxu0 0
      %610 = vmatpush1.bf16.msra.mxu0 %v528
      %611 = vmatprep.subr.bf16.mxu0 0
      %612 = vmatpush1.bf16.msra.mxu0 %v531
      %613 = vmatprep.subr.bf16.mxu0 0
      %614 = vmatpush1.bf16.msra.mxu0 0
      %615 = vmatprep.subr.bf16.mxu0 0
      %616 = vmatpush1.bf16.msra.mxu0 0
      %617 = vmatprep.subr.bf16.mxu0 0
      %618 = vmatpush1.bf16.msra.mxu0 0
      %619 = vmatprep.subr.bf16.mxu0 0
      %620 = vmatpush1.bf16.msra.mxu0 0
      %621 = vmatprep.subr.bf16.mxu0 0
      %622 = vmatpush1.bf16.msra.mxu0 0
      %623 = vmatprep.subr.bf16.mxu0 0
      %624 = vmatpush1.bf16.msra.mxu0 0
      %625 = vmatprep.subr.bf16.mxu0 0
      %626 = vmatpush1.bf16.msra.mxu0 0
      %627 = vmatprep.subr.bf16.mxu0 0
      %628 = vmatpush1.bf16.msra.mxu0 0
      %629 = vmatprep.mubr.bf16.mxu0 0
      %630 = vmatmul.mubr.bf16.gmra.mrb[0].mxu0 %v408
      %v631 = vpop.f32.mrb[0].mxu0
      %v632 = vadd.f32 %v424, %v631
      %v633 = vpop.f32.mrb[0].mxu0
      %v634 = vpop.f32.mrb[0].mxu0
      %v635 = vpop.f32.mrb[0].mxu0
      %636 = vdwg.mxu0
      %vm637 = vcmask 130048
      %v639 = vsel %vm637, %v591, 0
      %v642 = vsel %vm637, %v593, 0
      %644 = vmatprep.subr.mxu0 0.0
      %645 = vmatpush1.xpose.msra.mxu0 %v642
      %646 = vmatprep.subr.mxu0 0.0
      %647 = vmatpush1.xpose.msra.mxu0 0.0
      %648 = vmatprep.subr.mxu0 0.0
      %649 = vmatpush1.xpose.msra.mxu0 0.0
      %650 = vmatprep.subr.mxu0 0.0
      %651 = vmatpush1.xpose.msra.mxu0 0.0
      %652 = vmatprep.subr.mxu0 0.0
      %653 = vmatpush1.xpose.msra.mxu0 0.0
      %654 = vmatprep.subr.mxu0 0.0
      %655 = vmatpush1.xpose.msra.mxu0 0.0
      %656 = vmatprep.subr.mxu0 0.0
      %657 = vmatpush1.xpose.msra.mxu0 0.0
      %658 = vmatprep.subr.mxu0 0.0
      %659 = vmatpush1.xpose.msra.mxu0 0.0
      %660 = vmatprep.subr.mxu0 0.0
      %661 = vmatpush1.xpose.msra.mxu0 0.0
      %662 = vmatprep.subr.mxu0 0.0
      %663 = vmatpush1.xpose.msra.mxu0 0.0
      %664 = vmatprep.subr.mxu0 0.0
      %665 = vmatpush1.xpose.msra.mxu0 0.0
      %666 = vmatprep.subr.mxu0 0.0
      %667 = vmatpush1.xpose.msra.mxu0 0.0
      %668 = vmatprep.subr.mxu0 0.0
      %669 = vmatpush1.xpose.msra.mxu0 0.0
      %670 = vmatprep.subr.mxu0 0.0
      %671 = vmatpush1.xpose.msra.mxu0 0.0
      %672 = vmatprep.subr.mxu0 0.0
      %673 = vmatpush1.xpose.msra.mxu0 0.0
      %674 = vmatprep.subr.mxu0 0.0
      %675 = vmatpush1.xpose.msra.mxu0 0.0
      %676 = vmatprep.subr.mxu0 0.0
      %677 = vmatpush1.xpose.msra.mxu0 0.0
      %678 = vmatprep.subr.mxu0 0.0
      %679 = vmatpush1.xpose.msra.mxu0 0.0
      %680 = vmatprep.subr.mxu0 0.0
      %681 = vmatpush1.xpose.msra.mxu0 0.0
      %682 = vmatprep.subr.mxu0 0.0
      %683 = vmatpush1.xpose.msra.mxu0 0.0
      %684 = vmatprep.subr.mxu0 0.0
      %685 = vmatpush1.xpose.msra.mxu0 0.0
      %686 = vmatprep.subr.mxu0 0.0
      %687 = vmatpush1.xpose.msra.mxu0 0.0
      %688 = vmatprep.subr.mxu0 0.0
      %689 = vmatpush1.xpose.msra.mxu0 0.0
      %690 = vmatprep.subr.mxu0 0.0
      %691 = vmatpush1.xpose.msra.mxu0 0.0
      %692 = vmatprep.subr.mxu0 0.0
      %693 = vmatpush1.xpose.msra.mxu0 0.0
      %694 = vmatprep.subr.mxu0 0.0
      %695 = vmatpush1.xpose.msra.mxu0 0.0
      %696 = vmatprep.subr.mxu0 0.0
      %697 = vmatpush1.xpose.msra.mxu0 0.0
      %698 = vmatprep.subr.mxu0 0.0
      %699 = vmatpush1.xpose.msra.mxu0 0.0
      %700 = vmatprep.subr.mxu0 0.0
      %701 = vmatpush1.xpose.msra.mxu0 0.0
      %702 = vmatprep.subr.mxu0 0.0
      %703 = vmatpush1.xpose.msra.mxu0 0.0
      %704 = vmatprep.subr.mxu0 0.0
      %705 = vmatpush1.xpose.msra.mxu0 0.0
      %706 = vmatprep.subr.mxu0 0.0
      %707 = vmatpush1.xpose.msra.mxu0 0.0
      %708 = vmatprep.mubr.f32.mxu0 0.0
      %709 = vmatmul.mubr.f32.gmra.mrb[0].mxu0 %v639
      %v710 = vpop.f32.mrb[0].mxu0
      %v711 = vadd.f32 0.0, %v710
      %v712 = vpop.f32.mrb[0].mxu0
      %713 = vdwg.mxu0
      %v714 = vmul.f32 %v711, 0.25
      %vm715 = vcmask 64512
      %v716 = vsel %vm715, %v714, -inf
      %717 = vmax.xlane.f32.xlu0 %v716
      %v718 = vpop.xlane.xlu0 %717
      %v719 = vsub.f32 %v714, %v718
      %v720 = vmul.f32 %v719, 1.442695
      %v721 = vpow.pop %v720
      %v722 = vsel %vm715, %v721, 0.0
      %723 = vadd.xlane.f32.xlu0 %v722
      %v724 = vpop.xlane.xlu0 %723
      %v725 = vrcp.pop %v724
      %v726 = vmul.f32 %v721, %v725
      %v728 = vsel %vm715, %v726, 0
      %730 = vmatprep.subr.mxu0 0.0
      %731 = vmatpush1.msra.mxu0 %v632
      %732 = vmatprep.subr.mxu0 0.0
      %733 = vmatpush1.msra.mxu0 0.0
      %734 = vmatprep.subr.mxu0 0.0
      %735 = vmatpush1.msra.mxu0 0.0
      %736 = vmatprep.subr.mxu0 0.0
      %737 = vmatpush1.msra.mxu0 0.0
      %738 = vmatprep.subr.mxu0 0.0
      %739 = vmatpush1.msra.mxu0 0.0
      %740 = vmatprep.subr.mxu0 0.0
      %741 = vmatpush1.msra.mxu0 0.0
      %742 = vmatprep.subr.mxu0 0.0
      %743 = vmatpush1.msra.mxu0 0.0
      %744 = vmatprep.subr.mxu0 0.0
      %745 = vmatpush1.msra.mxu0 0.0
      %746 = vmatprep.subr.mxu0 0.0
      %747 = vmatpush1.msra.mxu0 0.0
      %748 = vmatprep.subr.mxu0 0.0
      %749 = vmatpush1.msra.mxu0 0.0
      %750 = vmatprep.subr.mxu0 0.0
      %751 = vmatpush1.msra.mxu0 0.0
      %752 = vmatprep.subr.mxu0 0.0
      %753 = vmatpush1.msra.mxu0 0.0
      %754 = vmatprep.subr.mxu0 0.0
      %755 = vmatpush1.msra.mxu0 0.0
      %756 = vmatprep.subr.mxu0 0.0
      %757 = vmatpush1.msra.mxu0 0.0
      %758 = vmatprep.subr.mxu0 0.0
      %759 = vmatpush1.msra.mxu0 0.0
      %760 = vmatprep.subr.mxu0 0.0
      %761 = vmatpush1.msra.mxu0 0.0
      %762 = vmatprep.subr.mxu0 0.0
      %763 = vmatpush1.msra.mxu0 0.0
      %764 = vmatprep.subr.mxu0 0.0
      %765 = vmatpush1.msra.mxu0 0.0
      %766 = vmatprep.subr.mxu0 0.0
      %767 = vmatpush1.msra.mxu0 0.0
      %768 = vmatprep.subr.mxu0 0.0
      %769 = vmatpush1.msra.mxu0 0.0
      %770 = vmatprep.subr.mxu0 0.0
      %771 = vmatpush1.msra.mxu0 0.0
      %772 = vmatprep.subr.mxu0 0.0
      %773 = vmatpush1.msra.mxu0 0.0
      %774 = vmatprep.subr.mxu0 0.0
      %775 = vmatpush1.msra.mxu0 0.0
      %776 = vmatprep.subr.mxu0 0.0
      %777 = vmatpush1.msra.mxu0 0.0
      %778 = vmatprep.subr.mxu0 0.0
      %779 = vmatpush1.msra.mxu0 0.0
      %780 = vmatprep.subr.mxu0 0.0
      %781 = vmatpush1.msra.mxu0 0.0
      %782 = vmatprep.subr.mxu0 0.0
      %783 = vmatpush1.msra.mxu0 0.0
      %784 = vmatprep.subr.mxu0 0.0
      %785 = vmatpush1.msra.mxu0 0.0
      %786 = vmatprep.subr.mxu0 0.0
      %787 = vmatpush1.msra.mxu0 0.0
      %788 = vmatprep.subr.mxu0 0.0
      %789 = vmatpush1.msra.mxu0 0.0
      %790 = vmatprep.subr.mxu0 0.0
      %791 = vmatpush1.msra.mxu0 0.0
      %792 = vmatprep.subr.mxu0 0.0
      %793 = vmatpush1.msra.mxu0 0.0
      %794 = vmatprep.mubr.f32.mxu0 0.0
      %795 = vmatmul.mubr.f32.gmra.mrb[0].mxu0 %v728
      %v796 = vpop.f32.mrb[0].mxu0
      %v797 = vadd.f32 0.0, %v796
      %v798 = vpop.f32.mrb[0].mxu0
      %799 = vdwg.mxu0
      %800 = vrot.lane.b32.xlu0 %v591, 112
      %v801 = vpop.permute.xlu0 %800
      %802 = vrot.lane.b32.xlu0 %v593, 112
      %v803 = vpop.permute.xlu0 %802
      %v804 = vsel %vm637, %v801, 0
      %v806 = vsel %vm637, %v803, 0
      %808 = vmatprep.subr.mxu0 0.0
      %809 = vmatpush1.xpose.msra.mxu0 %v806
      %810 = vmatprep.subr.mxu0 0.0
      %811 = vmatpush1.xpose.msra.mxu0 0.0
      %812 = vmatprep.subr.mxu0 0.0
      %813 = vmatpush1.xpose.msra.mxu0 0.0
      %814 = vmatprep.subr.mxu0 0.0
      %815 = vmatpush1.xpose.msra.mxu0 0.0
      %816 = vmatprep.subr.mxu0 0.0
      %817 = vmatpush1.xpose.msra.mxu0 0.0
      %818 = vmatprep.subr.mxu0 0.0
      %819 = vmatpush1.xpose.msra.mxu0 0.0
      %820 = vmatprep.subr.mxu0 0.0
      %821 = vmatpush1.xpose.msra.mxu0 0.0
      %822 = vmatprep.subr.mxu0 0.0
      %823 = vmatpush1.xpose.msra.mxu0 0.0
      %824 = vmatprep.subr.mxu0 0.0
      %825 = vmatpush1.xpose.msra.mxu0 0.0
      %826 = vmatprep.subr.mxu0 0.0
      %827 = vmatpush1.xpose.msra.mxu0 0.0
      %828 = vmatprep.subr.mxu0 0.0
      %829 = vmatpush1.xpose.msra.mxu0 0.0
      %830 = vmatprep.subr.mxu0 0.0
      %831 = vmatpush1.xpose.msra.mxu0 0.0
      %832 = vmatprep.subr.mxu0 0.0
      %833 = vmatpush1.xpose.msra.mxu0 0.0
      %834 = vmatprep.subr.mxu0 0.0
      %835 = vmatpush1.xpose.msra.mxu0 0.0
      %836 = vmatprep.subr.mxu0 0.0
      %837 = vmatpush1.xpose.msra.mxu0 0.0
      %838 = vmatprep.subr.mxu0 0.0
      %839 = vmatpush1.xpose.msra.mxu0 0.0
      %840 = vmatprep.subr.mxu0 0.0
      %841 = vmatpush1.xpose.msra.mxu0 0.0
      %842 = vmatprep.subr.mxu0 0.0
      %843 = vmatpush1.xpose.msra.mxu0 0.0
      %844 = vmatprep.subr.mxu0 0.0
      %845 = vmatpush1.xpose.msra.mxu0 0.0
      %846 = vmatprep.subr.mxu0 0.0
      %847 = vmatpush1.xpose.msra.mxu0 0.0
      %848 = vmatprep.subr.mxu0 0.0
      %849 = vmatpush1.xpose.msra.mxu0 0.0
      %850 = vmatprep.subr.mxu0 0.0
      %851 = vmatpush1.xpose.msra.mxu0 0.0
      %852 = vmatprep.subr.mxu0 0.0
      %853 = vmatpush1.xpose.msra.mxu0 0.0
      %854 = vmatprep.subr.mxu0 0.0
      %855 = vmatpush1.xpose.msra.mxu0 0.0
      %856 = vmatprep.subr.mxu0 0.0
      %857 = vmatpush1.xpose.msra.mxu0 0.0
      %858 = vmatprep.subr.mxu0 0.0
      %859 = vmatpush1.xpose.msra.mxu0 0.0
      %860 = vmatprep.subr.mxu0 0.0
      %861 = vmatpush1.xpose.msra.mxu0 0.0
      %862 = vmatprep.subr.mxu0 0.0
      %863 = vmatpush1.xpose.msra.mxu0 0.0
      %864 = vmatprep.subr.mxu0 0.0
      %865 = vmatpush1.xpose.msra.mxu0 0.0
      %866 = vmatprep.subr.mxu0 0.0
      %867 = vmatpush1.xpose.msra.mxu0 0.0
      %868 = vmatprep.subr.mxu0 0.0
      %869 = vmatpush1.xpose.msra.mxu0 0.0
      %870 = vmatprep.subr.mxu0 0.0
      %871 = vmatpush1.xpose.msra.mxu0 0.0
      %872 = vmatprep.mubr.f32.mxu0 0.0
      %873 = vmatmul.mubr.f32.gmra.mrb[0].mxu0 %v804
      %v874 = vpop.f32.mrb[0].mxu0
      %v875 = vadd.f32 0.0, %v874
      %v876 = vpop.f32.mrb[0].mxu0
      %877 = vdwg.mxu0
      %v878 = vmul.f32 %v875, 0.25
      %v879 = vsel %vm715, %v878, -inf
      %880 = vmax.xlane.f32.xlu0 %v879
      %v881 = vpop.xlane.xlu0 %880
      %v882 = vsub.f32 %v878, %v881
      %v883 = vmul.f32 %v882, 1.442695
      %v884 = vpow.pop %v883
      %v885 = vsel %vm715, %v884, 0.0
      %886 = vadd.xlane.f32.xlu0 %v885
      %v887 = vpop.xlane.xlu0 %886
      %v888 = vrcp.pop %v887
      %v889 = vmul.f32 %v884, %v888
      %891 = vrot.lane.b32.xlu0 %v632, 112
      %v892 = vpop.permute.xlu0 %891
      %v895 = vsel %vm715, %v889, 0
      %897 = vmatprep.subr.mxu0 0.0
      %898 = vmatpush1.msra.mxu0 %v892
      %899 = vmatprep.subr.mxu0 0.0
      %900 = vmatpush1.msra.mxu0 0.0
      %901 = vmatprep.subr.mxu0 0.0
      %902 = vmatpush1.msra.mxu0 0.0
      %903 = vmatprep.subr.mxu0 0.0
      %904 = vmatpush1.msra.mxu0 0.0
      %905 = vmatprep.subr.mxu0 0.0
      %906 = vmatpush1.msra.mxu0 0.0
      %907 = vmatprep.subr.mxu0 0.0
      %908 = vmatpush1.msra.mxu0 0.0
      %909 = vmatprep.subr.mxu0 0.0
      %910 = vmatpush1.msra.mxu0 0.0
      %911 = vmatprep.subr.mxu0 0.0
      %912 = vmatpush1.msra.mxu0 0.0
      %913 = vmatprep.subr.mxu0 0.0
      %914 = vmatpush1.msra.mxu0 0.0
      %915 = vmatprep.subr.mxu0 0.0
      %916 = vmatpush1.msra.mxu0 0.0
      %917 = vmatprep.subr.mxu0 0.0
      %918 = vmatpush1.msra.mxu0 0.0
      %919 = vmatprep.subr.mxu0 0.0
      %920 = vmatpush1.msra.mxu0 0.0
      %921 = vmatprep.subr.mxu0 0.0
      %922 = vmatpush1.msra.mxu0 0.0
      %923 = vmatprep.subr.mxu0 0.0
      %924 = vmatpush1.msra.mxu0 0.0
      %925 = vmatprep.subr.mxu0 0.0
      %926 = vmatpush1.msra.mxu0 0.0
      %927 = vmatprep.subr.mxu0 0.0
      %928 = vmatpush1.msra.mxu0 0.0
      %929 = vmatprep.subr.mxu0 0.0
      %930 = vmatpush1.msra.mxu0 0.0
      %931 = vmatprep.subr.mxu0 0.0
      %932 = vmatpush1.msra.mxu0 0.0
      %933 = vmatprep.subr.mxu0 0.0
      %934 = vmatpush1.msra.mxu0 0.0
      %935 = vmatprep.subr.mxu0 0.0
      %936 = vmatpush1.msra.mxu0 0.0
      %937 = vmatprep.subr.mxu0 0.0
      %938 = vmatpush1.msra.mxu0 0.0
      %939 = vmatprep.subr.mxu0 0.0
      %940 = vmatpush1.msra.mxu0 0.0
      %941 = vmatprep.subr.mxu0 0.0
      %942 = vmatpush1.msra.mxu0 0.0
      %943 = vmatprep.subr.mxu0 0.0
      %944 = vmatpush1.msra.mxu0 0.0
      %945 = vmatprep.subr.mxu0 0.0
      %946 = vmatpush1.msra.mxu0 0.0
      %947 = vmatprep.subr.mxu0 0.0
      %948 = vmatpush1.msra.mxu0 0.0
      %949 = vmatprep.subr.mxu0 0.0
      %950 = vmatpush1.msra.mxu0 0.0
      %951 = vmatprep.subr.mxu0 0.0
      %952 = vmatpush1.msra.mxu0 0.0
      %953 = vmatprep.subr.mxu0 0.0
      %954 = vmatpush1.msra.mxu0 0.0
      %955 = vmatprep.subr.mxu0 0.0
      %956 = vmatpush1.msra.mxu0 0.0
      %957 = vmatprep.subr.mxu0 0.0
      %958 = vmatpush1.msra.mxu0 0.0
      %959 = vmatprep.subr.mxu0 0.0
      %960 = vmatpush1.msra.mxu0 0.0
      %961 = vmatprep.mubr.f32.mxu0 0.0
      %962 = vmatmul.mubr.f32.gmra.mrb[0].mxu0 %v895
      %v963 = vpop.f32.mrb[0].mxu0
      %v964 = vadd.f32 0.0, %v963
      %v965 = vpop.f32.mrb[0].mxu0
      %966 = vdwg.mxu0
      %967 = vrot.lane.b32.xlu0 %v591, 96
      %v968 = vpop.permute.xlu0 %967
      %969 = vrot.lane.b32.xlu0 %v593, 96
      %v970 = vpop.permute.xlu0 %969
      %v971 = vsel %vm637, %v968, 0
      %v973 = vsel %vm637, %v970, 0
      %975 = vmatprep.subr.mxu0 0.0
      %976 = vmatpush1.xpose.msra.mxu0 %v973
      %977 = vmatprep.subr.mxu0 0.0
      %978 = vmatpush1.xpose.msra.mxu0 0.0
      %979 = vmatprep.subr.mxu0 0.0
      %980 = vmatpush1.xpose.msra.mxu0 0.0
      %981 = vmatprep.subr.mxu0 0.0
      %982 = vmatpush1.xpose.msra.mxu0 0.0
      %983 = vmatprep.subr.mxu0 0.0
      %984 = vmatpush1.xpose.msra.mxu0 0.0
      %985 = vmatprep.subr.mxu0 0.0
      %986 = vmatpush1.xpose.msra.mxu0 0.0
      %987 = vmatprep.subr.mxu0 0.0
      %988 = vmatpush1.xpose.msra.mxu0 0.0
      %989 = vmatprep.subr.mxu0 0.0
      %990 = vmatpush1.xpose.msra.mxu0 0.0
      %991 = vmatprep.subr.mxu0 0.0
      %992 = vmatpush1.xpose.msra.mxu0 0.0
      %993 = vmatprep.subr.mxu0 0.0
      %994 = vmatpush1.xpose.msra.mxu0 0.0
      %995 = vmatprep.subr.mxu0 0.0
      %996 = vmatpush1.xpose.msra.mxu0 0.0
      %997 = vmatprep.subr.mxu0 0.0
      %998 = vmatpush1.xpose.msra.mxu0 0.0
      %999 = vmatprep.subr.mxu0 0.0
      %1000 = vmatpush1.xpose.msra.mxu0 0.0
      %1001 = vmatprep.subr.mxu0 0.0
      %1002 = vmatpush1.xpose.msra.mxu0 0.0
      %1003 = vmatprep.subr.mxu0 0.0
      %1004 = vmatpush1.xpose.msra.mxu0 0.0
      %1005 = vmatprep.subr.mxu0 0.0
      %1006 = vmatpush1.xpose.msra.mxu0 0.0
      %1007 = vmatprep.subr.mxu0 0.0
      %1008 = vmatpush1.xpose.msra.mxu0 0.0
      %1009 = vmatprep.subr.mxu0 0.0
      %1010 = vmatpush1.xpose.msra.mxu0 0.0
      %1011 = vmatprep.subr.mxu0 0.0
      %1012 = vmatpush1.xpose.msra.mxu0 0.0
      %1013 = vmatprep.subr.mxu0 0.0
      %1014 = vmatpush1.xpose.msra.mxu0 0.0
      %1015 = vmatprep.subr.mxu0 0.0
      %1016 = vmatpush1.xpose.msra.mxu0 0.0
      %1017 = vmatprep.subr.mxu0 0.0
      %1018 = vmatpush1.xpose.msra.mxu0 0.0
      %1019 = vmatprep.subr.mxu0 0.0
      %1020 = vmatpush1.xpose.msra.mxu0 0.0
      %1021 = vmatprep.subr.mxu0 0.0
      %1022 = vmatpush1.xpose.msra.mxu0 0.0
      %1023 = vmatprep.subr.mxu0 0.0
      %1024 = vmatpush1.xpose.msra.mxu0 0.0
      %1025 = vmatprep.subr.mxu0 0.0
      %1026 = vmatpush1.xpose.msra.mxu0 0.0
      %1027 = vmatprep.subr.mxu0 0.0
      %1028 = vmatpush1.xpose.msra.mxu0 0.0
      %1029 = vmatprep.subr.mxu0 0.0
      %1030 = vmatpush1.xpose.msra.mxu0 0.0
      %1031 = vmatprep.subr.mxu0 0.0
      %1032 = vmatpush1.xpose.msra.mxu0 0.0
      %1033 = vmatprep.subr.mxu0 0.0
      %1034 = vmatpush1.xpose.msra.mxu0 0.0
      %1035 = vmatprep.subr.mxu0 0.0
      %1036 = vmatpush1.xpose.msra.mxu0 0.0
      %1037 = vmatprep.subr.mxu0 0.0
      %1038 = vmatpush1.xpose.msra.mxu0 0.0
      %1039 = vmatprep.mubr.f32.mxu0 0.0
      %1040 = vmatmul.mubr.f32.gmra.mrb[0].mxu0 %v971
      %v1041 = vpop.f32.mrb[0].mxu0
      %v1042 = vadd.f32 0.0, %v1041
      %v1043 = vpop.f32.mrb[0].mxu0
      %1044 = vdwg.mxu0
      %v1045 = vmul.f32 %v1042, 0.25
      %v1046 = vsel %vm715, %v1045, -inf
      %1047 = vmax.xlane.f32.xlu0 %v1046
      %v1048 = vpop.xlane.xlu0 %1047
      %v1049 = vsub.f32 %v1045, %v1048
      %v1050 = vmul.f32 %v1049, 1.442695
      %v1051 = vpow.pop %v1050
      %v1052 = vsel %vm715, %v1051, 0.0
      %1053 = vadd.xlane.f32.xlu0 %v1052
      %v1054 = vpop.xlane.xlu0 %1053
      %v1055 = vrcp.pop %v1054
      %v1056 = vmul.f32 %v1051, %v1055
      %1057 = vrot.lane.b32.xlu0 %v632, 96
      %v1058 = vpop.permute.xlu0 %1057
      %v1061 = vsel %vm715, %v1056, 0
      %1063 = vmatprep.subr.mxu0 0.0
      %1064 = vmatpush1.msra.mxu0 %v1058
      %1065 = vmatprep.subr.mxu0 0.0
      %1066 = vmatpush1.msra.mxu0 0.0
      %1067 = vmatprep.subr.mxu0 0.0
      %1068 = vmatpush1.msra.mxu0 0.0
      %1069 = vmatprep.subr.mxu0 0.0
      %1070 = vmatpush1.msra.mxu0 0.0
      %1071 = vmatprep.subr.mxu0 0.0
      %1072 = vmatpush1.msra.mxu0 0.0
      %1073 = vmatprep.subr.mxu0 0.0
      %1074 = vmatpush1.msra.mxu0 0.0
      %1075 = vmatprep.subr.mxu0 0.0
      %1076 = vmatpush1.msra.mxu0 0.0
      %1077 = vmatprep.subr.mxu0 0.0
      %1078 = vmatpush1.msra.mxu0 0.0
      %1079 = vmatprep.subr.mxu0 0.0
      %1080 = vmatpush1.msra.mxu0 0.0
      %1081 = vmatprep.subr.mxu0 0.0
      %1082 = vmatpush1.msra.mxu0 0.0
      %1083 = vmatprep.subr.mxu0 0.0
      %1084 = vmatpush1.msra.mxu0 0.0
      %1085 = vmatprep.subr.mxu0 0.0
      %1086 = vmatpush1.msra.mxu0 0.0
      %1087 = vmatprep.subr.mxu0 0.0
      %1088 = vmatpush1.msra.mxu0 0.0
      %1089 = vmatprep.subr.mxu0 0.0
      %1090 = vmatpush1.msra.mxu0 0.0
      %1091 = vmatprep.subr.mxu0 0.0
      %1092 = vmatpush1.msra.mxu0 0.0
      %1093 = vmatprep.subr.mxu0 0.0
      %1094 = vmatpush1.msra.mxu0 0.0
      %1095 = vmatprep.subr.mxu0 0.0
      %1096 = vmatpush1.msra.mxu0 0.0
      %1097 = vmatprep.subr.mxu0 0.0
      %1098 = vmatpush1.msra.mxu0 0.0
      %1099 = vmatprep.subr.mxu0 0.0
      %1100 = vmatpush1.msra.mxu0 0.0
      %1101 = vmatprep.subr.mxu0 0.0
      %1102 = vmatpush1.msra.mxu0 0.0
      %1103 = vmatprep.subr.mxu0 0.0
      %1104 = vmatpush1.msra.mxu0 0.0
      %1105 = vmatprep.subr.mxu0 0.0
      %1106 = vmatpush1.msra.mxu0 0.0
      %1107 = vmatprep.subr.mxu0 0.0
      %1108 = vmatpush1.msra.mxu0 0.0
      %1109 = vmatprep.subr.mxu0 0.0
      %1110 = vmatpush1.msra.mxu0 0.0
      %1111 = vmatprep.subr.mxu0 0.0
      %1112 = vmatpush1.msra.mxu0 0.0
      %1113 = vmatprep.subr.mxu0 0.0
      %1114 = vmatpush1.msra.mxu0 0.0
      %1115 = vmatprep.subr.mxu0 0.0
      %1116 = vmatpush1.msra.mxu0 0.0
      %1117 = vmatprep.subr.mxu0 0.0
      %1118 = vmatpush1.msra.mxu0 0.0
      %1119 = vmatprep.subr.mxu0 0.0
      %1120 = vmatpush1.msra.mxu0 0.0
      %1121 = vmatprep.subr.mxu0 0.0
      %1122 = vmatpush1.msra.mxu0 0.0
      %1123 = vmatprep.subr.mxu0 0.0
      %1124 = vmatpush1.msra.mxu0 0.0
      %1125 = vmatprep.subr.mxu0 0.0
      %1126 = vmatpush1.msra.mxu0 0.0
      %1127 = vmatprep.mubr.f32.mxu0 0.0
      %1128 = vmatmul.mubr.f32.gmra.mrb[0].mxu0 %v1061
      %v1129 = vpop.f32.mrb[0].mxu0
      %v1130 = vadd.f32 0.0, %v1129
      %v1131 = vpop.f32.mrb[0].mxu0
      %1132 = vdwg.mxu0
      %1133 = vrot.lane.b32.xlu0 %v591, 80
      %v1134 = vpop.permute.xlu0 %1133
      %1135 = vrot.lane.b32.xlu0 %v593, 80
      %v1136 = vpop.permute.xlu0 %1135
      %v1137 = vsel %vm637, %v1134, 0
      %v1139 = vsel %vm637, %v1136, 0
      %1141 = vmatprep.subr.mxu0 0.0
      %1142 = vmatpush1.xpose.msra.mxu0 %v1139
      %1143 = vmatprep.subr.mxu0 0.0
      %1144 = vmatpush1.xpose.msra.mxu0 0.0
      %1145 = vmatprep.subr.mxu0 0.0
      %1146 = vmatpush1.xpose.msra.mxu0 0.0
      %1147 = vmatprep.subr.mxu0 0.0
      %1148 = vmatpush1.xpose.msra.mxu0 0.0
      %1149 = vmatprep.subr.mxu0 0.0
      %1150 = vmatpush1.xpose.msra.mxu0 0.0
      %1151 = vmatprep.subr.mxu0 0.0
      %1152 = vmatpush1.xpose.msra.mxu0 0.0
      %1153 = vmatprep.subr.mxu0 0.0
      %1154 = vmatpush1.xpose.msra.mxu0 0.0
      %1155 = vmatprep.subr.mxu0 0.0
      %1156 = vmatpush1.xpose.msra.mxu0 0.0
      %1157 = vmatprep.subr.mxu0 0.0
      %1158 = vmatpush1.xpose.msra.mxu0 0.0
      %1159 = vmatprep.subr.mxu0 0.0
      %1160 = vmatpush1.xpose.msra.mxu0 0.0
      %1161 = vmatprep.subr.mxu0 0.0
      %1162 = vmatpush1.xpose.msra.mxu0 0.0
      %1163 = vmatprep.subr.mxu0 0.0
      %1164 = vmatpush1.xpose.msra.mxu0 0.0
      %1165 = vmatprep.subr.mxu0 0.0
      %1166 = vmatpush1.xpose.msra.mxu0 0.0
      %1167 = vmatprep.subr.mxu0 0.0
      %1168 = vmatpush1.xpose.msra.mxu0 0.0
      %1169 = vmatprep.subr.mxu0 0.0
      %1170 = vmatpush1.xpose.msra.mxu0 0.0
      %1171 = vmatprep.subr.mxu0 0.0
      %1172 = vmatpush1.xpose.msra.mxu0 0.0
      %1173 = vmatprep.subr.mxu0 0.0
      %1174 = vmatpush1.xpose.msra.mxu0 0.0
      %1175 = vmatprep.subr.mxu0 0.0
      %1176 = vmatpush1.xpose.msra.mxu0 0.0
      %1177 = vmatprep.subr.mxu0 0.0
      %1178 = vmatpush1.xpose.msra.mxu0 0.0
      %1179 = vmatprep.subr.mxu0 0.0
      %1180 = vmatpush1.xpose.msra.mxu0 0.0
      %1181 = vmatprep.subr.mxu0 0.0
      %1182 = vmatpush1.xpose.msra.mxu0 0.0
      %1183 = vmatprep.subr.mxu0 0.0
      %1184 = vmatpush1.xpose.msra.mxu0 0.0
      %1185 = vmatprep.subr.mxu0 0.0
      %1186 = vmatpush1.xpose.msra.mxu0 0.0
      %1187 = vmatprep.subr.mxu0 0.0
      %1188 = vmatpush1.xpose.msra.mxu0 0.0
      %1189 = vmatprep.subr.mxu0 0.0
      %1190 = vmatpush1.xpose.msra.mxu0 0.0
      %1191 = vmatprep.subr.mxu0 0.0
      %1192 = vmatpush1.xpose.msra.mxu0 0.0
      %1193 = vmatprep.subr.mxu0 0.0
      %1194 = vmatpush1.xpose.msra.mxu0 0.0
      %1195 = vmatprep.subr.mxu0 0.0
      %1196 = vmatpush1.xpose.msra.mxu0 0.0
      %1197 = vmatprep.subr.mxu0 0.0
      %1198 = vmatpush1.xpose.msra.mxu0 0.0
      %1199 = vmatprep.subr.mxu0 0.0
      %1200 = vmatpush1.xpose.msra.mxu0 0.0
      %1201 = vmatprep.subr.mxu0 0.0
      %1202 = vmatpush1.xpose.msra.mxu0 0.0
      %1203 = vmatprep.subr.mxu0 0.0
      %1204 = vmatpush1.xpose.msra.mxu0 0.0
      %1205 = vmatprep.mubr.f32.mxu0 0.0
      %1206 = vmatmul.mubr.f32.gmra.mrb[0].mxu0 %v1137
      %v1207 = vpop.f32.mrb[0].mxu0
      %v1208 = vadd.f32 0.0, %v1207
      %v1209 = vpop.f32.mrb[0].mxu0
      %1210 = vdwg.mxu0
      %v1211 = vmul.f32 %v1208, 0.25
      %v1212 = vsel %vm715, %v1211, -inf
      %1213 = vmax.xlane.f32.xlu0 %v1212
      %v1214 = vpop.xlane.xlu0 %1213
      %v1215 = vsub.f32 %v1211, %v1214
      %v1216 = vmul.f32 %v1215, 1.442695
      %v1217 = vpow.pop %v1216
      %v1218 = vsel %vm715, %v1217, 0.0
      %1219 = vadd.xlane.f32.xlu0 %v1218
      %v1220 = vpop.xlane.xlu0 %1219
      %v1221 = vrcp.pop %v1220
      %v1222 = vmul.f32 %v1217, %v1221
      %1223 = vrot.lane.b32.xlu0 %v632, 80
      %v1224 = vpop.permute.xlu0 %1223
      %v1227 = vsel %vm715, %v1222, 0
      %1229 = vmatprep.subr.mxu0 0.0
      %1230 = vmatpush1.msra.mxu0 %v1224
      %1231 = vmatprep.subr.mxu0 0.0
      %1232 = vmatpush1.msra.mxu0 0.0
      %1233 = vmatprep.subr.mxu0 0.0
      %1234 = vmatpush1.msra.mxu0 0.0
      %1235 = vmatprep.subr.mxu0 0.0
      %1236 = vmatpush1.msra.mxu0 0.0
      %1237 = vmatprep.subr.mxu0 0.0
      %1238 = vmatpush1.msra.mxu0 0.0
      %1239 = vmatprep.subr.mxu0 0.0
      %1240 = vmatpush1.msra.mxu0 0.0
      %1241 = vmatprep.subr.mxu0 0.0
      %1242 = vmatpush1.msra.mxu0 0.0
      %1243 = vmatprep.subr.mxu0 0.0
      %1244 = vmatpush1.msra.mxu0 0.0
      %1245 = vmatprep.subr.mxu0 0.0
      %1246 = vmatpush1.msra.mxu0 0.0
      %1247 = vmatprep.subr.mxu0 0.0
      %1248 = vmatpush1.msra.mxu0 0.0
      %1249 = vmatprep.subr.mxu0 0.0
      %1250 = vmatpush1.msra.mxu0 0.0
      %1251 = vmatprep.subr.mxu0 0.0
      %1252 = vmatpush1.msra.mxu0 0.0
      %1253 = vmatprep.subr.mxu0 0.0
      %1254 = vmatpush1.msra.mxu0 0.0
      %1255 = vmatprep.subr.mxu0 0.0
      %1256 = vmatpush1.msra.mxu0 0.0
      %1257 = vmatprep.subr.mxu0 0.0
      %1258 = vmatpush1.msra.mxu0 0.0
      %1259 = vmatprep.subr.mxu0 0.0
      %1260 = vmatpush1.msra.mxu0 0.0
      %1261 = vmatprep.subr.mxu0 0.0
      %1262 = vmatpush1.msra.mxu0 0.0
      %1263 = vmatprep.subr.mxu0 0.0
      %1264 = vmatpush1.msra.mxu0 0.0
      %1265 = vmatprep.subr.mxu0 0.0
      %1266 = vmatpush1.msra.mxu0 0.0
      %1267 = vmatprep.subr.mxu0 0.0
      %1268 = vmatpush1.msra.mxu0 0.0
      %1269 = vmatprep.subr.mxu0 0.0
      %1270 = vmatpush1.msra.mxu0 0.0
      %1271 = vmatprep.subr.mxu0 0.0
      %1272 = vmatpush1.msra.mxu0 0.0
      %1273 = vmatprep.subr.mxu0 0.0
      %1274 = vmatpush1.msra.mxu0 0.0
      %1275 = vmatprep.subr.mxu0 0.0
      %1276 = vmatpush1.msra.mxu0 0.0
      %1277 = vmatprep.subr.mxu0 0.0
      %1278 = vmatpush1.msra.mxu0 0.0
      %1279 = vmatprep.subr.mxu0 0.0
      %1280 = vmatpush1.msra.mxu0 0.0
      %1281 = vmatprep.subr.mxu0 0.0
      %1282 = vmatpush1.msra.mxu0 0.0
      %1283 = vmatprep.subr.mxu0 0.0
      %1284 = vmatpush1.msra.mxu0 0.0
      %1285 = vmatprep.subr.mxu0 0.0
      %1286 = vmatpush1.msra.mxu0 0.0
      %1287 = vmatprep.subr.mxu0 0.0
      %1288 = vmatpush1.msra.mxu0 0.0
      %1289 = vmatprep.subr.mxu0 0.0
      %1290 = vmatpush1.msra.mxu0 0.0
      %1291 = vmatprep.subr.mxu0 0.0
      %1292 = vmatpush1.msra.mxu0 0.0
      %1293 = vmatprep.mubr.f32.mxu0 0.0
      %1294 = vmatmul.mubr.f32.gmra.mrb[0].mxu0 %v1227
      %v1295 = vpop.f32.mrb[0].mxu0
      %v1296 = vadd.f32 0.0, %v1295
      %v1297 = vpop.f32.mrb[0].mxu0
      %1298 = vdwg.mxu0
      %1299 = vrot.lane.b32.xlu0 %v591, 64
      %v1300 = vpop.permute.xlu0 %1299
      %1301 = vrot.lane.b32.xlu0 %v593, 64
      %v1302 = vpop.permute.xlu0 %1301
      %v1303 = vsel %vm637, %v1300, 0
      %v1305 = vsel %vm637, %v1302, 0
      %1307 = vmatprep.subr.mxu0 0.0
      %1308 = vmatpush1.xpose.msra.mxu0 %v1305
      %1309 = vmatprep.subr.mxu0 0.0
      %1310 = vmatpush1.xpose.msra.mxu0 0.0
      %1311 = vmatprep.subr.mxu0 0.0
      %1312 = vmatpush1.xpose.msra.mxu0 0.0
      %1313 = vmatprep.subr.mxu0 0.0
      %1314 = vmatpush1.xpose.msra.mxu0 0.0
      %1315 = vmatprep.subr.mxu0 0.0
      %1316 = vmatpush1.xpose.msra.mxu0 0.0
      %1317 = vmatprep.subr.mxu0 0.0
      %1318 = vmatpush1.xpose.msra.mxu0 0.0
      %1319 = vmatprep.subr.mxu0 0.0
      %1320 = vmatpush1.xpose.msra.mxu0 0.0
      %1321 = vmatprep.subr.mxu0 0.0
      %1322 = vmatpush1.xpose.msra.mxu0 0.0
      %1323 = vmatprep.subr.mxu0 0.0
      %1324 = vmatpush1.xpose.msra.mxu0 0.0
      %1325 = vmatprep.subr.mxu0 0.0
      %1326 = vmatpush1.xpose.msra.mxu0 0.0
      %1327 = vmatprep.subr.mxu0 0.0
      %1328 = vmatpush1.xpose.msra.mxu0 0.0
      %1329 = vmatprep.subr.mxu0 0.0
      %1330 = vmatpush1.xpose.msra.mxu0 0.0
      %1331 = vmatprep.subr.mxu0 0.0
      %1332 = vmatpush1.xpose.msra.mxu0 0.0
      %1333 = vmatprep.subr.mxu0 0.0
      %1334 = vmatpush1.xpose.msra.mxu0 0.0
      %1335 = vmatprep.subr.mxu0 0.0
      %1336 = vmatpush1.xpose.msra.mxu0 0.0
      %1337 = vmatprep.subr.mxu0 0.0
      %1338 = vmatpush1.xpose.msra.mxu0 0.0
      %1339 = vmatprep.subr.mxu0 0.0
      %1340 = vmatpush1.xpose.msra.mxu0 0.0
      %1341 = vmatprep.subr.mxu0 0.0
      %1342 = vmatpush1.xpose.msra.mxu0 0.0
      %1343 = vmatprep.subr.mxu0 0.0
      %1344 = vmatpush1.xpose.msra.mxu0 0.0
      %1345 = vmatprep.subr.mxu0 0.0
      %1346 = vmatpush1.xpose.msra.mxu0 0.0
      %1347 = vmatprep.subr.mxu0 0.0
      %1348 = vmatpush1.xpose.msra.mxu0 0.0
      %1349 = vmatprep.subr.mxu0 0.0
      %1350 = vmatpush1.xpose.msra.mxu0 0.0
      %1351 = vmatprep.subr.mxu0 0.0
      %1352 = vmatpush1.xpose.msra.mxu0 0.0
      %1353 = vmatprep.subr.mxu0 0.0
      %1354 = vmatpush1.xpose.msra.mxu0 0.0
      %1355 = vmatprep.subr.mxu0 0.0
      %1356 = vmatpush1.xpose.msra.mxu0 0.0
      %1357 = vmatprep.subr.mxu0 0.0
      %1358 = vmatpush1.xpose.msra.mxu0 0.0
      %1359 = vmatprep.subr.mxu0 0.0
      %1360 = vmatpush1.xpose.msra.mxu0 0.0
      %1361 = vmatprep.subr.mxu0 0.0
      %1362 = vmatpush1.xpose.msra.mxu0 0.0
      %1363 = vmatprep.subr.mxu0 0.0
      %1364 = vmatpush1.xpose.msra.mxu0 0.0
      %1365 = vmatprep.subr.mxu0 0.0
      %1366 = vmatpush1.xpose.msra.mxu0 0.0
      %1367 = vmatprep.subr.mxu0 0.0
      %1368 = vmatpush1.xpose.msra.mxu0 0.0
      %1369 = vmatprep.subr.mxu0 0.0
      %1370 = vmatpush1.xpose.msra.mxu0 0.0
      %1371 = vmatprep.mubr.f32.mxu0 0.0
      %1372 = vmatmul.mubr.f32.gmra.mrb[0].mxu0 %v1303
      %v1373 = vpop.f32.mrb[0].mxu0
      %v1374 = vadd.f32 0.0, %v1373
      %v1375 = vpop.f32.mrb[0].mxu0
      %1376 = vdwg.mxu0
      %v1377 = vmul.f32 %v1374, 0.25
      %v1378 = vsel %vm715, %v1377, -inf
      %1379 = vmax.xlane.f32.xlu0 %v1378
      %v1380 = vpop.xlane.xlu0 %1379
      %v1381 = vsub.f32 %v1377, %v1380
      %v1382 = vmul.f32 %v1381, 1.442695
      %v1383 = vpow.pop %v1382
      %v1384 = vsel %vm715, %v1383, 0.0
      %1385 = vadd.xlane.f32.xlu0 %v1384
      %v1386 = vpop.xlane.xlu0 %1385
      %v1387 = vrcp.pop %v1386
      %v1388 = vmul.f32 %v1383, %v1387
      %1389 = vrot.lane.b32.xlu0 %v632, 64
      %v1390 = vpop.permute.xlu0 %1389
      %v1393 = vsel %vm715, %v1388, 0
      %1395 = vmatprep.subr.mxu0 0.0
      %1396 = vmatpush1.msra.mxu0 %v1390
      %1397 = vmatprep.subr.mxu0 0.0
      %1398 = vmatpush1.msra.mxu0 0.0
      %1399 = vmatprep.subr.mxu0 0.0
      %1400 = vmatpush1.msra.mxu0 0.0
      %1401 = vmatprep.subr.mxu0 0.0
      %1402 = vmatpush1.msra.mxu0 0.0
      %1403 = vmatprep.subr.mxu0 0.0
      %1404 = vmatpush1.msra.mxu0 0.0
      %1405 = vmatprep.subr.mxu0 0.0
      %1406 = vmatpush1.msra.mxu0 0.0
      %1407 = vmatprep.subr.mxu0 0.0
      %1408 = vmatpush1.msra.mxu0 0.0
      %1409 = vmatprep.subr.mxu0 0.0
      %1410 = vmatpush1.msra.mxu0 0.0
      %1411 = vmatprep.subr.mxu0 0.0
      %1412 = vmatpush1.msra.mxu0 0.0
      %1413 = vmatprep.subr.mxu0 0.0
      %1414 = vmatpush1.msra.mxu0 0.0
      %1415 = vmatprep.subr.mxu0 0.0
      %1416 = vmatpush1.msra.mxu0 0.0
      %1417 = vmatprep.subr.mxu0 0.0
      %1418 = vmatpush1.msra.mxu0 0.0
      %1419 = vmatprep.subr.mxu0 0.0
      %1420 = vmatpush1.msra.mxu0 0.0
      %1421 = vmatprep.subr.mxu0 0.0
      %1422 = vmatpush1.msra.mxu0 0.0
      %1423 = vmatprep.subr.mxu0 0.0
      %1424 = vmatpush1.msra.mxu0 0.0
      %1425 = vmatprep.subr.mxu0 0.0
      %1426 = vmatpush1.msra.mxu0 0.0
      %1427 = vmatprep.subr.mxu0 0.0
      %1428 = vmatpush1.msra.mxu0 0.0
      %1429 = vmatprep.subr.mxu0 0.0
      %1430 = vmatpush1.msra.mxu0 0.0
      %1431 = vmatprep.subr.mxu0 0.0
      %1432 = vmatpush1.msra.mxu0 0.0
      %1433 = vmatprep.subr.mxu0 0.0
      %1434 = vmatpush1.msra.mxu0 0.0
      %1435 = vmatprep.subr.mxu0 0.0
      %1436 = vmatpush1.msra.mxu0 0.0
      %1437 = vmatprep.subr.mxu0 0.0
      %1438 = vmatpush1.msra.mxu0 0.0
      %1439 = vmatprep.subr.mxu0 0.0
      %1440 = vmatpush1.msra.mxu0 0.0
      %1441 = vmatprep.subr.mxu0 0.0
      %1442 = vmatpush1.msra.mxu0 0.0
      %1443 = vmatprep.subr.mxu0 0.0
      %1444 = vmatpush1.msra.mxu0 0.0
      %1445 = vmatprep.subr.mxu0 0.0
      %1446 = vmatpush1.msra.mxu0 0.0
      %1447 = vmatprep.subr.mxu0 0.0
      %1448 = vmatpush1.msra.mxu0 0.0
      %1449 = vmatprep.subr.mxu0 0.0
      %1450 = vmatpush1.msra.mxu0 0.0
      %1451 = vmatprep.subr.mxu0 0.0
      %1452 = vmatpush1.msra.mxu0 0.0
      %1453 = vmatprep.subr.mxu0 0.0
      %1454 = vmatpush1.msra.mxu0 0.0
      %1455 = vmatprep.subr.mxu0 0.0
      %1456 = vmatpush1.msra.mxu0 0.0
      %1457 = vmatprep.subr.mxu0 0.0
      %1458 = vmatpush1.msra.mxu0 0.0
      %1459 = vmatprep.mubr.f32.mxu0 0.0
      %1460 = vmatmul.mubr.f32.gmra.mrb[0].mxu0 %v1393
      %v1461 = vpop.f32.mrb[0].mxu0
      %v1462 = vadd.f32 0.0, %v1461
      %v1463 = vpop.f32.mrb[0].mxu0
      %1464 = vdwg.mxu0
      %1465 = vrot.lane.b32.xlu0 %v591, 48
      %v1466 = vpop.permute.xlu0 %1465
      %1467 = vrot.lane.b32.xlu0 %v593, 48
      %v1468 = vpop.permute.xlu0 %1467
      %v1469 = vsel %vm637, %v1466, 0
      %v1471 = vsel %vm637, %v1468, 0
      %1473 = vmatprep.subr.mxu0 0.0
      %1474 = vmatpush1.xpose.msra.mxu0 %v1471
      %1475 = vmatprep.subr.mxu0 0.0
      %1476 = vmatpush1.xpose.msra.mxu0 0.0
      %1477 = vmatprep.subr.mxu0 0.0
      %1478 = vmatpush1.xpose.msra.mxu0 0.0
      %1479 = vmatprep.subr.mxu0 0.0
      %1480 = vmatpush1.xpose.msra.mxu0 0.0
      %1481 = vmatprep.subr.mxu0 0.0
      %1482 = vmatpush1.xpose.msra.mxu0 0.0
      %1483 = vmatprep.subr.mxu0 0.0
      %1484 = vmatpush1.xpose.msra.mxu0 0.0
      %1485 = vmatprep.subr.mxu0 0.0
      %1486 = vmatpush1.xpose.msra.mxu0 0.0
      %1487 = vmatprep.subr.mxu0 0.0
      %1488 = vmatpush1.xpose.msra.mxu0 0.0
      %1489 = vmatprep.subr.mxu0 0.0
      %1490 = vmatpush1.xpose.msra.mxu0 0.0
      %1491 = vmatprep.subr.mxu0 0.0
      %1492 = vmatpush1.xpose.msra.mxu0 0.0
      %1493 = vmatprep.subr.mxu0 0.0
      %1494 = vmatpush1.xpose.msra.mxu0 0.0
      %1495 = vmatprep.subr.mxu0 0.0
      %1496 = vmatpush1.xpose.msra.mxu0 0.0
      %1497 = vmatprep.subr.mxu0 0.0
      %1498 = vmatpush1.xpose.msra.mxu0 0.0
      %1499 = vmatprep.subr.mxu0 0.0
      %1500 = vmatpush1.xpose.msra.mxu0 0.0
      %1501 = vmatprep.subr.mxu0 0.0
      %1502 = vmatpush1.xpose.msra.mxu0 0.0
      %1503 = vmatprep.subr.mxu0 0.0
      %1504 = vmatpush1.xpose.msra.mxu0 0.0
      %1505 = vmatprep.subr.mxu0 0.0
      %1506 = vmatpush1.xpose.msra.mxu0 0.0
      %1507 = vmatprep.subr.mxu0 0.0
      %1508 = vmatpush1.xpose.msra.mxu0 0.0
      %1509 = vmatprep.subr.mxu0 0.0
      %1510 = vmatpush1.xpose.msra.mxu0 0.0
      %1511 = vmatprep.subr.mxu0 0.0
      %1512 = vmatpush1.xpose.msra.mxu0 0.0
      %1513 = vmatprep.subr.mxu0 0.0
      %1514 = vmatpush1.xpose.msra.mxu0 0.0
      %1515 = vmatprep.subr.mxu0 0.0
      %1516 = vmatpush1.xpose.msra.mxu0 0.0
      %1517 = vmatprep.subr.mxu0 0.0
      %1518 = vmatpush1.xpose.msra.mxu0 0.0
      %1519 = vmatprep.subr.mxu0 0.0
      %1520 = vmatpush1.xpose.msra.mxu0 0.0
      %1521 = vmatprep.subr.mxu0 0.0
      %1522 = vmatpush1.xpose.msra.mxu0 0.0
      %1523 = vmatprep.subr.mxu0 0.0
      %1524 = vmatpush1.xpose.msra.mxu0 0.0
      %1525 = vmatprep.subr.mxu0 0.0
      %1526 = vmatpush1.xpose.msra.mxu0 0.0
      %1527 = vmatprep.subr.mxu0 0.0
      %1528 = vmatpush1.xpose.msra.mxu0 0.0
      %1529 = vmatprep.subr.mxu0 0.0
      %1530 = vmatpush1.xpose.msra.mxu0 0.0
      %1531 = vmatprep.subr.mxu0 0.0
      %1532 = vmatpush1.xpose.msra.mxu0 0.0
      %1533 = vmatprep.subr.mxu0 0.0
      %1534 = vmatpush1.xpose.msra.mxu0 0.0
      %1535 = vmatprep.subr.mxu0 0.0
      %1536 = vmatpush1.xpose.msra.mxu0 0.0
      %1537 = vmatprep.mubr.f32.mxu0 0.0
      %1538 = vmatmul.mubr.f32.gmra.mrb[0].mxu0 %v1469
      %v1539 = vpop.f32.mrb[0].mxu0
      %v1540 = vadd.f32 0.0, %v1539
      %v1541 = vpop.f32.mrb[0].mxu0
      %1542 = vdwg.mxu0
      %v1543 = vmul.f32 %v1540, 0.25
      %v1544 = vsel %vm715, %v1543, -inf
      %1545 = vmax.xlane.f32.xlu0 %v1544
      %v1546 = vpop.xlane.xlu0 %1545
      %v1547 = vsub.f32 %v1543, %v1546
      %v1548 = vmul.f32 %v1547, 1.442695
      %v1549 = vpow.pop %v1548
      %v1550 = vsel %vm715, %v1549, 0.0
      %1551 = vadd.xlane.f32.xlu0 %v1550
      %v1552 = vpop.xlane.xlu0 %1551
      %v1553 = vrcp.pop %v1552
      %v1554 = vmul.f32 %v1549, %v1553
      %1555 = vrot.lane.b32.xlu0 %v632, 48
      %v1556 = vpop.permute.xlu0 %1555
      %v1559 = vsel %vm715, %v1554, 0
      %1561 = vmatprep.subr.mxu0 0.0
      %1562 = vmatpush1.msra.mxu0 %v1556
      %1563 = vmatprep.subr.mxu0 0.0
      %1564 = vmatpush1.msra.mxu0 0.0
      %1565 = vmatprep.subr.mxu0 0.0
      %1566 = vmatpush1.msra.mxu0 0.0
      %1567 = vmatprep.subr.mxu0 0.0
      %1568 = vmatpush1.msra.mxu0 0.0
      %1569 = vmatprep.subr.mxu0 0.0
      %1570 = vmatpush1.msra.mxu0 0.0
      %1571 = vmatprep.subr.mxu0 0.0
      %1572 = vmatpush1.msra.mxu0 0.0
      %1573 = vmatprep.subr.mxu0 0.0
      %1574 = vmatpush1.msra.mxu0 0.0
      %1575 = vmatprep.subr.mxu0 0.0
      %1576 = vmatpush1.msra.mxu0 0.0
      %1577 = vmatprep.subr.mxu0 0.0
      %1578 = vmatpush1.msra.mxu0 0.0
      %1579 = vmatprep.subr.mxu0 0.0
      %1580 = vmatpush1.msra.mxu0 0.0
      %1581 = vmatprep.subr.mxu0 0.0
      %1582 = vmatpush1.msra.mxu0 0.0
      %1583 = vmatprep.subr.mxu0 0.0
      %1584 = vmatpush1.msra.mxu0 0.0
      %1585 = vmatprep.subr.mxu0 0.0
      %1586 = vmatpush1.msra.mxu0 0.0
      %1587 = vmatprep.subr.mxu0 0.0
      %1588 = vmatpush1.msra.mxu0 0.0
      %1589 = vmatprep.subr.mxu0 0.0
      %1590 = vmatpush1.msra.mxu0 0.0
      %1591 = vmatprep.subr.mxu0 0.0
      %1592 = vmatpush1.msra.mxu0 0.0
      %1593 = vmatprep.subr.mxu0 0.0
      %1594 = vmatpush1.msra.mxu0 0.0
      %1595 = vmatprep.subr.mxu0 0.0
      %1596 = vmatpush1.msra.mxu0 0.0
      %1597 = vmatprep.subr.mxu0 0.0
      %1598 = vmatpush1.msra.mxu0 0.0
      %1599 = vmatprep.subr.mxu0 0.0
      %1600 = vmatpush1.msra.mxu0 0.0
      %1601 = vmatprep.subr.mxu0 0.0
      %1602 = vmatpush1.msra.mxu0 0.0
      %1603 = vmatprep.subr.mxu0 0.0
      %1604 = vmatpush1.msra.mxu0 0.0
      %1605 = vmatprep.subr.mxu0 0.0
      %1606 = vmatpush1.msra.mxu0 0.0
      %1607 = vmatprep.subr.mxu0 0.0
      %1608 = vmatpush1.msra.mxu0 0.0
      %1609 = vmatprep.subr.mxu0 0.0
      %1610 = vmatpush1.msra.mxu0 0.0
      %1611 = vmatprep.subr.mxu0 0.0
      %1612 = vmatpush1.msra.mxu0 0.0
      %1613 = vmatprep.subr.mxu0 0.0
      %1614 = vmatpush1.msra.mxu0 0.0
      %1615 = vmatprep.subr.mxu0 0.0
      %1616 = vmatpush1.msra.mxu0 0.0
      %1617 = vmatprep.subr.mxu0 0.0
      %1618 = vmatpush1.msra.mxu0 0.0
      %1619 = vmatprep.subr.mxu0 0.0
      %1620 = vmatpush1.msra.mxu0 0.0
      %1621 = vmatprep.subr.mxu0 0.0
      %1622 = vmatpush1.msra.mxu0 0.0
      %1623 = vmatprep.subr.mxu0 0.0
      %1624 = vmatpush1.msra.mxu0 0.0
      %1625 = vmatprep.mubr.f32.mxu0 0.0
      %1626 = vmatmul.mubr.f32.gmra.mrb[0].mxu0 %v1559
      %v1627 = vpop.f32.mrb[0].mxu0
      %v1628 = vadd.f32 0.0, %v1627
      %v1629 = vpop.f32.mrb[0].mxu0
      %1630 = vdwg.mxu0
      %1631 = vrot.lane.b32.xlu0 %v591, 32
      %v1632 = vpop.permute.xlu0 %1631
      %1633 = vrot.lane.b32.xlu0 %v593, 32
      %v1634 = vpop.permute.xlu0 %1633
      %v1635 = vsel %vm637, %v1632, 0
      %v1637 = vsel %vm637, %v1634, 0
      %1639 = vmatprep.subr.mxu0 0.0
      %1640 = vmatpush1.xpose.msra.mxu0 %v1637
      %1641 = vmatprep.subr.mxu0 0.0
      %1642 = vmatpush1.xpose.msra.mxu0 0.0
      %1643 = vmatprep.subr.mxu0 0.0
      %1644 = vmatpush1.xpose.msra.mxu0 0.0
      %1645 = vmatprep.subr.mxu0 0.0
      %1646 = vmatpush1.xpose.msra.mxu0 0.0
      %1647 = vmatprep.subr.mxu0 0.0
      %1648 = vmatpush1.xpose.msra.mxu0 0.0
      %1649 = vmatprep.subr.mxu0 0.0
      %1650 = vmatpush1.xpose.msra.mxu0 0.0
      %1651 = vmatprep.subr.mxu0 0.0
      %1652 = vmatpush1.xpose.msra.mxu0 0.0
      %1653 = vmatprep.subr.mxu0 0.0
      %1654 = vmatpush1.xpose.msra.mxu0 0.0
      %1655 = vmatprep.subr.mxu0 0.0
      %1656 = vmatpush1.xpose.msra.mxu0 0.0
      %1657 = vmatprep.subr.mxu0 0.0
      %1658 = vmatpush1.xpose.msra.mxu0 0.0
      %1659 = vmatprep.subr.mxu0 0.0
      %1660 = vmatpush1.xpose.msra.mxu0 0.0
      %1661 = vmatprep.subr.mxu0 0.0
      %1662 = vmatpush1.xpose.msra.mxu0 0.0
      %1663 = vmatprep.subr.mxu0 0.0
      %1664 = vmatpush1.xpose.msra.mxu0 0.0
      %1665 = vmatprep.subr.mxu0 0.0
      %1666 = vmatpush1.xpose.msra.mxu0 0.0
      %1667 = vmatprep.subr.mxu0 0.0
      %1668 = vmatpush1.xpose.msra.mxu0 0.0
      %1669 = vmatprep.subr.mxu0 0.0
      %1670 = vmatpush1.xpose.msra.mxu0 0.0
      %1671 = vmatprep.subr.mxu0 0.0
      %1672 = vmatpush1.xpose.msra.mxu0 0.0
      %1673 = vmatprep.subr.mxu0 0.0
      %1674 = vmatpush1.xpose.msra.mxu0 0.0
      %1675 = vmatprep.subr.mxu0 0.0
      %1676 = vmatpush1.xpose.msra.mxu0 0.0
      %1677 = vmatprep.subr.mxu0 0.0
      %1678 = vmatpush1.xpose.msra.mxu0 0.0
      %1679 = vmatprep.subr.mxu0 0.0
      %1680 = vmatpush1.xpose.msra.mxu0 0.0
      %1681 = vmatprep.subr.mxu0 0.0
      %1682 = vmatpush1.xpose.msra.mxu0 0.0
      %1683 = vmatprep.subr.mxu0 0.0
      %1684 = vmatpush1.xpose.msra.mxu0 0.0
      %1685 = vmatprep.subr.mxu0 0.0
      %1686 = vmatpush1.xpose.msra.mxu0 0.0
      %1687 = vmatprep.subr.mxu0 0.0
      %1688 = vmatpush1.xpose.msra.mxu0 0.0
      %1689 = vmatprep.subr.mxu0 0.0
      %1690 = vmatpush1.xpose.msra.mxu0 0.0
      %1691 = vmatprep.subr.mxu0 0.0
      %1692 = vmatpush1.xpose.msra.mxu0 0.0
      %1693 = vmatprep.subr.mxu0 0.0
      %1694 = vmatpush1.xpose.msra.mxu0 0.0
      %1695 = vmatprep.subr.mxu0 0.0
      %1696 = vmatpush1.xpose.msra.mxu0 0.0
      %1697 = vmatprep.subr.mxu0 0.0
      %1698 = vmatpush1.xpose.msra.mxu0 0.0
      %1699 = vmatprep.subr.mxu0 0.0
      %1700 = vmatpush1.xpose.msra.mxu0 0.0
      %1701 = vmatprep.subr.mxu0 0.0
      %1702 = vmatpush1.xpose.msra.mxu0 0.0
      %1703 = vmatprep.mubr.f32.mxu0 0.0
      %1704 = vmatmul.mubr.f32.gmra.mrb[0].mxu0 %v1635
      %v1705 = vpop.f32.mrb[0].mxu0
      %v1706 = vadd.f32 0.0, %v1705
      %v1707 = vpop.f32.mrb[0].mxu0
      %1708 = vdwg.mxu0
      %v1709 = vmul.f32 %v1706, 0.25
      %v1710 = vsel %vm715, %v1709, -inf
      %1711 = vmax.xlane.f32.xlu0 %v1710
      %v1712 = vpop.xlane.xlu0 %1711
      %v1713 = vsub.f32 %v1709, %v1712
      %v1714 = vmul.f32 %v1713, 1.442695
      %v1715 = vpow.pop %v1714
      %v1716 = vsel %vm715, %v1715, 0.0
      %1717 = vadd.xlane.f32.xlu0 %v1716
      %v1718 = vpop.xlane.xlu0 %1717
      %v1719 = vrcp.pop %v1718
      %v1720 = vmul.f32 %v1715, %v1719
      %1721 = vrot.lane.b32.xlu0 %v632, 32
      %v1722 = vpop.permute.xlu0 %1721
      %v1725 = vsel %vm715, %v1720, 0
      %1727 = vmatprep.subr.mxu0 0.0
      %1728 = vmatpush1.msra.mxu0 %v1722
      %1729 = vmatprep.subr.mxu0 0.0
      %1730 = vmatpush1.msra.mxu0 0.0
      %1731 = vmatprep.subr.mxu0 0.0
      %1732 = vmatpush1.msra.mxu0 0.0
      %1733 = vmatprep.subr.mxu0 0.0
      %1734 = vmatpush1.msra.mxu0 0.0
      %1735 = vmatprep.subr.mxu0 0.0
      %1736 = vmatpush1.msra.mxu0 0.0
      %1737 = vmatprep.subr.mxu0 0.0
      %1738 = vmatpush1.msra.mxu0 0.0
      %1739 = vmatprep.subr.mxu0 0.0
      %1740 = vmatpush1.msra.mxu0 0.0
      %1741 = vmatprep.subr.mxu0 0.0
      %1742 = vmatpush1.msra.mxu0 0.0
      %1743 = vmatprep.subr.mxu0 0.0
      %1744 = vmatpush1.msra.mxu0 0.0
      %1745 = vmatprep.subr.mxu0 0.0
      %1746 = vmatpush1.msra.mxu0 0.0
      %1747 = vmatprep.subr.mxu0 0.0
      %1748 = vmatpush1.msra.mxu0 0.0
      %1749 = vmatprep.subr.mxu0 0.0
      %1750 = vmatpush1.msra.mxu0 0.0
      %1751 = vmatprep.subr.mxu0 0.0
      %1752 = vmatpush1.msra.mxu0 0.0
      %1753 = vmatprep.subr.mxu0 0.0
      %1754 = vmatpush1.msra.mxu0 0.0
      %1755 = vmatprep.subr.mxu0 0.0
      %1756 = vmatpush1.msra.mxu0 0.0
      %1757 = vmatprep.subr.mxu0 0.0
      %1758 = vmatpush1.msra.mxu0 0.0
      %1759 = vmatprep.subr.mxu0 0.0
      %1760 = vmatpush1.msra.mxu0 0.0
      %1761 = vmatprep.subr.mxu0 0.0
      %1762 = vmatpush1.msra.mxu0 0.0
      %1763 = vmatprep.subr.mxu0 0.0
      %1764 = vmatpush1.msra.mxu0 0.0
      %1765 = vmatprep.subr.mxu0 0.0
      %1766 = vmatpush1.msra.mxu0 0.0
      %1767 = vmatprep.subr.mxu0 0.0
      %1768 = vmatpush1.msra.mxu0 0.0
      %1769 = vmatprep.subr.mxu0 0.0
      %1770 = vmatpush1.msra.mxu0 0.0
      %1771 = vmatprep.subr.mxu0 0.0
      %1772 = vmatpush1.msra.mxu0 0.0
      %1773 = vmatprep.subr.mxu0 0.0
      %1774 = vmatpush1.msra.mxu0 0.0
      %1775 = vmatprep.subr.mxu0 0.0
      %1776 = vmatpush1.msra.mxu0 0.0
      %1777 = vmatprep.subr.mxu0 0.0
      %1778 = vmatpush1.msra.mxu0 0.0
      %1779 = vmatprep.subr.mxu0 0.0
      %1780 = vmatpush1.msra.mxu0 0.0
      %1781 = vmatprep.subr.mxu0 0.0
      %1782 = vmatpush1.msra.mxu0 0.0
      %1783 = vmatprep.subr.mxu0 0.0
      %1784 = vmatpush1.msra.mxu0 0.0
      %1785 = vmatprep.subr.mxu0 0.0
      %1786 = vmatpush1.msra.mxu0 0.0
      %1787 = vmatprep.subr.mxu0 0.0
      %1788 = vmatpush1.msra.mxu0 0.0
      %1789 = vmatprep.subr.mxu0 0.0
      %1790 = vmatpush1.msra.mxu0 0.0
      %1791 = vmatprep.mubr.f32.mxu0 0.0
      %1792 = vmatmul.mubr.f32.gmra.mrb[0].mxu0 %v1725
      %v1793 = vpop.f32.mrb[0].mxu0
      %v1794 = vadd.f32 0.0, %v1793
      %v1795 = vpop.f32.mrb[0].mxu0
      %1796 = vdwg.mxu0
      %1797 = vrot.lane.b32.xlu0 %v591, 16
      %v1798 = vpop.permute.xlu0 %1797
      %1799 = vrot.lane.b32.xlu0 %v593, 16
      %v1800 = vpop.permute.xlu0 %1799
      %v1801 = vsel %vm637, %v1798, 0
      %v1803 = vsel %vm637, %v1800, 0
      %1805 = vmatprep.subr.mxu0 0.0
      %1806 = vmatpush1.xpose.msra.mxu0 %v1803
      %1807 = vmatprep.subr.mxu0 0.0
      %1808 = vmatpush1.xpose.msra.mxu0 0.0
      %1809 = vmatprep.subr.mxu0 0.0
      %1810 = vmatpush1.xpose.msra.mxu0 0.0
      %1811 = vmatprep.subr.mxu0 0.0
      %1812 = vmatpush1.xpose.msra.mxu0 0.0
      %1813 = vmatprep.subr.mxu0 0.0
      %1814 = vmatpush1.xpose.msra.mxu0 0.0
      %1815 = vmatprep.subr.mxu0 0.0
      %1816 = vmatpush1.xpose.msra.mxu0 0.0
      %1817 = vmatprep.subr.mxu0 0.0
      %1818 = vmatpush1.xpose.msra.mxu0 0.0
      %1819 = vmatprep.subr.mxu0 0.0
      %1820 = vmatpush1.xpose.msra.mxu0 0.0
      %1821 = vmatprep.subr.mxu0 0.0
      %1822 = vmatpush1.xpose.msra.mxu0 0.0
      %1823 = vmatprep.subr.mxu0 0.0
      %1824 = vmatpush1.xpose.msra.mxu0 0.0
      %1825 = vmatprep.subr.mxu0 0.0
      %1826 = vmatpush1.xpose.msra.mxu0 0.0
      %1827 = vmatprep.subr.mxu0 0.0
      %1828 = vmatpush1.xpose.msra.mxu0 0.0
      %1829 = vmatprep.subr.mxu0 0.0
      %1830 = vmatpush1.xpose.msra.mxu0 0.0
      %1831 = vmatprep.subr.mxu0 0.0
      %1832 = vmatpush1.xpose.msra.mxu0 0.0
      %1833 = vmatprep.subr.mxu0 0.0
      %1834 = vmatpush1.xpose.msra.mxu0 0.0
      %1835 = vmatprep.subr.mxu0 0.0
      %1836 = vmatpush1.xpose.msra.mxu0 0.0
      %1837 = vmatprep.subr.mxu0 0.0
      %1838 = vmatpush1.xpose.msra.mxu0 0.0
      %1839 = vmatprep.subr.mxu0 0.0
      %1840 = vmatpush1.xpose.msra.mxu0 0.0
      %1841 = vmatprep.subr.mxu0 0.0
      %1842 = vmatpush1.xpose.msra.mxu0 0.0
      %1843 = vmatprep.subr.mxu0 0.0
      %1844 = vmatpush1.xpose.msra.mxu0 0.0
      %1845 = vmatprep.subr.mxu0 0.0
      %1846 = vmatpush1.xpose.msra.mxu0 0.0
      %1847 = vmatprep.subr.mxu0 0.0
      %1848 = vmatpush1.xpose.msra.mxu0 0.0
      %1849 = vmatprep.subr.mxu0 0.0
      %1850 = vmatpush1.xpose.msra.mxu0 0.0
      %1851 = vmatprep.subr.mxu0 0.0
      %1852 = vmatpush1.xpose.msra.mxu0 0.0
      %1853 = vmatprep.subr.mxu0 0.0
      %1854 = vmatpush1.xpose.msra.mxu0 0.0
      %1855 = vmatprep.subr.mxu0 0.0
      %1856 = vmatpush1.xpose.msra.mxu0 0.0
      %1857 = vmatprep.subr.mxu0 0.0
      %1858 = vmatpush1.xpose.msra.mxu0 0.0
      %1859 = vmatprep.subr.mxu0 0.0
      %1860 = vmatpush1.xpose.msra.mxu0 0.0
      %1861 = vmatprep.subr.mxu0 0.0
      %1862 = vmatpush1.xpose.msra.mxu0 0.0
      %1863 = vmatprep.subr.mxu0 0.0
      %1864 = vmatpush1.xpose.msra.mxu0 0.0
      %1865 = vmatprep.subr.mxu0 0.0
      %1866 = vmatpush1.xpose.msra.mxu0 0.0
      %1867 = vmatprep.subr.mxu0 0.0
      %1868 = vmatpush1.xpose.msra.mxu0 0.0
      %1869 = vmatprep.mubr.f32.mxu0 0.0
      %1870 = vmatmul.mubr.f32.gmra.mrb[0].mxu0 %v1801
      %v1871 = vpop.f32.mrb[0].mxu0
      %v1872 = vadd.f32 0.0, %v1871
      %v1873 = vpop.f32.mrb[0].mxu0
      %1874 = vdwg.mxu0
      %v1875 = vmul.f32 %v1872, 0.25
      %v1876 = vsel %vm715, %v1875, -inf
      %1877 = vmax.xlane.f32.xlu0 %v1876
      %v1878 = vpop.xlane.xlu0 %1877
      %v1879 = vsub.f32 %v1875, %v1878
      %v1880 = vmul.f32 %v1879, 1.442695
      %v1881 = vpow.pop %v1880
      %v1882 = vsel %vm715, %v1881, 0.0
      %1883 = vadd.xlane.f32.xlu0 %v1882
      %v1884 = vpop.xlane.xlu0 %1883
      %v1885 = vrcp.pop %v1884
      %v1886 = vmul.f32 %v1881, %v1885
      %1887 = vrot.lane.b32.xlu0 %v632, 16
      %v1888 = vpop.permute.xlu0 %1887
      %v1891 = vsel %vm715, %v1886, 0
      %1893 = vmatprep.subr.mxu0 0.0
      %1894 = vmatpush1.msra.mxu0 %v1888
      %1895 = vmatprep.subr.mxu0 0.0
      %1896 = vmatpush1.msra.mxu0 0.0
      %1897 = vmatprep.subr.mxu0 0.0
      %1898 = vmatpush1.msra.mxu0 0.0
      %1899 = vmatprep.subr.mxu0 0.0
      %1900 = vmatpush1.msra.mxu0 0.0
      %1901 = vmatprep.subr.mxu0 0.0
      %1902 = vmatpush1.msra.mxu0 0.0
      %1903 = vmatprep.subr.mxu0 0.0
      %1904 = vmatpush1.msra.mxu0 0.0
      %1905 = vmatprep.subr.mxu0 0.0
      %1906 = vmatpush1.msra.mxu0 0.0
      %1907 = vmatprep.subr.mxu0 0.0
      %1908 = vmatpush1.msra.mxu0 0.0
      %1909 = vmatprep.subr.mxu0 0.0
      %1910 = vmatpush1.msra.mxu0 0.0
      %1911 = vmatprep.subr.mxu0 0.0
      %1912 = vmatpush1.msra.mxu0 0.0
      %1913 = vmatprep.subr.mxu0 0.0
      %1914 = vmatpush1.msra.mxu0 0.0
      %1915 = vmatprep.subr.mxu0 0.0
      %1916 = vmatpush1.msra.mxu0 0.0
      %1917 = vmatprep.subr.mxu0 0.0
      %1918 = vmatpush1.msra.mxu0 0.0
      %1919 = vmatprep.subr.mxu0 0.0
      %1920 = vmatpush1.msra.mxu0 0.0
      %1921 = vmatprep.subr.mxu0 0.0
      %1922 = vmatpush1.msra.mxu0 0.0
      %1923 = vmatprep.subr.mxu0 0.0
      %1924 = vmatpush1.msra.mxu0 0.0
      %1925 = vmatprep.subr.mxu0 0.0
      %1926 = vmatpush1.msra.mxu0 0.0
      %1927 = vmatprep.subr.mxu0 0.0
      %1928 = vmatpush1.msra.mxu0 0.0
      %1929 = vmatprep.subr.mxu0 0.0
      %1930 = vmatpush1.msra.mxu0 0.0
      %1931 = vmatprep.subr.mxu0 0.0
      %1932 = vmatpush1.msra.mxu0 0.0
      %1933 = vmatprep.subr.mxu0 0.0
      %1934 = vmatpush1.msra.mxu0 0.0
      %1935 = vmatprep.subr.mxu0 0.0
      %1936 = vmatpush1.msra.mxu0 0.0
      %1937 = vmatprep.subr.mxu0 0.0
      %1938 = vmatpush1.msra.mxu0 0.0
      %1939 = vmatprep.subr.mxu0 0.0
      %1940 = vmatpush1.msra.mxu0 0.0
      %1941 = vmatprep.subr.mxu0 0.0
      %1942 = vmatpush1.msra.mxu0 0.0
      %1943 = vmatprep.subr.mxu0 0.0
      %1944 = vmatpush1.msra.mxu0 0.0
      %1945 = vmatprep.subr.mxu0 0.0
      %1946 = vmatpush1.msra.mxu0 0.0
      %1947 = vmatprep.subr.mxu0 0.0
      %1948 = vmatpush1.msra.mxu0 0.0
      %1949 = vmatprep.subr.mxu0 0.0
      %1950 = vmatpush1.msra.mxu0 0.0
      %1951 = vmatprep.subr.mxu0 0.0
      %1952 = vmatpush1.msra.mxu0 0.0
      %1953 = vmatprep.subr.mxu0 0.0
      %1954 = vmatpush1.msra.mxu0 0.0
      %1955 = vmatprep.subr.mxu0 0.0
      %1956 = vmatpush1.msra.mxu0 0.0
      %1957 = vmatprep.mubr.f32.mxu0 0.0
      %1958 = vmatmul.mubr.f32.gmra.mrb[0].mxu0 %v1891
      %v1959 = vpop.f32.mrb[0].mxu0
      %v1960 = vadd.f32 0.0, %v1959
      %v1961 = vpop.f32.mrb[0].mxu0
      %1962 = vdwg.mxu0
      %1964 = vrot.lane.b32.xlu0 %v964, 16
      %v1965 = vpop.permute.xlu0 %1964
      %1968 = vrot.lane.b32.xlu0 %v1130, 32
      %v1969 = vpop.permute.xlu0 %1968
      %1972 = vrot.lane.b32.xlu0 %v1296, 48
      %v1973 = vpop.permute.xlu0 %1972
      %1976 = vrot.lane.b32.xlu0 %v1462, 64
      %v1977 = vpop.permute.xlu0 %1976
      %1980 = vrot.lane.b32.xlu0 %v1628, 80
      %v1981 = vpop.permute.xlu0 %1980
      %1984 = vrot.lane.b32.xlu0 %v1794, 96
      %v1985 = vpop.permute.xlu0 %1984
      %1988 = vrot.lane.b32.xlu0 %v1960, 112
      %v1989 = vpop.permute.xlu0 %1988
      %v1991 = vsel %vm637, %v797, %v1965
      %vm1992 = vcmask 261120
      %v1993 = vsel %vm1992, %v1991, %v1969
      %vm1994 = vcmask 392192
      %v1995 = vsel %vm1994, %v1993, %v1973
      %vm1996 = vcmask 523264
      %v1997 = vsel %vm1996, %v1995, %v1977
      %vm1998 = vcmask 654336
      %v1999 = vsel %vm1998, %v1997, %v1981
      %vm2000 = vcmask 785408
      %v2001 = vsel %vm2000, %v1999, %v1985
      %vm2002 = vcmask 916480
      %v2003 = vsel %vm2002, %v2001, %v1989
      %s2004 = smul.u32 %s367, 16
      %s2005 = smul.addr %s2004, 4
      %s2006 = scalar_lea.vmem [#allocation7], %s2005
      %v2007 = vld [vmem:[%s2006] sm:$0xf]
      %v2008 = vld [vmem:[%s2006 + $0x4] sm:$0xf]
      %v2009 = vld [vmem:[%s2006 + $0x8] sm:$0xf]
      %v2010 = vld [vmem:[%s2006 + $0xc] sm:$0xf]
      %v2011 = vld [vmem:[%s2006 + $0x10] sm:$0xf]
      %v2012 = vld [vmem:[%s2006 + $0x14] sm:$0xf]
      %v2013 = vld [vmem:[%s2006 + $0x18] sm:$0xf]
      %v2014 = vld [vmem:[%s2006 + $0x1c] sm:$0xf]
      %v2015 = vld [vmem:[%s2006 + $0x20] sm:$0xf]
      %v2016 = vld [vmem:[%s2006 + $0x24] sm:$0xf]
      %v2017 = vld [vmem:[%s2006 + $0x28] sm:$0xf]
      %v2018 = vld [vmem:[%s2006 + $0x2c] sm:$0xf]
      %v2019 = vld [vmem:[%s2006 + $0x30] sm:$0xf]
      %v2020 = vld [vmem:[%s2006 + $0x34] sm:$0xf]
      %v2021 = vld [vmem:[%s2006 + $0x38] sm:$0xf]
      %v2022 = vld [vmem:[%s2006 + $0x3c] sm:$0xf]
      %v2023 = vpack.c.bf16 %v2003, %v2003
      %s2024 = scalar_lea.vmem [#allocation9], %s367
      %v2025 = vld [vmem:[%s2024] sm:$0x1]
      %v2027 = vlaneseq
      %v2028 = vshrl.u32 %v2027, 7
      %v2029 = vsub.s32 0, %v2028
      %v2030 = vrot.slane %v2025, %v2029
      %v2048 = vunpack.c.l.b16 %v2007
      %v2049 = vunpack.c.l.b16 %v2008
      %v2050 = vunpack.c.l.b16 %v2009
      %v2051 = vunpack.c.l.b16 %v2010
      %v2052 = vunpack.c.l.b16 %v2011
      %v2053 = vunpack.c.l.b16 %v2012
      %v2054 = vunpack.c.l.b16 %v2013
      %v2055 = vunpack.c.l.b16 %v2014
      %v2056 = vunpack.c.l.b16 %v2015
      %v2057 = vunpack.c.l.b16 %v2016
      %v2058 = vunpack.c.l.b16 %v2017
      %v2059 = vunpack.c.l.b16 %v2018
      %v2060 = vunpack.c.l.b16 %v2019
      %v2061 = vunpack.c.l.b16 %v2020
      %v2062 = vunpack.c.l.b16 %v2021
      %v2063 = vunpack.c.l.b16 %v2022
      %v2064 = vpack.c.b16 %v2049, %v2048
      %v2065 = vpack.c.b16 %v2051, %v2050
      %v2066 = vpack.c.b16 %v2053, %v2052
      %v2067 = vpack.c.b16 %v2055, %v2054
      %v2068 = vpack.c.b16 %v2057, %v2056
      %v2069 = vpack.c.b16 %v2059, %v2058
      %v2070 = vpack.c.b16 %v2061, %v2060
      %v2071 = vpack.c.b16 %v2063, %v2062
      %2080 = vmatprep.subr.bf16.mxu0 0
      %2081 = vmatpush1.bf16.msra.mxu0 %v2064
      %2082 = vmatprep.subr.bf16.mxu0 0
      %2083 = vmatpush1.bf16.msra.mxu0 %v2065
      %2084 = vmatprep.subr.bf16.mxu0 0
      %2085 = vmatpush1.bf16.msra.mxu0 %v2066
      %2086 = vmatprep.subr.bf16.mxu0 0
      %2087 = vmatpush1.bf16.msra.mxu0 %v2067
      %2088 = vmatprep.subr.bf16.mxu0 0
      %2089 = vmatpush1.bf16.msra.mxu0 %v2068
      %2090 = vmatprep.subr.bf16.mxu0 0
      %2091 = vmatpush1.bf16.msra.mxu0 %v2069
      %2092 = vmatprep.subr.bf16.mxu0 0
      %2093 = vmatpush1.bf16.msra.mxu0 %v2070
      %2094 = vmatprep.subr.bf16.mxu0 0
      %2095 = vmatpush1.bf16.msra.mxu0 %v2071
      %2096 = vmatprep.subr.bf16.mxu0 0
      %2097 = vmatpush1.bf16.msra.mxu0 0
      %2098 = vmatprep.subr.bf16.mxu0 0
      %2099 = vmatpush1.bf16.msra.mxu0 0
      %2100 = vmatprep.subr.bf16.mxu0 0
      %2101 = vmatpush1.bf16.msra.mxu0 0
      %2102 = vmatprep.subr.bf16.mxu0 0
      %2103 = vmatpush1.bf16.msra.mxu0 0
      %2104 = vmatprep.subr.bf16.mxu0 0
      %2105 = vmatpush1.bf16.msra.mxu0 0
      %2106 = vmatprep.subr.bf16.mxu0 0
      %2107 = vmatpush1.bf16.msra.mxu0 0
      %2108 = vmatprep.subr.bf16.mxu0 0
      %2109 = vmatpush1.bf16.msra.mxu0 0
      %2110 = vmatprep.subr.bf16.mxu0 0
      %2111 = vmatpush1.bf16.msra.mxu0 0
      %2112 = vmatprep.mubr.bf16.mxu0 0
      %2113 = vmatmul.mubr.bf16.gmra.mrb[0].mxu0 %v2023
      %v2114 = vpop.f32.mrb[0].mxu0
      %v2115 = vadd.f32 %v2030, %v2114
      %v2116 = vpop.f32.mrb[0].mxu0
      %v2117 = vpop.f32.mrb[0].mxu0
      %v2118 = vpop.f32.mrb[0].mxu0
      %2119 = vdwg.mxu0
      %v2120 = vadd.f32 %v372, %v2115
      %s2121 = scalar_lea.vmem %s7, %s367
      %v2122 = vld [vmem:[%s2121] sm:$0x1]
      %s2123 = scalar_lea.vmem %s8, %s367
      %v2124 = vld [vmem:[%s2123] sm:$0x1]
      %2125 = vadd.xlane.f32.xlu0 %v2120
      %v2126 = vpop.xlane.xlu0 %2125
      %v2127 = vrcp.pop 128.0
      %v2128 = vmul.f32 %v2126, %v2127
      %v2129 = vsub.f32 %v2120, %v2128
      %v2130 = vmul.f32 %v2129, %v2129
      %2131 = vadd.xlane.f32.xlu0 %v2130
      %v2132 = vpop.xlane.xlu0 %2131
      %v2133 = vmul.f32 %v2132, %v2127
      %v2134 = vadd.f32 %v2133, 1e-05
      %v2135 = vrsqrt.pop %v2134
      %v2136 = vmul.f32 %v2129, %v2135
      %v2138 = vlaneseq
      %v2139 = vshrl.u32 %v2138, 7
      %v2140 = vsub.s32 0, %v2139
      %v2141 = vrot.slane %v2122, %v2140
      %v2143 = vmul.f32 %v2136, %v2141
      %v2145 = vlaneseq
      %v2146 = vshrl.u32 %v2145, 7
      %v2147 = vsub.s32 0, %v2146
      %v2148 = vrot.slane %v2124, %v2147
      %v2150 = vadd.f32 %v2143, %v2148
      %s2151 = smul.u32 %s367, 32
      %s2152 = smul.addr %s2151, 4
      %s2153 = scalar_lea.vmem [#allocation10], %s2152
      %v2154 = vld [vmem:[%s2153] sm:$0xff]
      %v2155 = vld [vmem:[%s2153 + $0x8] sm:$0xff]
      %v2156 = vld [vmem:[%s2153 + $0x10] sm:$0xff]
      %v2157 = vld [vmem:[%s2153 + $0x18] sm:$0xff]
      %v2158 = vld [vmem:[%s2153 + $0x20] sm:$0xff]
      %v2159 = vld [vmem:[%s2153 + $0x28] sm:$0xff]
      %v2160 = vld [vmem:[%s2153 + $0x30] sm:$0xff]
      %v2161 = vld [vmem:[%s2153 + $0x38] sm:$0xff]
      %v2162 = vld [vmem:[%s2153 + $0x40] sm:$0xff]
      %v2163 = vld [vmem:[%s2153 + $0x48] sm:$0xff]
      %v2164 = vld [vmem:[%s2153 + $0x50] sm:$0xff]
      %v2165 = vld [vmem:[%s2153 + $0x58] sm:$0xff]
      %v2166 = vld [vmem:[%s2153 + $0x60] sm:$0xff]
      %v2167 = vld [vmem:[%s2153 + $0x68] sm:$0xff]
      %v2168 = vld [vmem:[%s2153 + $0x70] sm:$0xff]
      %v2169 = vld [vmem:[%s2153 + $0x78] sm:$0xff]
      %v2170 = vpack.c.bf16 %v2150, %v2150
      %s2171 = smul.u32 %s367, 2
      %s2172 = scalar_lea.vmem [#allocation12], %s2171
      %v2173 = vld [vmem:[%s2172] sm:$0x3]
      %v2175 = vlaneseq
      %v2176 = vshrl.u32 %v2175, 7
      %v2177 = vsub.s32 0, %v2176
      %v2178 = vrot.slane %v2173, %v2177
      %v2179 = vlaneseq
      %v2180 = vshrl.u32 %v2179, 7
      %v2181 = vsub.s32 1, %v2180
      %v2182 = vrot.slane %v2173, %v2181
      %v2201 = vunpack.c.l.b16 %v2154
      %v2202 = vunpack.c.h.b16 %v2154
      %v2203 = vunpack.c.l.b16 %v2155
      %v2204 = vunpack.c.h.b16 %v2155
      %v2205 = vunpack.c.l.b16 %v2156
      %v2206 = vunpack.c.h.b16 %v2156
      %v2207 = vunpack.c.l.b16 %v2157
      %v2208 = vunpack.c.h.b16 %v2157
      %v2209 = vunpack.c.l.b16 %v2158
      %v2210 = vunpack.c.h.b16 %v2158
      %v2211 = vunpack.c.l.b16 %v2159
      %v2212 = vunpack.c.h.b16 %v2159
      %v2213 = vunpack.c.l.b16 %v2160
      %v2214 = vunpack.c.h.b16 %v2160
      %v2215 = vunpack.c.l.b16 %v2161
      %v2216 = vunpack.c.h.b16 %v2161
      %v2217 = vunpack.c.l.b16 %v2162
      %v2218 = vunpack.c.h.b16 %v2162
      %v2219 = vunpack.c.l.b16 %v2163
      %v2220 = vunpack.c.h.b16 %v2163
      %v2221 = vunpack.c.l.b16 %v2164
      %v2222 = vunpack.c.h.b16 %v2164
      %v2223 = vunpack.c.l.b16 %v2165
      %v2224 = vunpack.c.h.b16 %v2165
      %v2225 = vunpack.c.l.b16 %v2166
      %v2226 = vunpack.c.h.b16 %v2166
      %v2227 = vunpack.c.l.b16 %v2167
      %v2228 = vunpack.c.h.b16 %v2167
      %v2229 = vunpack.c.l.b16 %v2168
      %v2230 = vunpack.c.h.b16 %v2168
      %v2231 = vunpack.c.l.b16 %v2169
      %v2232 = vunpack.c.h.b16 %v2169
      %v2233 = vpack.c.b16 %v2203, %v2201
      %v2234 = vpack.c.b16 %v2204, %v2202
      %v2235 = vpack.c.b16 %v2207, %v2205
      %v2236 = vpack.c.b16 %v2208, %v2206
      %v2237 = vpack.c.b16 %v2211, %v2209
      %v2238 = vpack.c.b16 %v2212, %v2210
      %v2239 = vpack.c.b16 %v2215, %v2213
      %v2240 = vpack.c.b16 %v2216, %v2214
      %v2241 = vpack.c.b16 %v2219, %v2217
      %v2242 = vpack.c.b16 %v2220, %v2218
      %v2243 = vpack.c.b16 %v2223, %v2221
      %v2244 = vpack.c.b16 %v2224, %v2222
      %v2245 = vpack.c.b16 %v2227, %v2225
      %v2246 = vpack.c.b16 %v2228, %v2226
      %v2247 = vpack.c.b16 %v2231, %v2229
      %v2248 = vpack.c.b16 %v2232, %v2230
      %2265 = vmatprep.subr.bf16.mxu0 %v2234
      %2266 = vmatpush1.bf16.msra.mxu0 %v2233
      %2267 = vmatprep.subr.bf16.mxu0 %v2236
      %2268 = vmatpush1.bf16.msra.mxu0 %v2235
      %2269 = vmatprep.subr.bf16.mxu0 %v2238
      %2270 = vmatpush1.bf16.msra.mxu0 %v2237
      %2271 = vmatprep.subr.bf16.mxu0 %v2240
      %2272 = vmatpush1.bf16.msra.mxu0 %v2239
      %2273 = vmatprep.subr.bf16.mxu0 %v2242
      %2274 = vmatpush1.bf16.msra.mxu0 %v2241
      %2275 = vmatprep.subr.bf16.mxu0 %v2244
      %2276 = vmatpush1.bf16.msra.mxu0 %v2243
      %2277 = vmatprep.subr.bf16.mxu0 %v2246
      %2278 = vmatpush1.bf16.msra.mxu0 %v2245
      %2279 = vmatprep.subr.bf16.mxu0 %v2248
      %2280 = vmatpush1.bf16.msra.mxu0 %v2247
      %2281 = vmatprep.subr.bf16.mxu0 0
      %2282 = vmatpush1.bf16.msra.mxu0 0
      %2283 = vmatprep.subr.bf16.mxu0 0
      %2284 = vmatpush1.bf16.msra.mxu0 0
      %2285 = vmatprep.subr.bf16.mxu0 0
      %2286 = vmatpush1.bf16.msra.mxu0 0
      %2287 = vmatprep.subr.bf16.mxu0 0
      %2288 = vmatpush1.bf16.msra.mxu0 0
      %2289 = vmatprep.subr.bf16.mxu0 0
      %2290 = vmatpush1.bf16.msra.mxu0 0
      %2291 = vmatprep.subr.bf16.mxu0 0
      %2292 = vmatpush1.bf16.msra.mxu0 0
      %2293 = vmatprep.subr.bf16.mxu0 0
      %2294 = vmatpush1.bf16.msra.mxu0 0
      %2295 = vmatprep.subr.bf16.mxu0 0
      %2296 = vmatpush1.bf16.msra.mxu0 0
      %2297 = vmatprep.mubr.bf16.mxu0 0
      %2298 = vmatmul.mubr.bf16.gmra.mrb[0].mxu0 %v2170
      %v2299 = vpop.f32.mrb[0].mxu0
      %v2300 = vadd.f32 %v2178, %v2299
      %v2301 = vpop.f32.mrb[0].mxu0
      %v2302 = vadd.f32 %v2182, %v2301
      %v2303 = vpop.f32.mrb[0].mxu0
      %v2304 = vpop.f32.mrb[0].mxu0
      %2305 = vdwg.mxu0
      %v2306 = vmax.f32 %v2300, 0.0
      %v2307 = vmax.f32 %v2302, 0.0
      %s2308 = smul.addr %s2151, 4
      %s2309 = scalar_lea.vmem [#allocation13], %s2308
      %v2310 = vld [vmem:[%s2309] sm:$0xf]
      %v2311 = vld [vmem:[%s2309 + $0x4] sm:$0xf]
      %v2312 = vld [vmem:[%s2309 + $0x8] sm:$0xf]
      %v2313 = vld [vmem:[%s2309 + $0xc] sm:$0xf]
      %v2314 = vld [vmem:[%s2309 + $0x10] sm:$0xf]
      %v2315 = vld [vmem:[%s2309 + $0x14] sm:$0xf]
      %v2316 = vld [vmem:[%s2309 + $0x18] sm:$0xf]
      %v2317 = vld [vmem:[%s2309 + $0x1c] sm:$0xf]
      %v2318 = vld [vmem:[%s2309 + $0x20] sm:$0xf]
      %v2319 = vld [vmem:[%s2309 + $0x24] sm:$0xf]
      %v2320 = vld [vmem:[%s2309 + $0x28] sm:$0xf]
      %v2321 = vld [vmem:[%s2309 + $0x2c] sm:$0xf]
      %v2322 = vld [vmem:[%s2309 + $0x30] sm:$0xf]
      %v2323 = vld [vmem:[%s2309 + $0x34] sm:$0xf]
      %v2324 = vld [vmem:[%s2309 + $0x38] sm:$0xf]
      %v2325 = vld [vmem:[%s2309 + $0x3c] sm:$0xf]
      %v2326 = vld [vmem:[%s2309 + $0x40] sm:$0xf]
      %v2327 = vld [vmem:[%s2309 + $0x44] sm:$0xf]
      %v2328 = vld [vmem:[%s2309 + $0x48] sm:$0xf]
      %v2329 = vld [vmem:[%s2309 + $0x4c] sm:$0xf]
      %v2330 = vld [vmem:[%s2309 + $0x50] sm:$0xf]
      %v2331 = vld [vmem:[%s2309 + $0x54] sm:$0xf]
      %v2332 = vld [vmem:[%s2309 + $0x58] sm:$0xf]
      %v2333 = vld [vmem:[%s2309 + $0x5c] sm:$0xf]
      %v2334 = vld [vmem:[%s2309 + $0x60] sm:$0xf]
      %v2335 = vld [vmem:[%s2309 + $0x64] sm:$0xf]
      %v2336 = vld [vmem:[%s2309 + $0x68] sm:$0xf]
      %v2337 = vld [vmem:[%s2309 + $0x6c] sm:$0xf]
      %v2338 = vld [vmem:[%s2309 + $0x70] sm:$0xf]
      %v2339 = vld [vmem:[%s2309 + $0x74] sm:$0xf]
      %v2340 = vld [vmem:[%s2309 + $0x78] sm:$0xf]
      %v2341 = vld [vmem:[%s2309 + $0x7c] sm:$0xf]
      %v2342 = vpack.c.bf16 %v2306, %v2306
      %v2343 = vpack.c.bf16 %v2307, %v2307
      %s2344 = scalar_lea.vmem [#allocation15], %s367
      %v2345 = vld [vmem:[%s2344] sm:$0x1]
      %v2347 = vlaneseq
      %v2348 = vshrl.u32 %v2347, 7
      %v2349 = vsub.s32 0, %v2348
      %v2350 = vrot.slane %v2345, %v2349
      %v2384 = vunpack.c.l.b16 %v2310
      %v2385 = vunpack.c.l.b16 %v2311
      %v2386 = vunpack.c.l.b16 %v2312
      %v2387 = vunpack.c.l.b16 %v2313
      %v2388 = vunpack.c.l.b16 %v2314
      %v2389 = vunpack.c.l.b16 %v2315
      %v2390 = vunpack.c.l.b16 %v2316
      %v2391 = vunpack.c.l.b16 %v2317
      %v2392 = vunpack.c.l.b16 %v2318
      %v2393 = vunpack.c.l.b16 %v2319
      %v2394 = vunpack.c.l.b16 %v2320
      %v2395 = vunpack.c.l.b16 %v2321
      %v2396 = vunpack.c.l.b16 %v2322
      %v2397 = vunpack.c.l.b16 %v2323
      %v2398 = vunpack.c.l.b16 %v2324
      %v2399 = vunpack.c.l.b16 %v2325
      %v2400 = vunpack.c.l.b16 %v2326
      %v2401 = vunpack.c.l.b16 %v2327
      %v2402 = vunpack.c.l.b16 %v2328
      %v2403 = vunpack.c.l.b16 %v2329
      %v2404 = vunpack.c.l.b16 %v2330
      %v2405 = vunpack.c.l.b16 %v2331
      %v2406 = vunpack.c.l.b16 %v2332
      %v2407 = vunpack.c.l.b16 %v2333
      %v2408 = vunpack.c.l.b16 %v2334
      %v2409 = vunpack.c.l.b16 %v2335
      %v2410 = vunpack.c.l.b16 %v2336
      %v2411 = vunpack.c.l.b16 %v2337
      %v2412 = vunpack.c.l.b16 %v2338
      %v2413 = vunpack.c.l.b16 %v2339
      %v2414 = vunpack.c.l.b16 %v2340
      %v2415 = vunpack.c.l.b16 %v2341
      %v2416 = vpack.c.b16 %v2385, %v2384
      %v2417 = vpack.c.b16 %v2387, %v2386
      %v2418 = vpack.c.b16 %v2389, %v2388
      %v2419 = vpack.c.b16 %v2391, %v2390
      %v2420 = vpack.c.b16 %v2393, %v2392
      %v2421 = vpack.c.b16 %v2395, %v2394
      %v2422 = vpack.c.b16 %v2397, %v2396
      %v2423 = vpack.c.b16 %v2399, %v2398
      %v2424 = vpack.c.b16 %v2401, %v2400
      %v2425 = vpack.c.b16 %v2403, %v2402
      %v2426 = vpack.c.b16 %v2405, %v2404
      %v2427 = vpack.c.b16 %v2407, %v2406
      %v2428 = vpack.c.b16 %v2409, %v2408
      %v2429 = vpack.c.b16 %v2411, %v2410
      %v2430 = vpack.c.b16 %v2413, %v2412
      %v2431 = vpack.c.b16 %v2415, %v2414
      %2448 = vmatprep.subr.bf16.mxu0 0
      %2449 = vmatpush1.bf16.msra.mxu0 %v2416
      %2450 = vmatprep.subr.bf16.mxu0 0
      %2451 = vmatpush1.bf16.msra.mxu0 %v2417
      %2452 = vmatprep.subr.bf16.mxu0 0
      %2453 = vmatpush1.bf16.msra.mxu0 %v2418
      %2454 = vmatprep.subr.bf16.mxu0 0
      %2455 = vmatpush1.bf16.msra.mxu0 %v2419
      %2456 = vmatprep.subr.bf16.mxu0 0
      %2457 = vmatpush1.bf16.msra.mxu0 %v2420
      %2458 = vmatprep.subr.bf16.mxu0 0
      %2459 = vmatpush1.bf16.msra.mxu0 %v2421
      %2460 = vmatprep.subr.bf16.mxu0 0
      %2461 = vmatpush1.bf16.msra.mxu0 %v2422
      %2462 = vmatprep.subr.bf16.mxu0 0
      %2463 = vmatpush1.bf16.msra.mxu0 %v2423
      %2464 = vmatprep.subr.bf16.mxu0 0
      %2465 = vmatpush1.bf16.msra.mxu0 %v2424
      %2466 = vmatprep.subr.bf16.mxu0 0
      %2467 = vmatpush1.bf16.msra.mxu0 %v2425
      %2468 = vmatprep.subr.bf16.mxu0 0
      %2469 = vmatpush1.bf16.msra.mxu0 %v2426
      %2470 = vmatprep.subr.bf16.mxu0 0
      %2471 = vmatpush1.bf16.msra.mxu0 %v2427
      %2472 = vmatprep.subr.bf16.mxu0 0
      %2473 = vmatpush1.bf16.msra.mxu0 %v2428
      %2474 = vmatprep.subr.bf16.mxu0 0
      %2475 = vmatpush1.bf16.msra.mxu0 %v2429
      %2476 = vmatprep.subr.bf16.mxu0 0
      %2477 = vmatpush1.bf16.msra.mxu0 %v2430
      %2478 = vmatprep.subr.bf16.mxu0 0
      %2479 = vmatpush1.bf16.msra.mxu0 %v2431
      %2480 = vmatprep.mubr.bf16.mxu0 %v2343
      %2481 = vmatmul.mubr.bf16.gmra.mrb[0].mxu0 %v2342
      %v2482 = vpop.f32.mrb[0].mxu0
      %v2483 = vadd.f32 %v2350, %v2482
      %v2484 = vpop.f32.mrb[0].mxu0
      %v2485 = vpop.f32.mrb[0].mxu0
      %v2486 = vpop.f32.mrb[0].mxu0
      %2487 = vdwg.mxu0
      %v2488 = vadd.f32 %v2150, %v2483
      %s2489 = scalar_lea.vmem %s13, %s367
      %v2490 = vld [vmem:[%s2489] sm:$0x1]
      %s2491 = scalar_lea.vmem %s14, %s367
      %v2492 = vld [vmem:[%s2491] sm:$0x1]
      %2493 = vadd.xlane.f32.xlu0 %v2488
      %v2494 = vpop.xlane.xlu0 %2493
      %v2495 = vmul.f32 %v2494, %v2127
      %v2496 = vsub.f32 %v2488, %v2495
      %v2497 = vmul.f32 %v2496, %v2496
      %2498 = vadd.xlane.f32.xlu0 %v2497
      %v2499 = vpop.xlane.xlu0 %2498
      %v2500 = vmul.f32 %v2499, %v2127
      %v2501 = vadd.f32 %v2500, 1e-05
      %v2502 = vrsqrt.pop %v2501
      %v2503 = vmul.f32 %v2496, %v2502
      %v2505 = vlaneseq
      %v2506 = vshrl.u32 %v2505, 7
      %v2507 = vsub.s32 0, %v2506
      %v2508 = vrot.slane %v2490, %v2507
      %v2510 = vmul.f32 %v2503, %v2508
      %v2512 = vlaneseq
      %v2513 = vshrl.u32 %v2512, 7
      %v2514 = vsub.s32 0, %v2513
      %v2515 = vrot.slane %v2492, %v2514
      %v2517 = vadd.f32 %v2510, %v2515
    $region146: #{pallas_forward.1} parent=1 // loop_footer
      %s371 = sadd.s32 1, %s367
    $region147: #{pallas_forward.1} parent=1 // loop_footer_branch
      %366 = sbr.rel target = $region143
    $region148: #{pallas_forward.1} parent=1 // loop_exit
      _
    %v2518 = vld [vmem:[#allocation16] sm:$0xff]
    %v2519 = vld [vmem:[#allocation16 + $0x8] sm:$0xff]
    %v2520 = vld [vmem:[#allocation16 + $0x10] sm:$0xff]
    %v2521 = vld [vmem:[#allocation16 + $0x18] sm:$0xff]
    %v2522 = vld [vmem:[#allocation16 + $0x20] sm:$0xff]
    %v2523 = vld [vmem:[#allocation16 + $0x28] sm:$0xff]
    %v2524 = vld [vmem:[#allocation16 + $0x30] sm:$0xff]
    %v2525 = vld [vmem:[#allocation16 + $0x38] sm:$0xff]
    %v2526 = vld [vmem:[#allocation16 + $0x40] sm:$0xff]
    %v2527 = vld [vmem:[#allocation16 + $0x48] sm:$0xff]
    %v2528 = vld [vmem:[#allocation16 + $0x50] sm:$0xff]
    %v2529 = vld [vmem:[#allocation16 + $0x58] sm:$0xff]
    %v2530 = vld [vmem:[#allocation16 + $0x60] sm:$0xff]
    %v2531 = vld [vmem:[#allocation16 + $0x68] sm:$0xff]
    %v2532 = vld [vmem:[#allocation16 + $0x70] sm:$0xff]
    %v2533 = vld [vmem:[#allocation16 + $0x78] sm:$0xff]
    %v2534 = vpack.c.bf16 %v372, %v372
    %v2535 = vld [vmem:[%s16] sm:$0x3]
    %v2537 = vlaneseq
    %v2538 = vshrl.u32 %v2537, 7
    %v2539 = vsub.s32 0, %v2538
    %v2540 = vrot.slane %v2535, %v2539
    %v2541 = vlaneseq
    %v2542 = vshrl.u32 %v2541, 7
    %v2543 = vsub.s32 1, %v2542
    %v2544 = vrot.slane %v2535, %v2543
    %v2563 = vunpack.c.l.b16 %v2518
    %v2564 = vunpack.c.h.b16 %v2518
    %v2565 = vunpack.c.l.b16 %v2519
    %v2566 = vunpack.c.h.b16 %v2519
    %v2567 = vunpack.c.l.b16 %v2520
    %v2568 = vunpack.c.h.b16 %v2520
    %v2569 = vunpack.c.l.b16 %v2521
    %v2570 = vunpack.c.h.b16 %v2521
    %v2571 = vunpack.c.l.b16 %v2522
    %v2572 = vunpack.c.h.b16 %v2522
    %v2573 = vunpack.c.l.b16 %v2523
    %v2574 = vunpack.c.h.b16 %v2523
    %v2575 = vunpack.c.l.b16 %v2524
    %v2576 = vunpack.c.h.b16 %v2524
    %v2577 = vunpack.c.l.b16 %v2525
    %v2578 = vunpack.c.h.b16 %v2525
    %v2579 = vunpack.c.l.b16 %v2526
    %v2580 = vunpack.c.h.b16 %v2526
    %v2581 = vunpack.c.l.b16 %v2527
    %v2582 = vunpack.c.h.b16 %v2527
    %v2583 = vunpack.c.l.b16 %v2528
    %v2584 = vunpack.c.h.b16 %v2528
    %v2585 = vunpack.c.l.b16 %v2529
    %v2586 = vunpack.c.h.b16 %v2529
    %v2587 = vunpack.c.l.b16 %v2530
    %v2588 = vunpack.c.h.b16 %v2530
    %v2589 = vunpack.c.l.b16 %v2531
    %v2590 = vunpack.c.h.b16 %v2531
    %v2591 = vunpack.c.l.b16 %v2532
    %v2592 = vunpack.c.h.b16 %v2532
    %v2593 = vunpack.c.l.b16 %v2533
    %v2594 = vunpack.c.h.b16 %v2533
    %v2595 = vpack.c.b16 %v2565, %v2563
    %v2596 = vpack.c.b16 %v2566, %v2564
    %v2597 = vpack.c.b16 %v2569, %v2567
    %v2598 = vpack.c.b16 %v2570, %v2568
    %v2599 = vpack.c.b16 %v2573, %v2571
    %v2600 = vpack.c.b16 %v2574, %v2572
    %v2601 = vpack.c.b16 %v2577, %v2575
    %v2602 = vpack.c.b16 %v2578, %v2576
    %v2603 = vpack.c.b16 %v2581, %v2579
    %v2604 = vpack.c.b16 %v2582, %v2580
    %v2605 = vpack.c.b16 %v2585, %v2583
    %v2606 = vpack.c.b16 %v2586, %v2584
    %v2607 = vpack.c.b16 %v2589, %v2587
    %v2608 = vpack.c.b16 %v2590, %v2588
    %v2609 = vpack.c.b16 %v2593, %v2591
    %v2610 = vpack.c.b16 %v2594, %v2592
    %2627 = vmatprep.subr.bf16.mxu0 %v2596
    %2628 = vmatpush1.bf16.msra.mxu0 %v2595
    %2629 = vmatprep.subr.bf16.mxu0 %v2598
    %2630 = vmatpush1.bf16.msra.mxu0 %v2597
    %2631 = vmatprep.subr.bf16.mxu0 %v2600
    %2632 = vmatpush1.bf16.msra.mxu0 %v2599
    %2633 = vmatprep.subr.bf16.mxu0 %v2602
    %2634 = vmatpush1.bf16.msra.mxu0 %v2601
    %2635 = vmatprep.subr.bf16.mxu0 %v2604
    %2636 = vmatpush1.bf16.msra.mxu0 %v2603
    %2637 = vmatprep.subr.bf16.mxu0 %v2606
    %2638 = vmatpush1.bf16.msra.mxu0 %v2605
    %2639 = vmatprep.subr.bf16.mxu0 %v2608
    %2640 = vmatpush1.bf16.msra.mxu0 %v2607
    %2641 = vmatprep.subr.bf16.mxu0 %v2610
    %2642 = vmatpush1.bf16.msra.mxu0 %v2609
    %2643 = vmatprep.subr.bf16.mxu0 0
    %2644 = vmatpush1.bf16.msra.mxu0 0
    %2645 = vmatprep.subr.bf16.mxu0 0
    %2646 = vmatpush1.bf16.msra.mxu0 0
    %2647 = vmatprep.subr.bf16.mxu0 0
    %2648 = vmatpush1.bf16.msra.mxu0 0
    %2649 = vmatprep.subr.bf16.mxu0 0
    %2650 = vmatpush1.bf16.msra.mxu0 0
    %2651 = vmatprep.subr.bf16.mxu0 0
    %2652 = vmatpush1.bf16.msra.mxu0 0
    %2653 = vmatprep.subr.bf16.mxu0 0
    %2654 = vmatpush1.bf16.msra.mxu0 0
    %2655 = vmatprep.subr.bf16.mxu0 0
    %2656 = vmatpush1.bf16.msra.mxu0 0
    %2657 = vmatprep.subr.bf16.mxu0 0
    %2658 = vmatpush1.bf16.msra.mxu0 0
    %2659 = vmatprep.mubr.bf16.mxu0 0
    %2660 = vmatmul.mubr.bf16.gmra.mrb[0].mxu0 %v2534
    %v2661 = vpop.f32.mrb[0].mxu0
    %v2662 = vadd.f32 %v2540, %v2661
    %v2663 = vpop.f32.mrb[0].mxu0
    %v2664 = vadd.f32 %v2544, %v2663
    %v2665 = vpop.f32.mrb[0].mxu0
    %v2666 = vpop.f32.mrb[0].mxu0
    %2667 = vdwg.mxu0
    %v2668 = vmax.f32 %v2662, 0.0
    %v2669 = vmax.f32 %v2664, 0.0
    %v2670 = vld [vmem:[#allocation18] sm:$0xff]
    %v2671 = vld [vmem:[#allocation18 + $0x8] sm:$0xff]
    %v2672 = vld [vmem:[#allocation18 + $0x10] sm:$0xff]
    %v2673 = vld [vmem:[#allocation18 + $0x18] sm:$0xff]
    %v2674 = vld [vmem:[#allocation18 + $0x20] sm:$0xff]
    %v2675 = vld [vmem:[#allocation18 + $0x28] sm:$0xff]
    %v2676 = vld [vmem:[#allocation18 + $0x30] sm:$0xff]
    %v2677 = vld [vmem:[#allocation18 + $0x38] sm:$0xff]
    %v2678 = vld [vmem:[#allocation18 + $0x40] sm:$0xff]
    %v2679 = vld [vmem:[#allocation18 + $0x48] sm:$0xff]
    %v2680 = vld [vmem:[#allocation18 + $0x50] sm:$0xff]
    %v2681 = vld [vmem:[#allocation18 + $0x58] sm:$0xff]
    %v2682 = vld [vmem:[#allocation18 + $0x60] sm:$0xff]
    %v2683 = vld [vmem:[#allocation18 + $0x68] sm:$0xff]
    %v2684 = vld [vmem:[#allocation18 + $0x70] sm:$0xff]
    %v2685 = vld [vmem:[#allocation18 + $0x78] sm:$0xff]
    %v2686 = vld [vmem:[#allocation18 + $0x80] sm:$0xff]
    %v2687 = vld [vmem:[#allocation18 + $0x88] sm:$0xff]
    %v2688 = vld [vmem:[#allocation18 + $0x90] sm:$0xff]
    %v2689 = vld [vmem:[#allocation18 + $0x98] sm:$0xff]
    %v2690 = vld [vmem:[#allocation18 + $0xa0] sm:$0xff]
    %v2691 = vld [vmem:[#allocation18 + $0xa8] sm:$0xff]
    %v2692 = vld [vmem:[#allocation18 + $0xb0] sm:$0xff]
    %v2693 = vld [vmem:[#allocation18 + $0xb8] sm:$0xff]
    %v2694 = vld [vmem:[#allocation18 + $0xc0] sm:$0xff]
    %v2695 = vld [vmem:[#allocation18 + $0xc8] sm:$0xff]
    %v2696 = vld [vmem:[#allocation18 + $0xd0] sm:$0xff]
    %v2697 = vld [vmem:[#allocation18 + $0xd8] sm:$0xff]
    %v2698 = vld [vmem:[#allocation18 + $0xe0] sm:$0xff]
    %v2699 = vld [vmem:[#allocation18 + $0xe8] sm:$0xff]
    %v2700 = vld [vmem:[#allocation18 + $0xf0] sm:$0xff]
    %v2701 = vld [vmem:[#allocation18 + $0xf8] sm:$0xff]
    %v2702 = vld [vmem:[#allocation18 + $0x100] sm:$0xff]
    %v2703 = vld [vmem:[#allocation18 + $0x108] sm:$0xff]
    %v2704 = vld [vmem:[#allocation18 + $0x110] sm:$0xff]
    %v2705 = vld [vmem:[#allocation18 + $0x118] sm:$0xff]
    %v2706 = vld [vmem:[#allocation18 + $0x120] sm:$0xff]
    %v2707 = vld [vmem:[#allocation18 + $0x128] sm:$0xff]
    %v2708 = vld [vmem:[#allocation18 + $0x130] sm:$0xff]
    %v2709 = vld [vmem:[#allocation18 + $0x138] sm:$0xff]
    %v2710 = vld [vmem:[#allocation18 + $0x140] sm:$0xff]
    %v2711 = vld [vmem:[#allocation18 + $0x148] sm:$0xff]
    %v2712 = vld [vmem:[#allocation18 + $0x150] sm:$0xff]
    %v2713 = vld [vmem:[#allocation18 + $0x158] sm:$0xff]
    %v2714 = vld [vmem:[#allocation18 + $0x160] sm:$0xff]
    %v2715 = vld [vmem:[#allocation18 + $0x168] sm:$0xff]
    %v2716 = vld [vmem:[#allocation18 + $0x170] sm:$0xff]
    %v2717 = vld [vmem:[#allocation18 + $0x178] sm:$0xff]
    %v2718 = vld [vmem:[#allocation18 + $0x180] sm:$0xff]
    %v2719 = vld [vmem:[#allocation18 + $0x188] sm:$0xff]
    %v2720 = vld [vmem:[#allocation18 + $0x190] sm:$0xff]
    %v2721 = vld [vmem:[#allocation18 + $0x198] sm:$0xff]
    %v2722 = vld [vmem:[#allocation18 + $0x1a0] sm:$0xff]
    %v2723 = vld [vmem:[#allocation18 + $0x1a8] sm:$0xff]
    %v2724 = vld [vmem:[#allocation18 + $0x1b0] sm:$0xff]
    %v2725 = vld [vmem:[#allocation18 + $0x1b8] sm:$0xff]
    %v2726 = vld [vmem:[#allocation18 + $0x1c0] sm:$0xff]
    %v2727 = vld [vmem:[#allocation18 + $0x1c8] sm:$0xff]
    %v2728 = vld [vmem:[#allocation18 + $0x1d0] sm:$0xff]
    %v2729 = vld [vmem:[#allocation18 + $0x1d8] sm:$0xff]
    %v2730 = vld [vmem:[#allocation18 + $0x1e0] sm:$0xff]
    %v2731 = vld [vmem:[#allocation18 + $0x1e8] sm:$0xff]
    %v2732 = vld [vmem:[#allocation18 + $0x1f0] sm:$0xff]
    %v2733 = vld [vmem:[#allocation18 + $0x1f8] sm:$0xff]
    %v2734 = vpack.c.bf16 %v2668, %v2668
    %v2735 = vpack.c.bf16 %v2669, %v2669
    %v2736 = vld [vmem:[#allocation19] sm:$0xf]
    %v2738 = vlaneseq
    %v2739 = vshrl.u32 %v2738, 7
    %v2740 = vsub.s32 0, %v2739
    %v2741 = vrot.slane %v2736, %v2740
    %v2742 = vlaneseq
    %v2743 = vshrl.u32 %v2742, 7
    %v2744 = vsub.s32 1, %v2743
    %v2745 = vrot.slane %v2736, %v2744
    %v2746 = vlaneseq
    %v2747 = vshrl.u32 %v2746, 7
    %v2748 = vsub.s32 2, %v2747
    %v2749 = vrot.slane %v2736, %v2748
    %v2750 = vlaneseq
    %v2751 = vshrl.u32 %v2750, 7
    %v2752 = vsub.s32 3, %v2751
    %v2753 = vrot.slane %v2736, %v2752
    %v2822 = vunpack.c.l.b16 %v2670
    %v2823 = vunpack.c.h.b16 %v2670
    %v2824 = vunpack.c.l.b16 %v2671
    %v2825 = vunpack.c.h.b16 %v2671
    %v2826 = vunpack.c.l.b16 %v2672
    %v2827 = vunpack.c.h.b16 %v2672
    %v2828 = vunpack.c.l.b16 %v2673
    %v2829 = vunpack.c.h.b16 %v2673
    %v2830 = vunpack.c.l.b16 %v2674
    %v2831 = vunpack.c.h.b16 %v2674
    %v2832 = vunpack.c.l.b16 %v2675
    %v2833 = vunpack.c.h.b16 %v2675
    %v2834 = vunpack.c.l.b16 %v2676
    %v2835 = vunpack.c.h.b16 %v2676
    %v2836 = vunpack.c.l.b16 %v2677
    %v2837 = vunpack.c.h.b16 %v2677
    %v2838 = vunpack.c.l.b16 %v2678
    %v2839 = vunpack.c.h.b16 %v2678
    %v2840 = vunpack.c.l.b16 %v2679
    %v2841 = vunpack.c.h.b16 %v2679
    %v2842 = vunpack.c.l.b16 %v2680
    %v2843 = vunpack.c.h.b16 %v2680
    %v2844 = vunpack.c.l.b16 %v2681
    %v2845 = vunpack.c.h.b16 %v2681
    %v2846 = vunpack.c.l.b16 %v2682
    %v2847 = vunpack.c.h.b16 %v2682
    %v2848 = vunpack.c.l.b16 %v2683
    %v2849 = vunpack.c.h.b16 %v2683
    %v2850 = vunpack.c.l.b16 %v2684
    %v2851 = vunpack.c.h.b16 %v2684
    %v2852 = vunpack.c.l.b16 %v2685
    %v2853 = vunpack.c.h.b16 %v2685
    %v2854 = vunpack.c.l.b16 %v2686
    %v2855 = vunpack.c.h.b16 %v2686
    %v2856 = vunpack.c.l.b16 %v2687
    %v2857 = vunpack.c.h.b16 %v2687
    %v2858 = vunpack.c.l.b16 %v2688
    %v2859 = vunpack.c.h.b16 %v2688
    %v2860 = vunpack.c.l.b16 %v2689
    %v2861 = vunpack.c.h.b16 %v2689
    %v2862 = vunpack.c.l.b16 %v2690
    %v2863 = vunpack.c.h.b16 %v2690
    %v2864 = vunpack.c.l.b16 %v2691
    %v2865 = vunpack.c.h.b16 %v2691
    %v2866 = vunpack.c.l.b16 %v2692
    %v2867 = vunpack.c.h.b16 %v2692
    %v2868 = vunpack.c.l.b16 %v2693
    %v2869 = vunpack.c.h.b16 %v2693
    %v2870 = vunpack.c.l.b16 %v2694
    %v2871 = vunpack.c.h.b16 %v2694
    %v2872 = vunpack.c.l.b16 %v2695
    %v2873 = vunpack.c.h.b16 %v2695
    %v2874 = vunpack.c.l.b16 %v2696
    %v2875 = vunpack.c.h.b16 %v2696
    %v2876 = vunpack.c.l.b16 %v2697
    %v2877 = vunpack.c.h.b16 %v2697
    %v2878 = vunpack.c.l.b16 %v2698
    %v2879 = vunpack.c.h.b16 %v2698
    %v2880 = vunpack.c.l.b16 %v2699
    %v2881 = vunpack.c.h.b16 %v2699
    %v2882 = vunpack.c.l.b16 %v2700
    %v2883 = vunpack.c.h.b16 %v2700
    %v2884 = vunpack.c.l.b16 %v2701
    %v2885 = vunpack.c.h.b16 %v2701
    %v2886 = vunpack.c.l.b16 %v2702
    %v2887 = vunpack.c.h.b16 %v2702
    %v2888 = vunpack.c.l.b16 %v2703
    %v2889 = vunpack.c.h.b16 %v2703
    %v2890 = vunpack.c.l.b16 %v2704
    %v2891 = vunpack.c.h.b16 %v2704
    %v2892 = vunpack.c.l.b16 %v2705
    %v2893 = vunpack.c.h.b16 %v2705
    %v2894 = vunpack.c.l.b16 %v2706
    %v2895 = vunpack.c.h.b16 %v2706
    %v2896 = vunpack.c.l.b16 %v2707
    %v2897 = vunpack.c.h.b16 %v2707
    %v2898 = vunpack.c.l.b16 %v2708
    %v2899 = vunpack.c.h.b16 %v2708
    %v2900 = vunpack.c.l.b16 %v2709
    %v2901 = vunpack.c.h.b16 %v2709
    %v2902 = vunpack.c.l.b16 %v2710
    %v2903 = vunpack.c.h.b16 %v2710
    %v2904 = vunpack.c.l.b16 %v2711
    %v2905 = vunpack.c.h.b16 %v2711
    %v2906 = vunpack.c.l.b16 %v2712
    %v2907 = vunpack.c.h.b16 %v2712
    %v2908 = vunpack.c.l.b16 %v2713
    %v2909 = vunpack.c.h.b16 %v2713
    %v2910 = vunpack.c.l.b16 %v2714
    %v2911 = vunpack.c.h.b16 %v2714
    %v2912 = vunpack.c.l.b16 %v2715
    %v2913 = vunpack.c.h.b16 %v2715
    %v2914 = vunpack.c.l.b16 %v2716
    %v2915 = vunpack.c.h.b16 %v2716
    %v2916 = vunpack.c.l.b16 %v2717
    %v2917 = vunpack.c.h.b16 %v2717
    %v2918 = vunpack.c.l.b16 %v2718
    %v2919 = vunpack.c.h.b16 %v2718
    %v2920 = vunpack.c.l.b16 %v2719
    %v2921 = vunpack.c.h.b16 %v2719
    %v2922 = vunpack.c.l.b16 %v2720
    %v2923 = vunpack.c.h.b16 %v2720
    %v2924 = vunpack.c.l.b16 %v2721
    %v2925 = vunpack.c.h.b16 %v2721
    %v2926 = vunpack.c.l.b16 %v2722
    %v2927 = vunpack.c.h.b16 %v2722
    %v2928 = vunpack.c.l.b16 %v2723
    %v2929 = vunpack.c.h.b16 %v2723
    %v2930 = vunpack.c.l.b16 %v2724
    %v2931 = vunpack.c.h.b16 %v2724
    %v2932 = vunpack.c.l.b16 %v2725
    %v2933 = vunpack.c.h.b16 %v2725
    %v2934 = vunpack.c.l.b16 %v2726
    %v2935 = vunpack.c.h.b16 %v2726
    %v2936 = vunpack.c.l.b16 %v2727
    %v2937 = vunpack.c.h.b16 %v2727
    %v2938 = vunpack.c.l.b16 %v2728
    %v2939 = vunpack.c.h.b16 %v2728
    %v2940 = vunpack.c.l.b16 %v2729
    %v2941 = vunpack.c.h.b16 %v2729
    %v2942 = vunpack.c.l.b16 %v2730
    %v2943 = vunpack.c.h.b16 %v2730
    %v2944 = vunpack.c.l.b16 %v2731
    %v2945 = vunpack.c.h.b16 %v2731
    %v2946 = vunpack.c.l.b16 %v2732
    %v2947 = vunpack.c.h.b16 %v2732
    %v2948 = vunpack.c.l.b16 %v2733
    %v2949 = vunpack.c.h.b16 %v2733
    %v2950 = vpack.c.b16 %v2826, %v2822
    %v2951 = vpack.c.b16 %v2827, %v2823
    %v2952 = vpack.c.b16 %v2828, %v2824
    %v2953 = vpack.c.b16 %v2829, %v2825
    %v2954 = vpack.c.b16 %v2834, %v2830
    %v2955 = vpack.c.b16 %v2835, %v2831
    %v2956 = vpack.c.b16 %v2836, %v2832
    %v2957 = vpack.c.b16 %v2837, %v2833
    %v2958 = vpack.c.b16 %v2842, %v2838
    %v2959 = vpack.c.b16 %v2843, %v2839
    %v2960 = vpack.c.b16 %v2844, %v2840
    %v2961 = vpack.c.b16 %v2845, %v2841
    %v2962 = vpack.c.b16 %v2850, %v2846
    %v2963 = vpack.c.b16 %v2851, %v2847
    %v2964 = vpack.c.b16 %v2852, %v2848
    %v2965 = vpack.c.b16 %v2853, %v2849
    %v2966 = vpack.c.b16 %v2858, %v2854
    %v2967 = vpack.c.b16 %v2859, %v2855
    %v2968 = vpack.c.b16 %v2860, %v2856
    %v2969 = vpack.c.b16 %v2861, %v2857
    %v2970 = vpack.c.b16 %v2866, %v2862
    %v2971 = vpack.c.b16 %v2867, %v2863
    %v2972 = vpack.c.b16 %v2868, %v2864
    %v2973 = vpack.c.b16 %v2869, %v2865
    %v2974 = vpack.c.b16 %v2874, %v2870
    %v2975 = vpack.c.b16 %v2875, %v2871
    %v2976 = vpack.c.b16 %v2876, %v2872
    %v2977 = vpack.c.b16 %v2877, %v2873
    %v2978 = vpack.c.b16 %v2882, %v2878
    %v2979 = vpack.c.b16 %v2883, %v2879
    %v2980 = vpack.c.b16 %v2884, %v2880
    %v2981 = vpack.c.b16 %v2885, %v2881
    %v2982 = vpack.c.b16 %v2890, %v2886
    %v2983 = vpack.c.b16 %v2891, %v2887
    %v2984 = vpack.c.b16 %v2892, %v2888
    %v2985 = vpack.c.b16 %v2893, %v2889
    %v2986 = vpack.c.b16 %v2898, %v2894
    %v2987 = vpack.c.b16 %v2899, %v2895
    %v2988 = vpack.c.b16 %v2900, %v2896
    %v2989 = vpack.c.b16 %v2901, %v2897
    %v2990 = vpack.c.b16 %v2906, %v2902
    %v2991 = vpack.c.b16 %v2907, %v2903
    %v2992 = vpack.c.b16 %v2908, %v2904
    %v2993 = vpack.c.b16 %v2909, %v2905
    %v2994 = vpack.c.b16 %v2914, %v2910
    %v2995 = vpack.c.b16 %v2915, %v2911
    %v2996 = vpack.c.b16 %v2916, %v2912
    %v2997 = vpack.c.b16 %v2917, %v2913
    %v2998 = vpack.c.b16 %v2922, %v2918
    %v2999 = vpack.c.b16 %v2923, %v2919
    %v3000 = vpack.c.b16 %v2924, %v2920
    %v3001 = vpack.c.b16 %v2925, %v2921
    %v3002 = vpack.c.b16 %v2930, %v2926
    %v3003 = vpack.c.b16 %v2931, %v2927
    %v3004 = vpack.c.b16 %v2932, %v2928
    %v3005 = vpack.c.b16 %v2933, %v2929
    %v3006 = vpack.c.b16 %v2938, %v2934
    %v3007 = vpack.c.b16 %v2939, %v2935
    %v3008 = vpack.c.b16 %v2940, %v2936
    %v3009 = vpack.c.b16 %v2941, %v2937
    %v3010 = vpack.c.b16 %v2946, %v2942
    %v3011 = vpack.c.b16 %v2947, %v2943
    %v3012 = vpack.c.b16 %v2948, %v2944
    %v3013 = vpack.c.b16 %v2949, %v2945
    %3078 = vmatprep.subr.bf16.mxu0 %v2951
    %3079 = vmatpush1.bf16.msra.mxu0 %v2950
    %3080 = vmatprep.subr.bf16.mxu0 %v2955
    %3081 = vmatpush1.bf16.msra.mxu0 %v2954
    %3082 = vmatprep.subr.bf16.mxu0 %v2959
    %3083 = vmatpush1.bf16.msra.mxu0 %v2958
    %3084 = vmatprep.subr.bf16.mxu0 %v2963
    %3085 = vmatpush1.bf16.msra.mxu0 %v2962
    %3086 = vmatprep.subr.bf16.mxu0 %v2967
    %3087 = vmatpush1.bf16.msra.mxu0 %v2966
    %3088 = vmatprep.subr.bf16.mxu0 %v2971
    %3089 = vmatpush1.bf16.msra.mxu0 %v2970
    %3090 = vmatprep.subr.bf16.mxu0 %v2975
    %3091 = vmatpush1.bf16.msra.mxu0 %v2974
    %3092 = vmatprep.subr.bf16.mxu0 %v2979
    %3093 = vmatpush1.bf16.msra.mxu0 %v2978
    %3094 = vmatprep.subr.bf16.mxu0 %v2983
    %3095 = vmatpush1.bf16.msra.mxu0 %v2982
    %3096 = vmatprep.subr.bf16.mxu0 %v2987
    %3097 = vmatpush1.bf16.msra.mxu0 %v2986
    %3098 = vmatprep.subr.bf16.mxu0 %v2991
    %3099 = vmatpush1.bf16.msra.mxu0 %v2990
    %3100 = vmatprep.subr.bf16.mxu0 %v2995
    %3101 = vmatpush1.bf16.msra.mxu0 %v2994
    %3102 = vmatprep.subr.bf16.mxu0 %v2999
    %3103 = vmatpush1.bf16.msra.mxu0 %v2998
    %3104 = vmatprep.subr.bf16.mxu0 %v3003
    %3105 = vmatpush1.bf16.msra.mxu0 %v3002
    %3106 = vmatprep.subr.bf16.mxu0 %v3007
    %3107 = vmatpush1.bf16.msra.mxu0 %v3006
    %3108 = vmatprep.subr.bf16.mxu0 %v3011
    %3109 = vmatpush1.bf16.msra.mxu0 %v3010
    %3110 = vmatprep.mubr.bf16.mxu0 %v2735
    %3111 = vmatmul.mubr.bf16.gmra.mrb[0].mxu0 %v2734
    %v3112 = vpop.f32.mrb[0].mxu0
    %v3113 = vadd.f32 %v2741, %v3112
    %v3114 = vpop.f32.mrb[0].mxu0
    %v3115 = vadd.f32 %v2745, %v3114
    %v3116 = vpop.f32.mrb[0].mxu0
    %v3117 = vpop.f32.mrb[0].mxu0
    %3118 = vdwg.mxu0
    %3119 = vmatprep.subr.bf16.mxu0 %v2953
    %3120 = vmatpush1.bf16.msra.mxu0 %v2952
    %3121 = vmatprep.subr.bf16.mxu0 %v2957
    %3122 = vmatpush1.bf16.msra.mxu0 %v2956
    %3123 = vmatprep.subr.bf16.mxu0 %v2961
    %3124 = vmatpush1.bf16.msra.mxu0 %v2960
    %3125 = vmatprep.subr.bf16.mxu0 %v2965
    %3126 = vmatpush1.bf16.msra.mxu0 %v2964
    %3127 = vmatprep.subr.bf16.mxu0 %v2969
    %3128 = vmatpush1.bf16.msra.mxu0 %v2968
    %3129 = vmatprep.subr.bf16.mxu0 %v2973
    %3130 = vmatpush1.bf16.msra.mxu0 %v2972
    %3131 = vmatprep.subr.bf16.mxu0 %v2977
    %3132 = vmatpush1.bf16.msra.mxu0 %v2976
    %3133 = vmatprep.subr.bf16.mxu0 %v2981
    %3134 = vmatpush1.bf16.msra.mxu0 %v2980
    %3135 = vmatprep.subr.bf16.mxu0 %v2985
    %3136 = vmatpush1.bf16.msra.mxu0 %v2984
    %3137 = vmatprep.subr.bf16.mxu0 %v2989
    %3138 = vmatpush1.bf16.msra.mxu0 %v2988
    %3139 = vmatprep.subr.bf16.mxu0 %v2993
    %3140 = vmatpush1.bf16.msra.mxu0 %v2992
    %3141 = vmatprep.subr.bf16.mxu0 %v2997
    %3142 = vmatpush1.bf16.msra.mxu0 %v2996
    %3143 = vmatprep.subr.bf16.mxu0 %v3001
    %3144 = vmatpush1.bf16.msra.mxu0 %v3000
    %3145 = vmatprep.subr.bf16.mxu0 %v3005
    %3146 = vmatpush1.bf16.msra.mxu0 %v3004
    %3147 = vmatprep.subr.bf16.mxu0 %v3009
    %3148 = vmatpush1.bf16.msra.mxu0 %v3008
    %3149 = vmatprep.subr.bf16.mxu0 %v3013
    %3150 = vmatpush1.bf16.msra.mxu0 %v3012
    %3151 = vmatprep.mubr.bf16.mxu0 %v2735
    %3152 = vmatmul.mubr.bf16.gmra.mrb[0].mxu0 %v2734
    %v3153 = vpop.f32.mrb[0].mxu0
    %v3154 = vadd.f32 %v2749, %v3153
    %v3155 = vpop.f32.mrb[0].mxu0
    %v3156 = vadd.f32 %v2753, %v3155
    %v3157 = vpop.f32.mrb[0].mxu0
    %v3158 = vpop.f32.mrb[0].mxu0
    %3159 = vdwg.mxu0
    %v3160 = vmax.f32 %v3113, 0.0
    %v3161 = vmax.f32 %v3115, 0.0
    %v3162 = vmax.f32 %v3154, 0.0
    %v3163 = vmax.f32 %v3156, 0.0
    %v3164 = vld [vmem:[#allocation21] sm:$0xf]
    %v3165 = vld [vmem:[#allocation21 + $0x4] sm:$0xf]
    %v3166 = vld [vmem:[#allocation21 + $0x8] sm:$0xf]
    %v3167 = vld [vmem:[#allocation21 + $0xc] sm:$0xf]
    %v3168 = vld [vmem:[#allocation21 + $0x10] sm:$0xf]
    %v3169 = vld [vmem:[#allocation21 + $0x14] sm:$0xf]
    %v3170 = vld [vmem:[#allocation21 + $0x18] sm:$0xf]
    %v3171 = vld [vmem:[#allocation21 + $0x1c] sm:$0xf]
    %v3172 = vld [vmem:[#allocation21 + $0x20] sm:$0xf]
    %v3173 = vld [vmem:[#allocation21 + $0x24] sm:$0xf]
    %v3174 = vld [vmem:[#allocation21 + $0x28] sm:$0xf]
    %v3175 = vld [vmem:[#allocation21 + $0x2c] sm:$0xf]
    %v3176 = vld [vmem:[#allocation21 + $0x30] sm:$0xf]
    %v3177 = vld [vmem:[#allocation21 + $0x34] sm:$0xf]
    %v3178 = vld [vmem:[#allocation21 + $0x38] sm:$0xf]
    %v3179 = vld [vmem:[#allocation21 + $0x3c] sm:$0xf]
    %v3180 = vld [vmem:[#allocation21 + $0x40] sm:$0xf]
    %v3181 = vld [vmem:[#allocation21 + $0x44] sm:$0xf]
    %v3182 = vld [vmem:[#allocation21 + $0x48] sm:$0xf]
    %v3183 = vld [vmem:[#allocation21 + $0x4c] sm:$0xf]
    %v3184 = vld [vmem:[#allocation21 + $0x50] sm:$0xf]
    %v3185 = vld [vmem:[#allocation21 + $0x54] sm:$0xf]
    %v3186 = vld [vmem:[#allocation21 + $0x58] sm:$0xf]
    %v3187 = vld [vmem:[#allocation21 + $0x5c] sm:$0xf]
    %v3188 = vld [vmem:[#allocation21 + $0x60] sm:$0xf]
    %v3189 = vld [vmem:[#allocation21 + $0x64] sm:$0xf]
    %v3190 = vld [vmem:[#allocation21 + $0x68] sm:$0xf]
    %v3191 = vld [vmem:[#allocation21 + $0x6c] sm:$0xf]
    %v3192 = vld [vmem:[#allocation21 + $0x70] sm:$0xf]
    %v3193 = vld [vmem:[#allocation21 + $0x74] sm:$0xf]
    %v3194 = vld [vmem:[#allocation21 + $0x78] sm:$0xf]
    %v3195 = vld [vmem:[#allocation21 + $0x7c] sm:$0xf]
    %v3196 = vld [vmem:[#allocation21 + $0x80] sm:$0xf]
    %v3197 = vld [vmem:[#allocation21 + $0x84] sm:$0xf]
    %v3198 = vld [vmem:[#allocation21 + $0x88] sm:$0xf]
    %v3199 = vld [vmem:[#allocation21 + $0x8c] sm:$0xf]
    %v3200 = vld [vmem:[#allocation21 + $0x90] sm:$0xf]
    %v3201 = vld [vmem:[#allocation21 + $0x94] sm:$0xf]
    %v3202 = vld [vmem:[#allocation21 + $0x98] sm:$0xf]
    %v3203 = vld [vmem:[#allocation21 + $0x9c] sm:$0xf]
    %v3204 = vld [vmem:[#allocation21 + $0xa0] sm:$0xf]
    %v3205 = vld [vmem:[#allocation21 + $0xa4] sm:$0xf]
    %v3206 = vld [vmem:[#allocation21 + $0xa8] sm:$0xf]
    %v3207 = vld [vmem:[#allocation21 + $0xac] sm:$0xf]
    %v3208 = vld [vmem:[#allocation21 + $0xb0] sm:$0xf]
    %v3209 = vld [vmem:[#allocation21 + $0xb4] sm:$0xf]
    %v3210 = vld [vmem:[#allocation21 + $0xb8] sm:$0xf]
    %v3211 = vld [vmem:[#allocation21 + $0xbc] sm:$0xf]
    %v3212 = vld [vmem:[#allocation21 + $0xc0] sm:$0xf]
    %v3213 = vld [vmem:[#allocation21 + $0xc4] sm:$0xf]
    %v3214 = vld [vmem:[#allocation21 + $0xc8] sm:$0xf]
    %v3215 = vld [vmem:[#allocation21 + $0xcc] sm:$0xf]
    %v3216 = vld [vmem:[#allocation21 + $0xd0] sm:$0xf]
    %v3217 = vld [vmem:[#allocation21 + $0xd4] sm:$0xf]
    %v3218 = vld [vmem:[#allocation21 + $0xd8] sm:$0xf]
    %v3219 = vld [vmem:[#allocation21 + $0xdc] sm:$0xf]
    %v3220 = vld [vmem:[#allocation21 + $0xe0] sm:$0xf]
    %v3221 = vld [vmem:[#allocation21 + $0xe4] sm:$0xf]
    %v3222 = vld [vmem:[#allocation21 + $0xe8] sm:$0xf]
    %v3223 = vld [vmem:[#allocation21 + $0xec] sm:$0xf]
    %v3224 = vld [vmem:[#allocation21 + $0xf0] sm:$0xf]
    %v3225 = vld [vmem:[#allocation21 + $0xf4] sm:$0xf]
    %v3226 = vld [vmem:[#allocation21 + $0xf8] sm:$0xf]
    %v3227 = vld [vmem:[#allocation21 + $0xfc] sm:$0xf]
    %v3228 = vpack.c.bf16 %v3160, %v3160
    %v3229 = vpack.c.bf16 %v3161, %v3161
    %v3230 = vpack.c.bf16 %v3162, %v3162
    %v3231 = vpack.c.bf16 %v3163, %v3163
    %v3232 = vld [vmem:[#allocation22] sm:$0x1]
    %v3234 = vlaneseq
    %v3235 = vshrl.u32 %v3234, 7
    %v3236 = vsub.s32 0, %v3235
    %v3237 = vrot.slane %v3232, %v3236
    %v3303 = vunpack.c.l.b16 %v3164
    %v3304 = vunpack.c.l.b16 %v3165
    %v3305 = vunpack.c.l.b16 %v3166
    %v3306 = vunpack.c.l.b16 %v3167
    %v3307 = vunpack.c.l.b16 %v3168
    %v3308 = vunpack.c.l.b16 %v3169
    %v3309 = vunpack.c.l.b16 %v3170
    %v3310 = vunpack.c.l.b16 %v3171
    %v3311 = vunpack.c.l.b16 %v3172
    %v3312 = vunpack.c.l.b16 %v3173
    %v3313 = vunpack.c.l.b16 %v3174
    %v3314 = vunpack.c.l.b16 %v3175
    %v3315 = vunpack.c.l.b16 %v3176
    %v3316 = vunpack.c.l.b16 %v3177
    %v3317 = vunpack.c.l.b16 %v3178
    %v3318 = vunpack.c.l.b16 %v3179
    %v3319 = vunpack.c.l.b16 %v3180
    %v3320 = vunpack.c.l.b16 %v3181
    %v3321 = vunpack.c.l.b16 %v3182
    %v3322 = vunpack.c.l.b16 %v3183
    %v3323 = vunpack.c.l.b16 %v3184
    %v3324 = vunpack.c.l.b16 %v3185
    %v3325 = vunpack.c.l.b16 %v3186
    %v3326 = vunpack.c.l.b16 %v3187
    %v3327 = vunpack.c.l.b16 %v3188
    %v3328 = vunpack.c.l.b16 %v3189
    %v3329 = vunpack.c.l.b16 %v3190
    %v3330 = vunpack.c.l.b16 %v3191
    %v3331 = vunpack.c.l.b16 %v3192
    %v3332 = vunpack.c.l.b16 %v3193
    %v3333 = vunpack.c.l.b16 %v3194
    %v3334 = vunpack.c.l.b16 %v3195
    %v3335 = vunpack.c.l.b16 %v3196
    %v3336 = vunpack.c.l.b16 %v3197
    %v3337 = vunpack.c.l.b16 %v3198
    %v3338 = vunpack.c.l.b16 %v3199
    %v3339 = vunpack.c.l.b16 %v3200
    %v3340 = vunpack.c.l.b16 %v3201
    %v3341 = vunpack.c.l.b16 %v3202
    %v3342 = vunpack.c.l.b16 %v3203
    %v3343 = vunpack.c.l.b16 %v3204
    %v3344 = vunpack.c.l.b16 %v3205
    %v3345 = vunpack.c.l.b16 %v3206
    %v3346 = vunpack.c.l.b16 %v3207
    %v3347 = vunpack.c.l.b16 %v3208
    %v3348 = vunpack.c.l.b16 %v3209
    %v3349 = vunpack.c.l.b16 %v3210
    %v3350 = vunpack.c.l.b16 %v3211
    %v3351 = vunpack.c.l.b16 %v3212
    %v3352 = vunpack.c.l.b16 %v3213
    %v3353 = vunpack.c.l.b16 %v3214
    %v3354 = vunpack.c.l.b16 %v3215
    %v3355 = vunpack.c.l.b16 %v3216
    %v3356 = vunpack.c.l.b16 %v3217
    %v3357 = vunpack.c.l.b16 %v3218
    %v3358 = vunpack.c.l.b16 %v3219
    %v3359 = vunpack.c.l.b16 %v3220
    %v3360 = vunpack.c.l.b16 %v3221
    %v3361 = vunpack.c.l.b16 %v3222
    %v3362 = vunpack.c.l.b16 %v3223
    %v3363 = vunpack.c.l.b16 %v3224
    %v3364 = vunpack.c.l.b16 %v3225
    %v3365 = vunpack.c.l.b16 %v3226
    %v3366 = vunpack.c.l.b16 %v3227
    %v3367 = vpack.c.b16 %v3304, %v3303
    %v3368 = vpack.c.b16 %v3306, %v3305
    %v3369 = vpack.c.b16 %v3308, %v3307
    %v3370 = vpack.c.b16 %v3310, %v3309
    %v3371 = vpack.c.b16 %v3312, %v3311
    %v3372 = vpack.c.b16 %v3314, %v3313
    %v3373 = vpack.c.b16 %v3316, %v3315
    %v3374 = vpack.c.b16 %v3318, %v3317
    %v3375 = vpack.c.b16 %v3320, %v3319
    %v3376 = vpack.c.b16 %v3322, %v3321
    %v3377 = vpack.c.b16 %v3324, %v3323
    %v3378 = vpack.c.b16 %v3326, %v3325
    %v3379 = vpack.c.b16 %v3328, %v3327
    %v3380 = vpack.c.b16 %v3330, %v3329
    %v3381 = vpack.c.b16 %v3332, %v3331
    %v3382 = vpack.c.b16 %v3334, %v3333
    %v3383 = vpack.c.b16 %v3336, %v3335
    %v3384 = vpack.c.b16 %v3338, %v3337
    %v3385 = vpack.c.b16 %v3340, %v3339
    %v3386 = vpack.c.b16 %v3342, %v3341
    %v3387 = vpack.c.b16 %v3344, %v3343
    %v3388 = vpack.c.b16 %v3346, %v3345
    %v3389 = vpack.c.b16 %v3348, %v3347
    %v3390 = vpack.c.b16 %v3350, %v3349
    %v3391 = vpack.c.b16 %v3352, %v3351
    %v3392 = vpack.c.b16 %v3354, %v3353
    %v3393 = vpack.c.b16 %v3356, %v3355
    %v3394 = vpack.c.b16 %v3358, %v3357
    %v3395 = vpack.c.b16 %v3360, %v3359
    %v3396 = vpack.c.b16 %v3362, %v3361
    %v3397 = vpack.c.b16 %v3364, %v3363
    %v3398 = vpack.c.b16 %v3366, %v3365
    %3431 = vmatprep.subr.bf16.mxu0 0
    %3432 = vmatpush1.bf16.msra.mxu0 %v3367
    %3433 = vmatprep.subr.bf16.mxu0 0
    %3434 = vmatpush1.bf16.msra.mxu0 %v3368
    %3435 = vmatprep.subr.bf16.mxu0 0
    %3436 = vmatpush1.bf16.msra.mxu0 %v3369
    %3437 = vmatprep.subr.bf16.mxu0 0
    %3438 = vmatpush1.bf16.msra.mxu0 %v3370
    %3439 = vmatprep.subr.bf16.mxu0 0
    %3440 = vmatpush1.bf16.msra.mxu0 %v3371
    %3441 = vmatprep.subr.bf16.mxu0 0
    %3442 = vmatpush1.bf16.msra.mxu0 %v3372
    %3443 = vmatprep.subr.bf16.mxu0 0
    %3444 = vmatpush1.bf16.msra.mxu0 %v3373
    %3445 = vmatprep.subr.bf16.mxu0 0
    %3446 = vmatpush1.bf16.msra.mxu0 %v3374
    %3447 = vmatprep.subr.bf16.mxu0 0
    %3448 = vmatpush1.bf16.msra.mxu0 %v3375
    %3449 = vmatprep.subr.bf16.mxu0 0
    %3450 = vmatpush1.bf16.msra.mxu0 %v3376
    %3451 = vmatprep.subr.bf16.mxu0 0
    %3452 = vmatpush1.bf16.msra.mxu0 %v3377
    %3453 = vmatprep.subr.bf16.mxu0 0
    %3454 = vmatpush1.bf16.msra.mxu0 %v3378
    %3455 = vmatprep.subr.bf16.mxu0 0
    %3456 = vmatpush1.bf16.msra.mxu0 %v3379
    %3457 = vmatprep.subr.bf16.mxu0 0
    %3458 = vmatpush1.bf16.msra.mxu0 %v3380
    %3459 = vmatprep.subr.bf16.mxu0 0
    %3460 = vmatpush1.bf16.msra.mxu0 %v3381
    %3461 = vmatprep.subr.bf16.mxu0 0
    %3462 = vmatpush1.bf16.msra.mxu0 %v3382
    %3463 = vmatprep.mubr.bf16.mxu0 %v3229
    %3464 = vmatmul.mubr.bf16.gmra.mrb[0].mxu0 %v3228
    %v3465 = vpop.f32.mrb[0].mxu0
    %v3466 = vadd.f32 %v3237, %v3465
    %v3467 = vpop.f32.mrb[0].mxu0
    %v3468 = vpop.f32.mrb[0].mxu0
    %v3469 = vpop.f32.mrb[0].mxu0
    %3470 = vdwg.mxu0
    %3471 = vmatprep.subr.bf16.mxu0 0
    %3472 = vmatpush1.bf16.msra.mxu0 %v3383
    %3473 = vmatprep.subr.bf16.mxu0 0
    %3474 = vmatpush1.bf16.msra.mxu0 %v3384
    %3475 = vmatprep.subr.bf16.mxu0 0
    %3476 = vmatpush1.bf16.msra.mxu0 %v3385
    %3477 = vmatprep.subr.bf16.mxu0 0
    %3478 = vmatpush1.bf16.msra.mxu0 %v3386
    %3479 = vmatprep.subr.bf16.mxu0 0
    %3480 = vmatpush1.bf16.msra.mxu0 %v3387
    %3481 = vmatprep.subr.bf16.mxu0 0
    %3482 = vmatpush1.bf16.msra.mxu0 %v3388
    %3483 = vmatprep.subr.bf16.mxu0 0
    %3484 = vmatpush1.bf16.msra.mxu0 %v3389
    %3485 = vmatprep.subr.bf16.mxu0 0
    %3486 = vmatpush1.bf16.msra.mxu0 %v3390
    %3487 = vmatprep.subr.bf16.mxu0 0
    %3488 = vmatpush1.bf16.msra.mxu0 %v3391
    %3489 = vmatprep.subr.bf16.mxu0 0
    %3490 = vmatpush1.bf16.msra.mxu0 %v3392
    %3491 = vmatprep.subr.bf16.mxu0 0
    %3492 = vmatpush1.bf16.msra.mxu0 %v3393
    %3493 = vmatprep.subr.bf16.mxu0 0
    %3494 = vmatpush1.bf16.msra.mxu0 %v3394
    %3495 = vmatprep.subr.bf16.mxu0 0
    %3496 = vmatpush1.bf16.msra.mxu0 %v3395
    %3497 = vmatprep.subr.bf16.mxu0 0
    %3498 = vmatpush1.bf16.msra.mxu0 %v3396
    %3499 = vmatprep.subr.bf16.mxu0 0
    %3500 = vmatpush1.bf16.msra.mxu0 %v3397
    %3501 = vmatprep.subr.bf16.mxu0 0
    %3502 = vmatpush1.bf16.msra.mxu0 %v3398
    %3503 = vmatprep.mubr.bf16.mxu0 %v3231
    %3504 = vmatmul.mubr.bf16.gmra.mrb[0].mxu0 %v3230
    %v3505 = vpop.f32.mrb[0].mxu0
    %v3506 = vadd.f32 %v3466, %v3505
    %v3507 = vpop.f32.mrb[0].mxu0
    %v3508 = vpop.f32.mrb[0].mxu0
    %v3509 = vpop.f32.mrb[0].mxu0
    %3510 = vdwg.mxu0
    %3511 = vst [vmem:[%s21] sm:$0xff] %v3506
    // Predicated region
    $region149: #{pallas_forward.1} parent=1 // pred_check
      _
    $region150: #{pallas_forward.1} parent=1 // pred_check_branch
      %3513 = sbr.rel (0) target = $region152
    $region151: #{pallas_forward.1} parent=1 // pred_region
      _
    $region152: #{pallas_forward.1} parent=1 // pred_fallthru
      _
    // Predicated region
    $region153: #{pallas_forward.1} parent=1 // pred_check
      _
    $region154: #{pallas_forward.1} parent=1 // pred_check_branch
      %3515 = sbr.rel (0) target = $region156
    $region155: #{pallas_forward.1} parent=1 // pred_region
      _
    $region156: #{pallas_forward.1} parent=1 // pred_fallthru
      _
    %3516 = vsyncpa [#allocation3], 1
    %3517 = vsyncpa [#allocation5], 1
    %3518 = vsyncpa [#allocation8], 1
    %3519 = vsyncpa [#allocation11], 1
    %3520 = vsyncpa [#allocation14], 1
    %3521 = vsyncpa [#allocation17], 1
    %3522 = vsyncpa [#allocation20], 1
    %3523 = vsyncpa [#allocation23], 1

</llo_original>
